<compile_context>
chip_gen: v7x
topology: tpu7x:2x2x1
jax: 0.10.0
libtpu: 0.0.40
codegen_flags: <defaults>
</compile_context>

<pallas_src>
import jax
import jax.numpy as jnp
from jax.experimental import pallas as pl
from jax.experimental.pallas import tpu as pltpu

LEAKY_SLOPE = 0.01   # F.leaky_relu default negative_slope
LN_EPS = 1e-5        # nn.LayerNorm default eps


def _round_up(x, m):
    return (x + m - 1) // m * m


def _leaky_relu(y):
    return jnp.where(y >= 0, y, LEAKY_SLOPE * y)


def _layernorm(y, gamma, beta):
    # PyTorch LayerNorm: biased variance over the normalized (last) dim, f32 stats.
    mu = jnp.mean(y, axis=-1, keepdims=True)
    var = jnp.mean((y - mu) ** 2, axis=-1, keepdims=True)
    return (y - mu) * jax.lax.rsqrt(var + LN_EPS) * gamma + beta


# ----------------------------------------------------------------------------
# Fused backbone kernel: one grid step = TB whole sequences (TB*L rows), all
# residual blocks applied in-kernel with weights resident in VMEM.
# ----------------------------------------------------------------------------
def make_backbone_kernel(block_dilations, TB, L, C):
    C2 = C // 2
    ROWS = TB * L

    def kernel(x_ref, w_red_ref, b_red_ref, gm_ref, bm_ref,
               wm_ref, bmk_ref, gi_ref, bi_ref, w_inc_ref, b_inc_ref, o_ref):
        x = x_ref[...].astype(jnp.float32)                     # (ROWS, C)

        # Position within each sequence, used to mask cross-sequence leakage of the
        # causal shift when several sequences share the row tile. Hoisted out of the
        # (statically unrolled) block loop.
        if TB > 1:
            pos = jax.lax.broadcasted_iota(jnp.int32, (ROWS, 1), 0) % L
        else:
            pos = None

        for blk, d in enumerate(block_dilations):
            # NOTE: the reference forward computes reduce_norm(x) but immediately
            # overwrites it with leaky_relu(x) -> dead code, omitted.
            y = _leaky_relu(x)

            # reduce: Conv1d(C -> C/2, kernel=1)  ==  (ROWS,C) @ (C,C2) + b
            y = jnp.dot(y.astype(jnp.bfloat16), w_red_ref[blk],
                        preferred_element_type=jnp.float32) + b_red_ref[blk]
            y = _layernorm(y, gm_ref[blk], bm_ref[blk])
            y = _leaky_relu(y)

            # masked: causal dilated Conv1d(C/2 -> C/2, k=3, dilation=d), left pad 2d:
            #   out[t] = b + sum_k W_k @ y[t - (2-k)*d]
            # Build the 3 causally shifted copies with zero-pad + slice (no L^2
            # matmuls), concat along channels, contract with the fused (3*C2, C2)
            # weight in ONE MXU matmul.
            taps = []
            for k in range(3):
                s = (2 - k) * d                                 # static causal shift
                if s == 0:
                    taps.append(y)
                elif s >= L:
                    taps.append(jnp.zeros((ROWS, C2), jnp.float32))
                else:
                    shifted = jnp.concatenate(
                        [jnp.zeros((s, C2), jnp.float32), y[:ROWS - s, :]], axis=0)
                    if TB > 1:
                        # zero rows whose source would belong to the previous sequence
                        shifted = jnp.where(pos >= s, shifted, 0.0)
                    taps.append(shifted)
            yc = jnp.concatenate(taps, axis=-1)                 # (ROWS, 3*C2)
            y = jnp.dot(yc.astype(jnp.bfloat16), wm_ref[blk],
                        preferred_element_type=jnp.float32) + bmk_ref[blk]

            y = _layernorm(y, gi_ref[blk], bi_ref[blk])
            y = _leaky_relu(y)

            # increase: Conv1d(C/2 -> C, kernel=1)
            y = jnp.dot(y.astype(jnp.bfloat16), w_inc_ref[blk],
                        preferred_element_type=jnp.float32) + b_inc_ref[blk]

            x = x + y                                           # residual

        o_ref[...] = x.astype(o_ref.dtype)

    return kernel


def nextitnet_backbone(x, stacked, block_dilations):
    """x: (B, L, C) f32 -> (B*L, C) f32 after all residual blocks."""
    B, L, C = x.shape
    C2 = C // 2
    NB = len(block_dilations)

    # Rows per grid step: whole sequences only; target >=128 MXU rows per step.
    if L % 8 == 0:
        TB = max(1, min(B, (128 + L - 1) // L))
    else:
        TB = B                                   # single full-extent tile (layout-safe)
    Bp = _round_up(B, TB)
    if Bp != B:
        x = jnp.pad(x, ((0, Bp - B), (0, 0), (0, 0)))
    rows_tile = TB * L

    x2d = x.reshape(Bp * L, C)
    kernel = make_backbone_kernel(tuple(block_dilations), TB, L, C)

    def full_spec(shape):
        n = len(shape)
        return pl.BlockSpec(shape, lambda i, _n=n: (0,) * _n)

    out = pl.pallas_call(
        kernel,
        out_shape=jax.ShapeDtypeStruct((Bp * L, C), jnp.float32),
        grid=(Bp // TB,),
        in_specs=[
            pl.BlockSpec((rows_tile, C), lambda i: (i, 0)),     # activations
            full_spec((NB, C, C2)),        # w_reduce   (bf16)
            full_spec((NB, 1, C2)),        # b_reduce
            full_spec((NB, 1, C2)),        # masked_norm gamma
            full_spec((NB, 1, C2)),        # masked_norm beta
            full_spec((NB, 3 * C2, C2)),   # fused masked-conv weight (bf16)
            full_spec((NB, 1, C2)),        # masked conv bias
            full_spec((NB, 1, C2)),        # increase_norm gamma
            full_spec((NB, 1, C2)),        # increase_norm beta
            full_spec((NB, C2, C)),        # w_increase (bf16)
            full_spec((NB, 1, C)),         # b_increase
        ],
        out_specs=pl.BlockSpec((rows_tile, C), lambda i: (i, 0)),
        compiler_params=pltpu.CompilerParams(
            dimension_semantics=("parallel",),
            # Stacked weights + one double-buffered row tile fit easily; explicit
            # limit keeps the budget valid on v7x (64 MiB VMEM / 32 MiB scoped).
            vmem_limit_bytes=32 * 1024 * 1024,
        ),
    )(x2d, stacked["w_reduce"], stacked["b_reduce"],
      stacked["ln_m_gamma"], stacked["ln_m_beta"],
      stacked["w_masked"], stacked["b_masked"],
      stacked["ln_i_gamma"], stacked["ln_i_beta"],
      stacked["w_increase"], stacked["b_increase"])

    return out[:B * L] if Bp != B else out


# ----------------------------------------------------------------------------
# Final Linear(E -> output_dim), tiled, lane-dense output (O padded to 128).
# ----------------------------------------------------------------------------
def linear_kernel(x_ref, w_ref, b_ref, o_ref):
    acc = jnp.dot(x_ref[...].astype(jnp.bfloat16), w_ref[...],
                  preferred_element_type=jnp.float32)
    o_ref[...] = (acc + b_ref[...]).astype(o_ref.dtype)


def final_linear(x2d, w_bf16, b, *, tm=256, tn=128):
    M, E = x2d.shape
    O = w_bf16.shape[1]
    Op = _round_up(O, tn)
    if Op != O:
        w_bf16 = jnp.pad(w_bf16, ((0, 0), (0, Op - O)))
        b = jnp.pad(b, ((0, 0), (0, Op - O)))
    if M <= tm:
        TM, Mp = M, M                             # single full-extent row tile
    else:
        TM = tm
        Mp = _round_up(M, TM)
        if Mp != M:
            x2d = jnp.pad(x2d, ((0, Mp - M), (0, 0)))

    out = pl.pallas_call(
        linear_kernel,
        out_shape=jax.ShapeDtypeStruct((Mp, Op), jnp.float32),
        grid=(Mp // TM, Op // tn),
        in_specs=[pl.BlockSpec((TM, E), lambda i, j: (i, 0)),
                  pl.BlockSpec((E, tn), lambda i, j: (0, j)),
                  pl.BlockSpec((1, tn), lambda i, j: (0, j))],
        out_specs=pl.BlockSpec((TM, tn), lambda i, j: (i, j)),
        compiler_params=pltpu.CompilerParams(
            dimension_semantics=("parallel", "parallel")),
    )(x2d, w_bf16, b)
    return out[:M, :O]


# ----------------------------------------------------------------------------
# Parameter init (deterministic, synthetic), weights stacked per res block.
# ----------------------------------------------------------------------------
def init_params(key, embedding_dim, output_dim, hidden_layers, dilations, pad_token):
    C = embedding_dim
    C2 = C // 2
    block_dilations = [d for _ in range(hidden_layers) for d in dilations]
    NB = len(block_dilations)

    keys = jax.random.split(key, 16)
    it = iter(range(16))

    def nrm(shape, scale=0.05, dtype=jnp.float32):
        return (scale * jax.random.normal(keys[next(it)], shape)).astype(dtype)

    emb = nrm((output_dim + 1, C), 0.5)
    emb = emb.at[pad_token].set(0.0)                     # padding_idx row is zero

    # MXU operand weights stored in bf16 (accumulation stays f32 in-kernel).
    # Mapping from PyTorch:
    #   w_reduce[blk]   = reduce.weight[:, :, 0].T                     (C, C2)
    #   w_masked[blk]   = concat([masked.weight[:, :, k].T for k=0..2], axis=0)  (3*C2, C2)
    #   w_increase[blk] = increase.weight[:, :, 0].T                   (C2, C)
    stacked = dict(
        w_reduce=nrm((NB, C, C2), dtype=jnp.bfloat16),
        b_reduce=nrm((NB, 1, C2)),
        ln_m_gamma=jnp.ones((NB, 1, C2), jnp.float32),
        ln_m_beta=jnp.zeros((NB, 1, C2), jnp.float32),
        w_masked=nrm((NB, 3 * C2, C2), dtype=jnp.bfloat16),
        b_masked=nrm((NB, 1, C2)),
        ln_i_gamma=jnp.ones((NB, 1, C2), jnp.float32),
        ln_i_beta=jnp.zeros((NB, 1, C2), jnp.float32),
        w_increase=nrm((NB, C2, C), dtype=jnp.bfloat16),
        b_increase=nrm((NB, 1, C)),
    )
    w_final = nrm((C, output_dim), dtype=jnp.bfloat16)   # Linear.weight.T
    b_final = nrm((1, output_dim))
    return emb, stacked, block_dilations, w_final, b_final


def nextitnet_forward(item_ids, emb, stacked, block_dilations, w_final, b_final):
    # item_ids: (B, L) int32
    B, L = item_ids.shape
    x = emb[item_ids]                                    # (B, L, C) embedding gather (glue)
    rows = nextitnet_backbone(x, stacked, block_dilations)   # (B*L, C)
    y = final_linear(rows, w_final, b_final)             # (B*L, output_dim)
    return y.reshape(B, L, -1)                           # (B, L, output_dim)


if __name__ == "__main__":
    key = jax.random.PRNGKey(0)
    B, L = 2, 16
    embedding_dim, output_dim, max_len = 32, 20, 16
    hidden_layers, dilations, pad_token = 2, [1, 2, 4, 8], 0

    kp, kx = jax.random.split(key)
    emb, stacked, block_dilations, w_final, b_final = init_params(
        kp, embedding_dim, output_dim, hidden_layers, dilations, pad_token)

    item_ids = jax.random.randint(kx, (B, L), 0, output_dim + 1, dtype=jnp.int32)

    fwd = jax.jit(lambda ids: nextitnet_forward(
        ids, emb, stacked, block_dilations, w_final, b_final))
    out = jax.block_until_ready(fwd(item_ids))
    assert out.shape == (B, L, output_dim), out.shape
    assert out.dtype == jnp.float32, out.dtype
    print("KERNEL_OK")
</pallas_src>

<mosaic_0001>
module attributes {stable_mosaic.version = 11 : i64} {
  func.func @linear_kernel(%arg0: i32, %arg1: i32, %arg2: memref<32x32xf32, #tpu.memory_space<vmem>>, %arg3: memref<32x128xbf16, #tpu.memory_space<vmem>>, %arg4: memref<1x128xf32, #tpu.memory_space<vmem>>, %arg5: memref<32x128xf32, #tpu.memory_space<vmem>>) attributes {dimension_semantics = [#tpu.dimension_semantics<parallel>, #tpu.dimension_semantics<parallel>], iteration_bounds = array<i64: 1, 1>, scalar_prefetch = 0 : i64, scratch_operands = 0 : i64, tpu.core_type = #tpu.core_type<tc>, window_params = [{transform_indices = @transform_0, window_bounds = array<i64: 32, 32>}, {transform_indices = @transform_1, window_bounds = array<i64: 32, 128>}, {transform_indices = @transform_2, window_bounds = array<i64: 1, 128>}, {transform_indices = @transform_3, window_bounds = array<i64: 32, 128>}]} {
    %c0 = arith.constant 0 : index
    %c0_0 = arith.constant 0 : index
    %0 = vector.load %arg2[%c0, %c0_0] : memref<32x32xf32, #tpu.memory_space<vmem>>, vector<32x32xf32>
    %1 = arith.truncf %0 : vector<32x32xf32> to vector<32x32xbf16>
    %c0_1 = arith.constant 0 : index
    %c0_2 = arith.constant 0 : index
    %2 = vector.load %arg3[%c0_1, %c0_2] : memref<32x128xbf16, #tpu.memory_space<vmem>>, vector<32x128xbf16>
    %cst = arith.constant dense<0.000000e+00> : vector<32x128xf32>
    %3 = tpu.matmul %1, %2, %cst {dimension_numbers = #tpu.dot_dimension_numbers<[1], [0], [0], [1], [0, 0, 1, 1], [], []>} : vector<32x32xbf16>, vector<32x128xbf16>, vector<32x128xf32> -> vector<32x128xf32>
    %c0_3 = arith.constant 0 : index
    %c0_4 = arith.constant 0 : index
    %4 = vector.load %arg4[%c0_3, %c0_4] : memref<1x128xf32, #tpu.memory_space<vmem>>, vector<1x128xf32>
    %5 = vector.broadcast %4 : vector<1x128xf32> to vector<32x128xf32>
    %6 = arith.addf %3, %5 : vector<32x128xf32>
    %c0_5 = arith.constant 0 : index
    %c0_6 = arith.constant 0 : index
    %7 = vector.load %arg5[%c0_5, %c0_6] : memref<32x128xf32, #tpu.memory_space<vmem>>, vector<32x128xf32>
    tpu.vector_store %arg5[%c0_5, %c0_6], %6 {strides = array<i32>} : memref<32x128xf32, #tpu.memory_space<vmem>>, vector<32x128xf32>,
    return
  }
  func.func @transform_0(%arg0: i32, %arg1: i32) -> (i32, i32) {
    %c0_i32 = arith.constant 0 : i32
    %c0_i32_0 = arith.constant 0 : i32
    return %arg0, %c0_i32 : i32, i32
  }
  func.func @transform_1(%arg0: i32, %arg1: i32) -> (i32, i32) {
    %c0_i32 = arith.constant 0 : i32
    %c0_i32_0 = arith.constant 0 : i32
    return %c0_i32, %arg1 : i32, i32
  }
  func.func @transform_2(%arg0: i32, %arg1: i32) -> (i32, i32) {
    %c0_i32 = arith.constant 0 : i32
    %c0_i32_0 = arith.constant 0 : i32
    return %c0_i32, %arg1 : i32, i32
  }
  func.func @transform_3(%arg0: i32, %arg1: i32) -> (i32, i32) {
    %c0_i32 = arith.constant 0 : i32
    return %arg0, %arg1 : i32, i32
  }
}

module attributes {stable_mosaic.version = 11 : i64} {
  func.func @kernel(%arg0: i32, %arg1: memref<32x32xf32, #tpu.memory_space<vmem>>, %arg2: memref<8x32x16xbf16, #tpu.memory_space<vmem>>, %arg3: memref<8x1x16xf32, #tpu.memory_space<vmem>>, %arg4: memref<8x1x16xf32, #tpu.memory_space<vmem>>, %arg5: memref<8x1x16xf32, #tpu.memory_space<vmem>>, %arg6: memref<8x48x16xbf16, #tpu.memory_space<vmem>>, %arg7: memref<8x1x16xf32, #tpu.memory_space<vmem>>, %arg8: memref<8x1x16xf32, #tpu.memory_space<vmem>>, %arg9: memref<8x1x16xf32, #tpu.memory_space<vmem>>, %arg10: memref<8x16x32xbf16, #tpu.memory_space<vmem>>, %arg11: memref<8x1x32xf32, #tpu.memory_space<vmem>>, %arg12: memref<32x32xf32, #tpu.memory_space<vmem>>) attributes {dimension_semantics = [#tpu.dimension_semantics<parallel>], iteration_bounds = array<i64: 1>, scalar_prefetch = 0 : i64, scratch_operands = 0 : i64, tpu.core_type = #tpu.core_type<tc>, window_params = [{transform_indices = @transform_0, window_bounds = array<i64: 32, 32>}, {pipeline_mode = #tpu.pipeline_mode<synchronous>, transform_indices = @transform_1, window_bounds = array<i64: 8, 32, 16>}, {pipeline_mode = #tpu.pipeline_mode<synchronous>, transform_indices = @transform_2, window_bounds = array<i64: 8, 1, 16>}, {pipeline_mode = #tpu.pipeline_mode<synchronous>, transform_indices = @transform_3, window_bounds = array<i64: 8, 1, 16>}, {pipeline_mode = #tpu.pipeline_mode<synchronous>, transform_indices = @transform_4, window_bounds = array<i64: 8, 1, 16>}, {pipeline_mode = #tpu.pipeline_mode<synchronous>, transform_indices = @transform_5, window_bounds = array<i64: 8, 48, 16>}, {pipeline_mode = #tpu.pipeline_mode<synchronous>, transform_indices = @transform_6, window_bounds = array<i64: 8, 1, 16>}, {pipeline_mode = #tpu.pipeline_mode<synchronous>, transform_indices = @transform_7, window_bounds = array<i64: 8, 1, 16>}, {pipeline_mode = #tpu.pipeline_mode<synchronous>, transform_indices = @transform_8, window_bounds = array<i64: 8, 1, 16>}, {pipeline_mode = #tpu.pipeline_mode<synchronous>, transform_indices = @transform_9, window_bounds = array<i64: 8, 16, 32>}, {pipeline_mode = #tpu.pipeline_mode<synchronous>, transform_indices = @transform_10, window_bounds = array<i64: 8, 1, 32>}, {transform_indices = @transform_11, window_bounds = array<i64: 32, 32>}]} {
    %c0 = arith.constant 0 : index
    %c0_0 = arith.constant 0 : index
    %0 = vector.load %arg1[%c0, %c0_0] : memref<32x32xf32, #tpu.memory_space<vmem>>, vector<32x32xf32>
    %1 = tpu.iota {dimensions = array<i32: 0>} : vector<32x1xi32>
    %c16_i32 = arith.constant 16 : i32
    %c0_i32 = arith.constant 0 : i32
    %2 = arith.cmpi eq, %c16_i32, %c0_i32 : i32
    %c1_i32 = arith.constant 1 : i32
    %3 = arith.select %2, %c1_i32, %c16_i32 : i32
    %4 = vector.broadcast %3 : i32 to vector<32x1xi32>
    %5 = arith.remsi %1, %4 : vector<32x1xi32>
    %c0_i32_1 = arith.constant 0 : i32
    %6 = vector.broadcast %c0_i32_1 : i32 to vector<32x1xi32>
    %7 = arith.cmpi ne, %5, %6 : vector<32x1xi32>
    %c0_i32_2 = arith.constant 0 : i32
    %8 = vector.broadcast %c0_i32_2 : i32 to vector<32x1xi32>
    %9 = arith.cmpi slt, %5, %8 : vector<32x1xi32>
    %c0_i32_3 = arith.constant 0 : i32
    %10 = arith.cmpi slt, %3, %c0_i32_3 : i32
    %11 = vector.broadcast %10 : i1 to vector<32x1xi1>
    %12 = vector.broadcast %11 : vector<32x1xi1> to vector<32x1xi1>
    %13 = arith.xori %9, %12 : vector<32x1xi1>
    %14 = arith.andi %13, %7 : vector<32x1xi1>
    %15 = vector.broadcast %3 : i32 to vector<32x1xi32>
    %16 = arith.addi %5, %15 : vector<32x1xi32>
    %17 = arith.select %14, %16, %5 : vector<32x1xi1>, vector<32x1xi32>
    %cst = arith.constant 0.000000e+00 : f32
    %18 = vector.broadcast %cst : f32 to vector<32x32xf32>
    %19 = arith.cmpf oge, %0, %18 : vector<32x32xf32>
    %cst_4 = arith.constant 0.00999999977 : f32
    %20 = vector.broadcast %cst_4 : f32 to vector<32x32xf32>
    %21 = arith.mulf %20, %0 : vector<32x32xf32>
    %22 = arith.select %19, %0, %21 : vector<32x32xi1>, vector<32x32xf32>
    %23 = arith.truncf %22 : vector<32x32xf32> to vector<32x32xbf16>
    %c0_5 = arith.constant 0 : index
    %c0_6 = arith.constant 0 : index
    %c0_7 = arith.constant 0 : index
    %24 = vector.load %arg2[%c0_5, %c0_6, %c0_7] : memref<8x32x16xbf16, #tpu.memory_space<vmem>>, vector<1x32x16xbf16>
    %25 = vector.shape_cast %24 : vector<1x32x16xbf16> to vector<32x16xbf16>
    %cst_8 = arith.constant dense<0.000000e+00> : vector<32x16xf32>
    %26 = tpu.matmul %23, %25, %cst_8 {dimension_numbers = #tpu.dot_dimension_numbers<[1], [0], [0], [1], [0, 0, 1, 1], [], []>} : vector<32x32xbf16>, vector<32x16xbf16>, vector<32x16xf32> -> vector<32x16xf32>
    %c0_9 = arith.constant 0 : index
    %c0_10 = arith.constant 0 : index
    %c0_11 = arith.constant 0 : index
    %27 = vector.load %arg3[%c0_9, %c0_10, %c0_11] : memref<8x1x16xf32, #tpu.memory_space<vmem>>, vector<1x1x16xf32>
    %28 = vector.shape_cast %27 : vector<1x1x16xf32> to vector<1x16xf32>
    %29 = vector.broadcast %28 : vector<1x16xf32> to vector<32x16xf32>
    %30 = arith.addf %26, %29 : vector<32x16xf32>
    %c0_12 = arith.constant 0 : index
    %c0_13 = arith.constant 0 : index
    %c0_14 = arith.constant 0 : index
    %31 = vector.load %arg4[%c0_12, %c0_13, %c0_14] : memref<8x1x16xf32, #tpu.memory_space<vmem>>, vector<1x1x16xf32>
    %32 = vector.shape_cast %31 : vector<1x1x16xf32> to vector<1x16xf32>
    %c0_15 = arith.constant 0 : index
    %c0_16 = arith.constant 0 : index
    %c0_17 = arith.constant 0 : index
    %33 = vector.load %arg5[%c0_15, %c0_16, %c0_17] : memref<8x1x16xf32, #tpu.memory_space<vmem>>, vector<1x1x16xf32>
    %34 = vector.shape_cast %33 : vector<1x1x16xf32> to vector<1x16xf32>
    %cst_18 = arith.constant dense<0.000000e+00> : vector<32xf32>
    %35 = vector.multi_reduction <add>, %30, %cst_18 [1] : vector<32x16xf32> to vector<32xf32>
    %36 = vector.shape_cast %35 : vector<32xf32> to vector<32x1xf32>
    %cst_19 = arith.constant 1.600000e+01 : f32
    %37 = vector.broadcast %cst_19 : f32 to vector<32x1xf32>
    %38 = arith.divf %36, %37 : vector<32x1xf32>
    %39 = vector.broadcast %38 : vector<32x1xf32> to vector<32x16xf32>
    %40 = arith.subf %30, %39 : vector<32x16xf32>
    %41 = arith.mulf %40, %40 : vector<32x16xf32>
    %cst_20 = arith.constant dense<0.000000e+00> : vector<32xf32>
    %42 = vector.multi_reduction <add>, %41, %cst_20 [1] : vector<32x16xf32> to vector<32xf32>
    %43 = vector.shape_cast %42 : vector<32xf32> to vector<32x1xf32>
    %cst_21 = arith.constant 1.600000e+01 : f32
    %44 = vector.broadcast %cst_21 : f32 to vector<32x1xf32>
    %45 = arith.divf %43, %44 : vector<32x1xf32>
    %46 = vector.broadcast %38 : vector<32x1xf32> to vector<32x16xf32>
    %47 = arith.subf %30, %46 : vector<32x16xf32>
    %cst_22 = arith.constant 9.99999974E-6 : f32
    %48 = vector.broadcast %cst_22 : f32 to vector<32x1xf32>
    %49 = arith.addf %45, %48 : vector<32x1xf32>
    %50 = math.rsqrt %49 : vector<32x1xf32>
    %51 = vector.broadcast %50 : vector<32x1xf32> to vector<32x16xf32>
    %52 = arith.mulf %47, %51 : vector<32x16xf32>
    %53 = vector.broadcast %32 : vector<1x16xf32> to vector<32x16xf32>
    %54 = arith.mulf %52, %53 : vector<32x16xf32>
    %55 = vector.broadcast %34 : vector<1x16xf32> to vector<32x16xf32>
    %56 = arith.addf %54, %55 : vector<32x16xf32>
    %cst_23 = arith.constant 0.000000e+00 : f32
    %57 = vector.broadcast %cst_23 : f32 to vector<32x16xf32>
    %58 = arith.cmpf oge, %56, %57 : vector<32x16xf32>
    %cst_24 = arith.constant 0.00999999977 : f32
    %59 = vector.broadcast %cst_24 : f32 to vector<32x16xf32>
    %60 = arith.mulf %59, %56 : vector<32x16xf32>
    %61 = arith.select %58, %56, %60 : vector<32x16xi1>, vector<32x16xf32>
    %cst_25 = arith.constant 0.000000e+00 : f32
    %62 = vector.broadcast %cst_25 : f32 to vector<2x16xf32>
    %63 = vector.extract_strided_slice %61 {offsets = [0, 0], sizes = [30, 16], strides = [1, 1]} : vector<32x16xf32> to vector<30x16xf32>
    %64 = tpu.concatenate %62, %63 in 0 : vector<2x16xf32>, vector<30x16xf32> -> vector<32x16xf32>
    %c2_i32 = arith.constant 2 : i32
    %65 = vector.broadcast %c2_i32 : i32 to vector<32x1xi32>
    %66 = arith.cmpi sge, %17, %65 : vector<32x1xi32>
    %cst_26 = arith.constant 0.000000e+00 : f32
    %67 = vector.shape_cast %66 : vector<32x1xi1> to vector<32x1xi1>
    %68 = vector.broadcast %67 : vector<32x1xi1> to vector<32x16xi1>
    %69 = vector.broadcast %cst_26 : f32 to vector<32x16xf32>
    %70 = arith.select %68, %64, %69 : vector<32x16xi1>, vector<32x16xf32>
    %cst_27 = arith.constant 0.000000e+00 : f32
    %71 = vector.broadcast %cst_27 : f32 to vector<1x16xf32>
    %72 = vector.extract_strided_slice %61 {offsets = [0, 0], sizes = [31, 16], strides = [1, 1]} : vector<32x16xf32> to vector<31x16xf32>
    %73 = tpu.concatenate %71, %72 in 0 : vector<1x16xf32>, vector<31x16xf32> -> vector<32x16xf32>
    %c1_i32_28 = arith.constant 1 : i32
    %74 = vector.broadcast %c1_i32_28 : i32 to vector<32x1xi32>
    %75 = arith.cmpi sge, %17, %74 : vector<32x1xi32>
    %cst_29 = arith.constant 0.000000e+00 : f32
    %76 = vector.shape_cast %75 : vector<32x1xi1> to vector<32x1xi1>
    %77 = vector.broadcast %76 : vector<32x1xi1> to vector<32x16xi1>
    %78 = vector.broadcast %cst_29 : f32 to vector<32x16xf32>
    %79 = arith.select %77, %73, %78 : vector<32x16xi1>, vector<32x16xf32>
    %80 = tpu.concatenate %70, %79, %61 in 1 : vector<32x16xf32>, vector<32x16xf32>, vector<32x16xf32> -> vector<32x48xf32>
    %81 = arith.truncf %80 : vector<32x48xf32> to vector<32x48xbf16>
    %c0_30 = arith.constant 0 : index
    %c0_31 = arith.constant 0 : index
    %c0_32 = arith.constant 0 : index
    %82 = vector.load %arg6[%c0_30, %c0_31, %c0_32] : memref<8x48x16xbf16, #tpu.memory_space<vmem>>, vector<1x48x16xbf16>
    %83 = vector.shape_cast %82 : vector<1x48x16xbf16> to vector<48x16xbf16>
    %cst_33 = arith.constant dense<0.000000e+00> : vector<32x16xf32>
    %84 = tpu.matmul %81, %83, %cst_33 {dimension_numbers = #tpu.dot_dimension_numbers<[1], [0], [0], [1], [0, 0, 1, 1], [], []>} : vector<32x48xbf16>, vector<48x16xbf16>, vector<32x16xf32> -> vector<32x16xf32>
    %c0_34 = arith.constant 0 : index
    %c0_35 = arith.constant 0 : index
    %c0_36 = arith.constant 0 : index
    %85 = vector.load %arg7[%c0_34, %c0_35, %c0_36] : memref<8x1x16xf32, #tpu.memory_space<vmem>>, vector<1x1x16xf32>
    %86 = vector.shape_cast %85 : vector<1x1x16xf32> to vector<1x16xf32>
    %87 = vector.broadcast %86 : vector<1x16xf32> to vector<32x16xf32>
    %88 = arith.addf %84, %87 : vector<32x16xf32>
    %c0_37 = arith.constant 0 : index
    %c0_38 = arith.constant 0 : index
    %c0_39 = arith.constant 0 : index
    %89 = vector.load %arg8[%c0_37, %c0_38, %c0_39] : memref<8x1x16xf32, #tpu.memory_space<vmem>>, vector<1x1x16xf32>
    %90 = vector.shape_cast %89 : vector<1x1x16xf32> to vector<1x16xf32>
    %c0_40 = arith.constant 0 : index
    %c0_41 = arith.constant 0 : index
    %c0_42 = arith.constant 0 : index
    %91 = vector.load %arg9[%c0_40, %c0_41, %c0_42] : memref<8x1x16xf32, #tpu.memory_space<vmem>>, vector<1x1x16xf32>
    %92 = vector.shape_cast %91 : vector<1x1x16xf32> to vector<1x16xf32>
    %cst_43 = arith.constant dense<0.000000e+00> : vector<32xf32>
    %93 = vector.multi_reduction <add>, %88, %cst_43 [1] : vector<32x16xf32> to vector<32xf32>
    %94 = vector.shape_cast %93 : vector<32xf32> to vector<32x1xf32>
    %cst_44 = arith.constant 1.600000e+01 : f32
    %95 = vector.broadcast %cst_44 : f32 to vector<32x1xf32>
    %96 = arith.divf %94, %95 : vector<32x1xf32>
    %97 = vector.broadcast %96 : vector<32x1xf32> to vector<32x16xf32>
    %98 = arith.subf %88, %97 : vector<32x16xf32>
    %99 = arith.mulf %98, %98 : vector<32x16xf32>
    %cst_45 = arith.constant dense<0.000000e+00> : vector<32xf32>
    %100 = vector.multi_reduction <add>, %99, %cst_45 [1] : vector<32x16xf32> to vector<32xf32>
    %101 = vector.shape_cast %100 : vector<32xf32> to vector<32x1xf32>
    %cst_46 = arith.constant 1.600000e+01 : f32
    %102 = vector.broadcast %cst_46 : f32 to vector<32x1xf32>
    %103 = arith.divf %101, %102 : vector<32x1xf32>
    %104 = vector.broadcast %96 : vector<32x1xf32> to vector<32x16xf32>
    %105 = arith.subf %88, %104 : vector<32x16xf32>
    %cst_47 = arith.constant 9.99999974E-6 : f32
    %106 = vector.broadcast %cst_47 : f32 to vector<32x1xf32>
    %107 = arith.addf %103, %106 : vector<32x1xf32>
    %108 = math.rsqrt %107 : vector<32x1xf32>
    %109 = vector.broadcast %108 : vector<32x1xf32> to vector<32x16xf32>
    %110 = arith.mulf %105, %109 : vector<32x16xf32>
    %111 = vector.broadcast %90 : vector<1x16xf32> to vector<32x16xf32>
    %112 = arith.mulf %110, %111 : vector<32x16xf32>
    %113 = vector.broadcast %92 : vector<1x16xf32> to vector<32x16xf32>
    %114 = arith.addf %112, %113 : vector<32x16xf32>
    %cst_48 = arith.constant 0.000000e+00 : f32
    %115 = vector.broadcast %cst_48 : f32 to vector<32x16xf32>
    %116 = arith.cmpf oge, %114, %115 : vector<32x16xf32>
    %cst_49 = arith.constant 0.00999999977 : f32
    %117 = vector.broadcast %cst_49 : f32 to vector<32x16xf32>
    %118 = arith.mulf %117, %114 : vector<32x16xf32>
    %119 = arith.select %116, %114, %118 : vector<32x16xi1>, vector<32x16xf32>
    %120 = arith.truncf %119 : vector<32x16xf32> to vector<32x16xbf16>
    %c0_50 = arith.constant 0 : index
    %c0_51 = arith.constant 0 : index
    %c0_52 = arith.constant 0 : index
    %121 = vector.load %arg10[%c0_50, %c0_51, %c0_52] : memref<8x16x32xbf16, #tpu.memory_space<vmem>>, vector<1x16x32xbf16>
    %122 = vector.shape_cast %121 : vector<1x16x32xbf16> to vector<16x32xbf16>
    %cst_53 = arith.constant dense<0.000000e+00> : vector<32x32xf32>
    %123 = tpu.matmul %120, %122, %cst_53 {dimension_numbers = #tpu.dot_dimension_numbers<[1], [0], [0], [1], [0, 0, 1, 1], [], []>} : vector<32x16xbf16>, vector<16x32xbf16>, vector<32x32xf32> -> vector<32x32xf32>
    %c0_54 = arith.constant 0 : index
    %c0_55 = arith.constant 0 : index
    %c0_56 = arith.constant 0 : index
    %124 = vector.load %arg11[%c0_54, %c0_55, %c0_56] : memref<8x1x32xf32, #tpu.memory_space<vmem>>, vector<1x1x32xf32>
    %125 = vector.shape_cast %124 : vector<1x1x32xf32> to vector<1x32xf32>
    %126 = vector.broadcast %125 : vector<1x32xf32> to vector<32x32xf32>
    %127 = arith.addf %123, %126 : vector<32x32xf32>
    %128 = arith.addf %0, %127 : vector<32x32xf32>
    %cst_57 = arith.constant 0.000000e+00 : f32
    %129 = vector.broadcast %cst_57 : f32 to vector<32x32xf32>
    %130 = arith.cmpf oge, %128, %129 : vector<32x32xf32>
    %cst_58 = arith.constant 0.00999999977 : f32
    %131 = vector.broadcast %cst_58 : f32 to vector<32x32xf32>
    %132 = arith.mulf %131, %128 : vector<32x32xf32>
    %133 = arith.select %130, %128, %132 : vector<32x32xi1>, vector<32x32xf32>
    %134 = arith.truncf %133 : vector<32x32xf32> to vector<32x32xbf16>
    %c1 = arith.constant 1 : index
    %c0_59 = arith.constant 0 : index
    %c0_60 = arith.constant 0 : index
    %135 = vector.load %arg2[%c1, %c0_59, %c0_60] : memref<8x32x16xbf16, #tpu.memory_space<vmem>>, vector<1x32x16xbf16>
    %136 = vector.shape_cast %135 : vector<1x32x16xbf16> to vector<32x16xbf16>
    %cst_61 = arith.constant dense<0.000000e+00> : vector<32x16xf32>
    %137 = tpu.matmul %134, %136, %cst_61 {dimension_numbers = #tpu.dot_dimension_numbers<[1], [0], [0], [1], [0, 0, 1, 1], [], []>} : vector<32x32xbf16>, vector<32x16xbf16>, vector<32x16xf32> -> vector<32x16xf32>
    %c1_62 = arith.constant 1 : index
    %c0_63 = arith.constant 0 : index
    %c0_64 = arith.constant 0 : index
    %138 = vector.load %arg3[%c1_62, %c0_63, %c0_64] : memref<8x1x16xf32, #tpu.memory_space<vmem>>, vector<1x1x16xf32>
    %139 = vector.shape_cast %138 : vector<1x1x16xf32> to vector<1x16xf32>
    %140 = vector.broadcast %139 : vector<1x16xf32> to vector<32x16xf32>
    %141 = arith.addf %137, %140 : vector<32x16xf32>
    %c1_65 = arith.constant 1 : index
    %c0_66 = arith.constant 0 : index
    %c0_67 = arith.constant 0 : index
    %142 = vector.load %arg4[%c1_65, %c0_66, %c0_67] : memref<8x1x16xf32, #tpu.memory_space<vmem>>, vector<1x1x16xf32>
    %143 = vector.shape_cast %142 : vector<1x1x16xf32> to vector<1x16xf32>
    %c1_68 = arith.constant 1 : index
    %c0_69 = arith.constant 0 : index
    %c0_70 = arith.constant 0 : index
    %144 = vector.load %arg5[%c1_68, %c0_69, %c0_70] : memref<8x1x16xf32, #tpu.memory_space<vmem>>, vector<1x1x16xf32>
    %145 = vector.shape_cast %144 : vector<1x1x16xf32> to vector<1x16xf32>
    %cst_71 = arith.constant dense<0.000000e+00> : vector<32xf32>
    %146 = vector.multi_reduction <add>, %141, %cst_71 [1] : vector<32x16xf32> to vector<32xf32>
    %147 = vector.shape_cast %146 : vector<32xf32> to vector<32x1xf32>
    %cst_72 = arith.constant 1.600000e+01 : f32
    %148 = vector.broadcast %cst_72 : f32 to vector<32x1xf32>
    %149 = arith.divf %147, %148 : vector<32x1xf32>
    %150 = vector.broadcast %149 : vector<32x1xf32> to vector<32x16xf32>
    %151 = arith.subf %141, %150 : vector<32x16xf32>
    %152 = arith.mulf %151, %151 : vector<32x16xf32>
    %cst_73 = arith.constant dense<0.000000e+00> : vector<32xf32>
    %153 = vector.multi_reduction <add>, %152, %cst_73 [1] : vector<32x16xf32> to vector<32xf32>
    %154 = vector.shape_cast %153 : vector<32xf32> to vector<32x1xf32>
    %cst_74 = arith.constant 1.600000e+01 : f32
    %155 = vector.broadcast %cst_74 : f32 to vector<32x1xf32>
    %156 = arith.divf %154, %155 : vector<32x1xf32>
    %157 = vector.broadcast %149 : vector<32x1xf32> to vector<32x16xf32>
    %158 = arith.subf %141, %157 : vector<32x16xf32>
    %cst_75 = arith.constant 9.99999974E-6 : f32
    %159 = vector.broadcast %cst_75 : f32 to vector<32x1xf32>
    %160 = arith.addf %156, %159 : vector<32x1xf32>
    %161 = math.rsqrt %160 : vector<32x1xf32>
    %162 = vector.broadcast %161 : vector<32x1xf32> to vector<32x16xf32>
    %163 = arith.mulf %158, %162 : vector<32x16xf32>
    %164 = vector.broadcast %143 : vector<1x16xf32> to vector<32x16xf32>
    %165 = arith.mulf %163, %164 : vector<32x16xf32>
    %166 = vector.broadcast %145 : vector<1x16xf32> to vector<32x16xf32>
    %167 = arith.addf %165, %166 : vector<32x16xf32>
    %cst_76 = arith.constant 0.000000e+00 : f32
    %168 = vector.broadcast %cst_76 : f32 to vector<32x16xf32>
    %169 = arith.cmpf oge, %167, %168 : vector<32x16xf32>
    %cst_77 = arith.constant 0.00999999977 : f32
    %170 = vector.broadcast %cst_77 : f32 to vector<32x16xf32>
    %171 = arith.mulf %170, %167 : vector<32x16xf32>
    %172 = arith.select %169, %167, %171 : vector<32x16xi1>, vector<32x16xf32>
    %cst_78 = arith.constant 0.000000e+00 : f32
    %173 = vector.broadcast %cst_78 : f32 to vector<4x16xf32>
    %174 = vector.extract_strided_slice %172 {offsets = [0, 0], sizes = [28, 16], strides = [1, 1]} : vector<32x16xf32> to vector<28x16xf32>
    %175 = tpu.concatenate %173, %174 in 0 : vector<4x16xf32>, vector<28x16xf32> -> vector<32x16xf32>
    %c4_i32 = arith.constant 4 : i32
    %176 = vector.broadcast %c4_i32 : i32 to vector<32x1xi32>
    %177 = arith.cmpi sge, %17, %176 : vector<32x1xi32>
    %cst_79 = arith.constant 0.000000e+00 : f32
    %178 = vector.shape_cast %177 : vector<32x1xi1> to vector<32x1xi1>
    %179 = vector.broadcast %178 : vector<32x1xi1> to vector<32x16xi1>
    %180 = vector.broadcast %cst_79 : f32 to vector<32x16xf32>
    %181 = arith.select %179, %175, %180 : vector<32x16xi1>, vector<32x16xf32>
    %cst_80 = arith.constant 0.000000e+00 : f32
    %182 = vector.broadcast %cst_80 : f32 to vector<2x16xf32>
    %183 = vector.extract_strided_slice %172 {offsets = [0, 0], sizes = [30, 16], strides = [1, 1]} : vector<32x16xf32> to vector<30x16xf32>
    %184 = tpu.concatenate %182, %183 in 0 : vector<2x16xf32>, vector<30x16xf32> -> vector<32x16xf32>
    %c2_i32_81 = arith.constant 2 : i32
    %185 = vector.broadcast %c2_i32_81 : i32 to vector<32x1xi32>
    %186 = arith.cmpi sge, %17, %185 : vector<32x1xi32>
    %cst_82 = arith.constant 0.000000e+00 : f32
    %187 = vector.shape_cast %186 : vector<32x1xi1> to vector<32x1xi1>
    %188 = vector.broadcast %187 : vector<32x1xi1> to vector<32x16xi1>
    %189 = vector.broadcast %cst_82 : f32 to vector<32x16xf32>
    %190 = arith.select %188, %184, %189 : vector<32x16xi1>, vector<32x16xf32>
    %191 = tpu.concatenate %181, %190, %172 in 1 : vector<32x16xf32>, vector<32x16xf32>, vector<32x16xf32> -> vector<32x48xf32>
    %192 = arith.truncf %191 : vector<32x48xf32> to vector<32x48xbf16>
    %c1_83 = arith.constant 1 : index
    %c0_84 = arith.constant 0 : index
    %c0_85 = arith.constant 0 : index
    %193 = vector.load %arg6[%c1_83, %c0_84, %c0_85] : memref<8x48x16xbf16, #tpu.memory_space<vmem>>, vector<1x48x16xbf16>
    %194 = vector.shape_cast %193 : vector<1x48x16xbf16> to vector<48x16xbf16>
    %cst_86 = arith.constant dense<0.000000e+00> : vector<32x16xf32>
    %195 = tpu.matmul %192, %194, %cst_86 {dimension_numbers = #tpu.dot_dimension_numbers<[1], [0], [0], [1], [0, 0, 1, 1], [], []>} : vector<32x48xbf16>, vector<48x16xbf16>, vector<32x16xf32> -> vector<32x16xf32>
    %c1_87 = arith.constant 1 : index
    %c0_88 = arith.constant 0 : index
    %c0_89 = arith.constant 0 : index
    %196 = vector.load %arg7[%c1_87, %c0_88, %c0_89] : memref<8x1x16xf32, #tpu.memory_space<vmem>>, vector<1x1x16xf32>
    %197 = vector.shape_cast %196 : vector<1x1x16xf32> to vector<1x16xf32>
    %198 = vector.broadcast %197 : vector<1x16xf32> to vector<32x16xf32>
    %199 = arith.addf %195, %198 : vector<32x16xf32>
    %c1_90 = arith.constant 1 : index
    %c0_91 = arith.constant 0 : index
    %c0_92 = arith.constant 0 : index
    %200 = vector.load %arg8[%c1_90, %c0_91, %c0_92] : memref<8x1x16xf32, #tpu.memory_space<vmem>>, vector<1x1x16xf32>
    %201 = vector.shape_cast %200 : vector<1x1x16xf32> to vector<1x16xf32>
    %c1_93 = arith.constant 1 : index
    %c0_94 = arith.constant 0 : index
    %c0_95 = arith.constant 0 : index
    %202 = vector.load %arg9[%c1_93, %c0_94, %c0_95] : memref<8x1x16xf32, #tpu.memory_space<vmem>>, vector<1x1x16xf32>
    %203 = vector.shape_cast %202 : vector<1x1x16xf32> to vector<1x16xf32>
    %cst_96 = arith.constant dense<0.000000e+00> : vector<32xf32>
    %204 = vector.multi_reduction <add>, %199, %cst_96 [1] : vector<32x16xf32> to vector<32xf32>
    %205 = vector.shape_cast %204 : vector<32xf32> to vector<32x1xf32>
    %cst_97 = arith.constant 1.600000e+01 : f32
    %206 = vector.broadcast %cst_97 : f32 to vector<32x1xf32>
    %207 = arith.divf %205, %206 : vector<32x1xf32>
    %208 = vector.broadcast %207 : vector<32x1xf32> to vector<32x16xf32>
    %209 = arith.subf %199, %208 : vector<32x16xf32>
    %210 = arith.mulf %209, %209 : vector<32x16xf32>
    %cst_98 = arith.constant dense<0.000000e+00> : vector<32xf32>
    %211 = vector.multi_reduction <add>, %210, %cst_98 [1] : vector<32x16xf32> to vector<32xf32>
    %212 = vector.shape_cast %211 : vector<32xf32> to vector<32x1xf32>
    %cst_99 = arith.constant 1.600000e+01 : f32
    %213 = vector.broadcast %cst_99 : f32 to vector<32x1xf32>
    %214 = arith.divf %212, %213 : vector<32x1xf32>
    %215 = vector.broadcast %207 : vector<32x1xf32> to vector<32x16xf32>
    %216 = arith.subf %199, %215 : vector<32x16xf32>
    %cst_100 = arith.constant 9.99999974E-6 : f32
    %217 = vector.broadcast %cst_100 : f32 to vector<32x1xf32>
    %218 = arith.addf %214, %217 : vector<32x1xf32>
    %219 = math.rsqrt %218 : vector<32x1xf32>
    %220 = vector.broadcast %219 : vector<32x1xf32> to vector<32x16xf32>
    %221 = arith.mulf %216, %220 : vector<32x16xf32>
    %222 = vector.broadcast %201 : vector<1x16xf32> to vector<32x16xf32>
    %223 = arith.mulf %221, %222 : vector<32x16xf32>
    %224 = vector.broadcast %203 : vector<1x16xf32> to vector<32x16xf32>
    %225 = arith.addf %223, %224 : vector<32x16xf32>
    %cst_101 = arith.constant 0.000000e+00 : f32
    %226 = vector.broadcast %cst_101 : f32 to vector<32x16xf32>
    %227 = arith.cmpf oge, %225, %226 : vector<32x16xf32>
    %cst_102 = arith.constant 0.00999999977 : f32
    %228 = vector.broadcast %cst_102 : f32 to vector<32x16xf32>
    %229 = arith.mulf %228, %225 : vector<32x16xf32>
    %230 = arith.select %227, %225, %229 : vector<32x16xi1>, vector<32x16xf32>
    %231 = arith.truncf %230 : vector<32x16xf32> to vector<32x16xbf16>
    %c1_103 = arith.constant 1 : index
    %c0_104 = arith.constant 0 : index
    %c0_105 = arith.constant 0 : index
    %232 = vector.load %arg10[%c1_103, %c0_104, %c0_105] : memref<8x16x32xbf16, #tpu.memory_space<vmem>>, vector<1x16x32xbf16>
    %233 = vector.shape_cast %232 : vector<1x16x32xbf16> to vector<16x32xbf16>
    %cst_106 = arith.constant dense<0.000000e+00> : vector<32x32xf32>
    %234 = tpu.matmul %231, %233, %cst_106 {dimension_numbers = #tpu.dot_dimension_numbers<[1], [0], [0], [1], [0, 0, 1, 1], [], []>} : vector<32x16xbf16>, vector<16x32xbf16>, vector<32x32xf32> -> vector<32x32xf32>
    %c1_107 = arith.constant 1 : index
    %c0_108 = arith.constant 0 : index
    %c0_109 = arith.constant 0 : index
    %235 = vector.load %arg11[%c1_107, %c0_108, %c0_109] : memref<8x1x32xf32, #tpu.memory_space<vmem>>, vector<1x1x32xf32>
    %236 = vector.shape_cast %235 : vector<1x1x32xf32> to vector<1x32xf32>
    %237 = vector.broadcast %236 : vector<1x32xf32> to vector<32x32xf32>
    %238 = arith.addf %234, %237 : vector<32x32xf32>
    %239 = arith.addf %128, %238 : vector<32x32xf32>
    %cst_110 = arith.constant 0.000000e+00 : f32
    %240 = vector.broadcast %cst_110 : f32 to vector<32x32xf32>
    %241 = arith.cmpf oge, %239, %240 : vector<32x32xf32>
    %cst_111 = arith.constant 0.00999999977 : f32
    %242 = vector.broadcast %cst_111 : f32 to vector<32x32xf32>
    %243 = arith.mulf %242, %239 : vector<32x32xf32>
    %244 = arith.select %241, %239, %243 : vector<32x32xi1>, vector<32x32xf32>
    %245 = arith.truncf %244 : vector<32x32xf32> to vector<32x32xbf16>
    %c2 = arith.constant 2 : index
    %c0_112 = arith.constant 0 : index
    %c0_113 = arith.constant 0 : index
    %246 = vector.load %arg2[%c2, %c0_112, %c0_113] : memref<8x32x16xbf16, #tpu.memory_space<vmem>>, vector<1x32x16xbf16>
    %247 = vector.shape_cast %246 : vector<1x32x16xbf16> to vector<32x16xbf16>
    %cst_114 = arith.constant dense<0.000000e+00> : vector<32x16xf32>
    %248 = tpu.matmul %245, %247, %cst_114 {dimension_numbers = #tpu.dot_dimension_numbers<[1], [0], [0], [1], [0, 0, 1, 1], [], []>} : vector<32x32xbf16>, vector<32x16xbf16>, vector<32x16xf32> -> vector<32x16xf32>
    %c2_115 = arith.constant 2 : index
    %c0_116 = arith.constant 0 : index
    %c0_117 = arith.constant 0 : index
    %249 = vector.load %arg3[%c2_115, %c0_116, %c0_117] : memref<8x1x16xf32, #tpu.memory_space<vmem>>, vector<1x1x16xf32>
    %250 = vector.shape_cast %249 : vector<1x1x16xf32> to vector<1x16xf32>
    %251 = vector.broadcast %250 : vector<1x16xf32> to vector<32x16xf32>
    %252 = arith.addf %248, %251 : vector<32x16xf32>
    %c2_118 = arith.constant 2 : index
    %c0_119 = arith.constant 0 : index
    %c0_120 = arith.constant 0 : index
    %253 = vector.load %arg4[%c2_118, %c0_119, %c0_120] : memref<8x1x16xf32, #tpu.memory_space<vmem>>, vector<1x1x16xf32>
    %254 = vector.shape_cast %253 : vector<1x1x16xf32> to vector<1x16xf32>
    %c2_121 = arith.constant 2 : index
    %c0_122 = arith.constant 0 : index
    %c0_123 = arith.constant 0 : index
    %255 = vector.load %arg5[%c2_121, %c0_122, %c0_123] : memref<8x1x16xf32, #tpu.memory_space<vmem>>, vector<1x1x16xf32>
    %256 = vector.shape_cast %255 : vector<1x1x16xf32> to vector<1x16xf32>
    %cst_124 = arith.constant dense<0.000000e+00> : vector<32xf32>
    %257 = vector.multi_reduction <add>, %252, %cst_124 [1] : vector<32x16xf32> to vector<32xf32>
    %258 = vector.shape_cast %257 : vector<32xf32> to vector<32x1xf32>
    %cst_125 = arith.constant 1.600000e+01 : f32
    %259 = vector.broadcast %cst_125 : f32 to vector<32x1xf32>
    %260 = arith.divf %258, %259 : vector<32x1xf32>
    %261 = vector.broadcast %260 : vector<32x1xf32> to vector<32x16xf32>
    %262 = arith.subf %252, %261 : vector<32x16xf32>
    %263 = arith.mulf %262, %262 : vector<32x16xf32>
    %cst_126 = arith.constant dense<0.000000e+00> : vector<32xf32>
    %264 = vector.multi_reduction <add>, %263, %cst_126 [1] : vector<32x16xf32> to vector<32xf32>
    %265 = vector.shape_cast %264 : vector<32xf32> to vector<32x1xf32>
    %cst_127 = arith.constant 1.600000e+01 : f32
    %266 = vector.broadcast %cst_127 : f32 to vector<32x1xf32>
    %267 = arith.divf %265, %266 : vector<32x1xf32>
    %268 = vector.broadcast %260 : vector<32x1xf32> to vector<32x16xf32>
    %269 = arith.subf %252, %268 : vector<32x16xf32>
    %cst_128 = arith.constant 9.99999974E-6 : f32
    %270 = vector.broadcast %cst_128 : f32 to vector<32x1xf32>
    %271 = arith.addf %267, %270 : vector<32x1xf32>
    %272 = math.rsqrt %271 : vector<32x1xf32>
    %273 = vector.broadcast %272 : vector<32x1xf32> to vector<32x16xf32>
    %274 = arith.mulf %269, %273 : vector<32x16xf32>
    %275 = vector.broadcast %254 : vector<1x16xf32> to vector<32x16xf32>
    %276 = arith.mulf %274, %275 : vector<32x16xf32>
    %277 = vector.broadcast %256 : vector<1x16xf32> to vector<32x16xf32>
    %278 = arith.addf %276, %277 : vector<32x16xf32>
    %cst_129 = arith.constant 0.000000e+00 : f32
    %279 = vector.broadcast %cst_129 : f32 to vector<32x16xf32>
    %280 = arith.cmpf oge, %278, %279 : vector<32x16xf32>
    %cst_130 = arith.constant 0.00999999977 : f32
    %281 = vector.broadcast %cst_130 : f32 to vector<32x16xf32>
    %282 = arith.mulf %281, %278 : vector<32x16xf32>
    %283 = arith.select %280, %278, %282 : vector<32x16xi1>, vector<32x16xf32>
    %cst_131 = arith.constant 0.000000e+00 : f32
    %284 = vector.broadcast %cst_131 : f32 to vector<8x16xf32>
    %285 = vector.extract_strided_slice %283 {offsets = [0, 0], sizes = [24, 16], strides = [1, 1]} : vector<32x16xf32> to vector<24x16xf32>
    %286 = tpu.concatenate %284, %285 in 0 : vector<8x16xf32>, vector<24x16xf32> -> vector<32x16xf32>
    %c8_i32 = arith.constant 8 : i32
    %287 = vector.broadcast %c8_i32 : i32 to vector<32x1xi32>
    %288 = arith.cmpi sge, %17, %287 : vector<32x1xi32>
    %cst_132 = arith.constant 0.000000e+00 : f32
    %289 = vector.shape_cast %288 : vector<32x1xi1> to vector<32x1xi1>
    %290 = vector.broadcast %289 : vector<32x1xi1> to vector<32x16xi1>
    %291 = vector.broadcast %cst_132 : f32 to vector<32x16xf32>
    %292 = arith.select %290, %286, %291 : vector<32x16xi1>, vector<32x16xf32>
    %cst_133 = arith.constant 0.000000e+00 : f32
    %293 = vector.broadcast %cst_133 : f32 to vector<4x16xf32>
    %294 = vector.extract_strided_slice %283 {offsets = [0, 0], sizes = [28, 16], strides = [1, 1]} : vector<32x16xf32> to vector<28x16xf32>
    %295 = tpu.concatenate %293, %294 in 0 : vector<4x16xf32>, vector<28x16xf32> -> vector<32x16xf32>
    %c4_i32_134 = arith.constant 4 : i32
    %296 = vector.broadcast %c4_i32_134 : i32 to vector<32x1xi32>
    %297 = arith.cmpi sge, %17, %296 : vector<32x1xi32>
    %cst_135 = arith.constant 0.000000e+00 : f32
    %298 = vector.shape_cast %297 : vector<32x1xi1> to vector<32x1xi1>
    %299 = vector.broadcast %298 : vector<32x1xi1> to vector<32x16xi1>
    %300 = vector.broadcast %cst_135 : f32 to vector<32x16xf32>
    %301 = arith.select %299, %295, %300 : vector<32x16xi1>, vector<32x16xf32>
    %302 = tpu.concatenate %292, %301, %283 in 1 : vector<32x16xf32>, vector<32x16xf32>, vector<32x16xf32> -> vector<32x48xf32>
    %303 = arith.truncf %302 : vector<32x48xf32> to vector<32x48xbf16>
    %c2_136 = arith.constant 2 : index
    %c0_137 = arith.constant 0 : index
    %c0_138 = arith.constant 0 : index
    %304 = vector.load %arg6[%c2_136, %c0_137, %c0_138] : memref<8x48x16xbf16, #tpu.memory_space<vmem>>, vector<1x48x16xbf16>
    %305 = vector.shape_cast %304 : vector<1x48x16xbf16> to vector<48x16xbf16>
    %cst_139 = arith.constant dense<0.000000e+00> : vector<32x16xf32>
    %306 = tpu.matmul %303, %305, %cst_139 {dimension_numbers = #tpu.dot_dimension_numbers<[1], [0], [0], [1], [0, 0, 1, 1], [], []>} : vector<32x48xbf16>, vector<48x16xbf16>, vector<32x16xf32> -> vector<32x16xf32>
    %c2_140 = arith.constant 2 : index
    %c0_141 = arith.constant 0 : index
    %c0_142 = arith.constant 0 : index
    %307 = vector.load %arg7[%c2_140, %c0_141, %c0_142] : memref<8x1x16xf32, #tpu.memory_space<vmem>>, vector<1x1x16xf32>
    %308 = vector.shape_cast %307 : vector<1x1x16xf32> to vector<1x16xf32>
    %309 = vector.broadcast %308 : vector<1x16xf32> to vector<32x16xf32>
    %310 = arith.addf %306, %309 : vector<32x16xf32>
    %c2_143 = arith.constant 2 : index
    %c0_144 = arith.constant 0 : index
    %c0_145 = arith.constant 0 : index
    %311 = vector.load %arg8[%c2_143, %c0_144, %c0_145] : memref<8x1x16xf32, #tpu.memory_space<vmem>>, vector<1x1x16xf32>
    %312 = vector.shape_cast %311 : vector<1x1x16xf32> to vector<1x16xf32>
    %c2_146 = arith.constant 2 : index
    %c0_147 = arith.constant 0 : index
    %c0_148 = arith.constant 0 : index
    %313 = vector.load %arg9[%c2_146, %c0_147, %c0_148] : memref<8x1x16xf32, #tpu.memory_space<vmem>>, vector<1x1x16xf32>
    %314 = vector.shape_cast %313 : vector<1x1x16xf32> to vector<1x16xf32>
    %cst_149 = arith.constant dense<0.000000e+00> : vector<32xf32>
    %315 = vector.multi_reduction <add>, %310, %cst_149 [1] : vector<32x16xf32> to vector<32xf32>
    %316 = vector.shape_cast %315 : vector<32xf32> to vector<32x1xf32>
    %cst_150 = arith.constant 1.600000e+01 : f32
    %317 = vector.broadcast %cst_150 : f32 to vector<32x1xf32>
    %318 = arith.divf %316, %317 : vector<32x1xf32>
    %319 = vector.broadcast %318 : vector<32x1xf32> to vector<32x16xf32>
    %320 = arith.subf %310, %319 : vector<32x16xf32>
    %321 = arith.mulf %320, %320 : vector<32x16xf32>
    %cst_151 = arith.constant dense<0.000000e+00> : vector<32xf32>
    %322 = vector.multi_reduction <add>, %321, %cst_151 [1] : vector<32x16xf32> to vector<32xf32>
    %323 = vector.shape_cast %322 : vector<32xf32> to vector<32x1xf32>
    %cst_152 = arith.constant 1.600000e+01 : f32
    %324 = vector.broadcast %cst_152 : f32 to vector<32x1xf32>
    %325 = arith.divf %323, %324 : vector<32x1xf32>
    %326 = vector.broadcast %318 : vector<32x1xf32> to vector<32x16xf32>
    %327 = arith.subf %310, %326 : vector<32x16xf32>
    %cst_153 = arith.constant 9.99999974E-6 : f32
    %328 = vector.broadcast %cst_153 : f32 to vector<32x1xf32>
    %329 = arith.addf %325, %328 : vector<32x1xf32>
    %330 = math.rsqrt %329 : vector<32x1xf32>
    %331 = vector.broadcast %330 : vector<32x1xf32> to vector<32x16xf32>
    %332 = arith.mulf %327, %331 : vector<32x16xf32>
    %333 = vector.broadcast %312 : vector<1x16xf32> to vector<32x16xf32>
    %334 = arith.mulf %332, %333 : vector<32x16xf32>
    %335 = vector.broadcast %314 : vector<1x16xf32> to vector<32x16xf32>
    %336 = arith.addf %334, %335 : vector<32x16xf32>
    %cst_154 = arith.constant 0.000000e+00 : f32
    %337 = vector.broadcast %cst_154 : f32 to vector<32x16xf32>
    %338 = arith.cmpf oge, %336, %337 : vector<32x16xf32>
    %cst_155 = arith.constant 0.00999999977 : f32
    %339 = vector.broadcast %cst_155 : f32 to vector<32x16xf32>
    %340 = arith.mulf %339, %336 : vector<32x16xf32>
    %341 = arith.select %338, %336, %340 : vector<32x16xi1>, vector<32x16xf32>
    %342 = arith.truncf %341 : vector<32x16xf32> to vector<32x16xbf16>
    %c2_156 = arith.constant 2 : index
    %c0_157 = arith.constant 0 : index
    %c0_158 = arith.constant 0 : index
    %343 = vector.load %arg10[%c2_156, %c0_157, %c0_158] : memref<8x16x32xbf16, #tpu.memory_space<vmem>>, vector<1x16x32xbf16>
    %344 = vector.shape_cast %343 : vector<1x16x32xbf16> to vector<16x32xbf16>
    %cst_159 = arith.constant dense<0.000000e+00> : vector<32x32xf32>
    %345 = tpu.matmul %342, %344, %cst_159 {dimension_numbers = #tpu.dot_dimension_numbers<[1], [0], [0], [1], [0, 0, 1, 1], [], []>} : vector<32x16xbf16>, vector<16x32xbf16>, vector<32x32xf32> -> vector<32x32xf32>
    %c2_160 = arith.constant 2 : index
    %c0_161 = arith.constant 0 : index
    %c0_162 = arith.constant 0 : index
    %346 = vector.load %arg11[%c2_160, %c0_161, %c0_162] : memref<8x1x32xf32, #tpu.memory_space<vmem>>, vector<1x1x32xf32>
    %347 = vector.shape_cast %346 : vector<1x1x32xf32> to vector<1x32xf32>
    %348 = vector.broadcast %347 : vector<1x32xf32> to vector<32x32xf32>
    %349 = arith.addf %345, %348 : vector<32x32xf32>
    %350 = arith.addf %239, %349 : vector<32x32xf32>
    %cst_163 = arith.constant 0.000000e+00 : f32
    %351 = vector.broadcast %cst_163 : f32 to vector<32x32xf32>
    %352 = arith.cmpf oge, %350, %351 : vector<32x32xf32>
    %cst_164 = arith.constant 0.00999999977 : f32
    %353 = vector.broadcast %cst_164 : f32 to vector<32x32xf32>
    %354 = arith.mulf %353, %350 : vector<32x32xf32>
    %355 = arith.select %352, %350, %354 : vector<32x32xi1>, vector<32x32xf32>
    %356 = arith.truncf %355 : vector<32x32xf32> to vector<32x32xbf16>
    %c3 = arith.constant 3 : index
    %c0_165 = arith.constant 0 : index
    %c0_166 = arith.constant 0 : index
    %357 = vector.load %arg2[%c3, %c0_165, %c0_166] : memref<8x32x16xbf16, #tpu.memory_space<vmem>>, vector<1x32x16xbf16>
    %358 = vector.shape_cast %357 : vector<1x32x16xbf16> to vector<32x16xbf16>
    %cst_167 = arith.constant dense<0.000000e+00> : vector<32x16xf32>
    %359 = tpu.matmul %356, %358, %cst_167 {dimension_numbers = #tpu.dot_dimension_numbers<[1], [0], [0], [1], [0, 0, 1, 1], [], []>} : vector<32x32xbf16>, vector<32x16xbf16>, vector<32x16xf32> -> vector<32x16xf32>
    %c3_168 = arith.constant 3 : index
    %c0_169 = arith.constant 0 : index
    %c0_170 = arith.constant 0 : index
    %360 = vector.load %arg3[%c3_168, %c0_169, %c0_170] : memref<8x1x16xf32, #tpu.memory_space<vmem>>, vector<1x1x16xf32>
    %361 = vector.shape_cast %360 : vector<1x1x16xf32> to vector<1x16xf32>
    %362 = vector.broadcast %361 : vector<1x16xf32> to vector<32x16xf32>
    %363 = arith.addf %359, %362 : vector<32x16xf32>
    %c3_171 = arith.constant 3 : index
    %c0_172 = arith.constant 0 : index
    %c0_173 = arith.constant 0 : index
    %364 = vector.load %arg4[%c3_171, %c0_172, %c0_173] : memref<8x1x16xf32, #tpu.memory_space<vmem>>, vector<1x1x16xf32>
    %365 = vector.shape_cast %364 : vector<1x1x16xf32> to vector<1x16xf32>
    %c3_174 = arith.constant 3 : index
    %c0_175 = arith.constant 0 : index
    %c0_176 = arith.constant 0 : index
    %366 = vector.load %arg5[%c3_174, %c0_175, %c0_176] : memref<8x1x16xf32, #tpu.memory_space<vmem>>, vector<1x1x16xf32>
    %367 = vector.shape_cast %366 : vector<1x1x16xf32> to vector<1x16xf32>
    %cst_177 = arith.constant dense<0.000000e+00> : vector<32xf32>
    %368 = vector.multi_reduction <add>, %363, %cst_177 [1] : vector<32x16xf32> to vector<32xf32>
    %369 = vector.shape_cast %368 : vector<32xf32> to vector<32x1xf32>
    %cst_178 = arith.constant 1.600000e+01 : f32
    %370 = vector.broadcast %cst_178 : f32 to vector<32x1xf32>
    %371 = arith.divf %369, %370 : vector<32x1xf32>
    %372 = vector.broadcast %371 : vector<32x1xf32> to vector<32x16xf32>
    %373 = arith.subf %363, %372 : vector<32x16xf32>
    %374 = arith.mulf %373, %373 : vector<32x16xf32>
    %cst_179 = arith.constant dense<0.000000e+00> : vector<32xf32>
    %375 = vector.multi_reduction <add>, %374, %cst_179 [1] : vector<32x16xf32> to vector<32xf32>
    %376 = vector.shape_cast %375 : vector<32xf32> to vector<32x1xf32>
    %cst_180 = arith.constant 1.600000e+01 : f32
    %377 = vector.broadcast %cst_180 : f32 to vector<32x1xf32>
    %378 = arith.divf %376, %377 : vector<32x1xf32>
    %379 = vector.broadcast %371 : vector<32x1xf32> to vector<32x16xf32>
    %380 = arith.subf %363, %379 : vector<32x16xf32>
    %cst_181 = arith.constant 9.99999974E-6 : f32
    %381 = vector.broadcast %cst_181 : f32 to vector<32x1xf32>
    %382 = arith.addf %378, %381 : vector<32x1xf32>
    %383 = math.rsqrt %382 : vector<32x1xf32>
    %384 = vector.broadcast %383 : vector<32x1xf32> to vector<32x16xf32>
    %385 = arith.mulf %380, %384 : vector<32x16xf32>
    %386 = vector.broadcast %365 : vector<1x16xf32> to vector<32x16xf32>
    %387 = arith.mulf %385, %386 : vector<32x16xf32>
    %388 = vector.broadcast %367 : vector<1x16xf32> to vector<32x16xf32>
    %389 = arith.addf %387, %388 : vector<32x16xf32>
    %cst_182 = arith.constant 0.000000e+00 : f32
    %390 = vector.broadcast %cst_182 : f32 to vector<32x16xf32>
    %391 = arith.cmpf oge, %389, %390 : vector<32x16xf32>
    %cst_183 = arith.constant 0.00999999977 : f32
    %392 = vector.broadcast %cst_183 : f32 to vector<32x16xf32>
    %393 = arith.mulf %392, %389 : vector<32x16xf32>
    %394 = arith.select %391, %389, %393 : vector<32x16xi1>, vector<32x16xf32>
    %cst_184 = arith.constant 0.000000e+00 : f32
    %395 = vector.broadcast %cst_184 : f32 to vector<32x16xf32>
    %cst_185 = arith.constant 0.000000e+00 : f32
    %396 = vector.broadcast %cst_185 : f32 to vector<8x16xf32>
    %397 = vector.extract_strided_slice %394 {offsets = [0, 0], sizes = [24, 16], strides = [1, 1]} : vector<32x16xf32> to vector<24x16xf32>
    %398 = tpu.concatenate %396, %397 in 0 : vector<8x16xf32>, vector<24x16xf32> -> vector<32x16xf32>
    %c8_i32_186 = arith.constant 8 : i32
    %399 = vector.broadcast %c8_i32_186 : i32 to vector<32x1xi32>
    %400 = arith.cmpi sge, %17, %399 : vector<32x1xi32>
    %cst_187 = arith.constant 0.000000e+00 : f32
    %401 = vector.shape_cast %400 : vector<32x1xi1> to vector<32x1xi1>
    %402 = vector.broadcast %401 : vector<32x1xi1> to vector<32x16xi1>
    %403 = vector.broadcast %cst_187 : f32 to vector<32x16xf32>
    %404 = arith.select %402, %398, %403 : vector<32x16xi1>, vector<32x16xf32>
    %405 = tpu.concatenate %395, %404, %394 in 1 : vector<32x16xf32>, vector<32x16xf32>, vector<32x16xf32> -> vector<32x48xf32>
    %406 = arith.truncf %405 : vector<32x48xf32> to vector<32x48xbf16>
    %c3_188 = arith.constant 3 : index
    %c0_189 = arith.constant 0 : index
    %c0_190 = arith.constant 0 : index
    %407 = vector.load %arg6[%c3_188, %c0_189, %c0_190] : memref<8x48x16xbf16, #tpu.memory_space<vmem>>, vector<1x48x16xbf16>
    %408 = vector.shape_cast %407 : vector<1x48x16xbf16> to vector<48x16xbf16>
    %cst_191 = arith.constant dense<0.000000e+00> : vector<32x16xf32>
    %409 = tpu.matmul %406, %408, %cst_191 {dimension_numbers = #tpu.dot_dimension_numbers<[1], [0], [0], [1], [0, 0, 1, 1], [], []>} : vector<32x48xbf16>, vector<48x16xbf16>, vector<32x16xf32> -> vector<32x16xf32>
    %c3_192 = arith.constant 3 : index
    %c0_193 = arith.constant 0 : index
    %c0_194 = arith.constant 0 : index
    %410 = vector.load %arg7[%c3_192, %c0_193, %c0_194] : memref<8x1x16xf32, #tpu.memory_space<vmem>>, vector<1x1x16xf32>
    %411 = vector.shape_cast %410 : vector<1x1x16xf32> to vector<1x16xf32>
    %412 = vector.broadcast %411 : vector<1x16xf32> to vector<32x16xf32>
    %413 = arith.addf %409, %412 : vector<32x16xf32>
    %c3_195 = arith.constant 3 : index
    %c0_196 = arith.constant 0 : index
    %c0_197 = arith.constant 0 : index
    %414 = vector.load %arg8[%c3_195, %c0_196, %c0_197] : memref<8x1x16xf32, #tpu.memory_space<vmem>>, vector<1x1x16xf32>
    %415 = vector.shape_cast %414 : vector<1x1x16xf32> to vector<1x16xf32>
    %c3_198 = arith.constant 3 : index
    %c0_199 = arith.constant 0 : index
    %c0_200 = arith.constant 0 : index
    %416 = vector.load %arg9[%c3_198, %c0_199, %c0_200] : memref<8x1x16xf32, #tpu.memory_space<vmem>>, vector<1x1x16xf32>
    %417 = vector.shape_cast %416 : vector<1x1x16xf32> to vector<1x16xf32>
    %cst_201 = arith.constant dense<0.000000e+00> : vector<32xf32>
    %418 = vector.multi_reduction <add>, %413, %cst_201 [1] : vector<32x16xf32> to vector<32xf32>
    %419 = vector.shape_cast %418 : vector<32xf32> to vector<32x1xf32>
    %cst_202 = arith.constant 1.600000e+01 : f32
    %420 = vector.broadcast %cst_202 : f32 to vector<32x1xf32>
    %421 = arith.divf %419, %420 : vector<32x1xf32>
    %422 = vector.broadcast %421 : vector<32x1xf32> to vector<32x16xf32>
    %423 = arith.subf %413, %422 : vector<32x16xf32>
    %424 = arith.mulf %423, %423 : vector<32x16xf32>
    %cst_203 = arith.constant dense<0.000000e+00> : vector<32xf32>
    %425 = vector.multi_reduction <add>, %424, %cst_203 [1] : vector<32x16xf32> to vector<32xf32>
    %426 = vector.shape_cast %425 : vector<32xf32> to vector<32x1xf32>
    %cst_204 = arith.constant 1.600000e+01 : f32
    %427 = vector.broadcast %cst_204 : f32 to vector<32x1xf32>
    %428 = arith.divf %426, %427 : vector<32x1xf32>
    %429 = vector.broadcast %421 : vector<32x1xf32> to vector<32x16xf32>
    %430 = arith.subf %413, %429 : vector<32x16xf32>
    %cst_205 = arith.constant 9.99999974E-6 : f32
    %431 = vector.broadcast %cst_205 : f32 to vector<32x1xf32>
    %432 = arith.addf %428, %431 : vector<32x1xf32>
    %433 = math.rsqrt %432 : vector<32x1xf32>
    %434 = vector.broadcast %433 : vector<32x1xf32> to vector<32x16xf32>
    %435 = arith.mulf %430, %434 : vector<32x16xf32>
    %436 = vector.broadcast %415 : vector<1x16xf32> to vector<32x16xf32>
    %437 = arith.mulf %435, %436 : vector<32x16xf32>
    %438 = vector.broadcast %417 : vector<1x16xf32> to vector<32x16xf32>
    %439 = arith.addf %437, %438 : vector<32x16xf32>
    %cst_206 = arith.constant 0.000000e+00 : f32
    %440 = vector.broadcast %cst_206 : f32 to vector<32x16xf32>
    %441 = arith.cmpf oge, %439, %440 : vector<32x16xf32>
    %cst_207 = arith.constant 0.00999999977 : f32
    %442 = vector.broadcast %cst_207 : f32 to vector<32x16xf32>
    %443 = arith.mulf %442, %439 : vector<32x16xf32>
    %444 = arith.select %441, %439, %443 : vector<32x16xi1>, vector<32x16xf32>
    %445 = arith.truncf %444 : vector<32x16xf32> to vector<32x16xbf16>
    %c3_208 = arith.constant 3 : index
    %c0_209 = arith.constant 0 : index
    %c0_210 = arith.constant 0 : index
    %446 = vector.load %arg10[%c3_208, %c0_209, %c0_210] : memref<8x16x32xbf16, #tpu.memory_space<vmem>>, vector<1x16x32xbf16>
    %447 = vector.shape_cast %446 : vector<1x16x32xbf16> to vector<16x32xbf16>
    %cst_211 = arith.constant dense<0.000000e+00> : vector<32x32xf32>
    %448 = tpu.matmul %445, %447, %cst_211 {dimension_numbers = #tpu.dot_dimension_numbers<[1], [0], [0], [1], [0, 0, 1, 1], [], []>} : vector<32x16xbf16>, vector<16x32xbf16>, vector<32x32xf32> -> vector<32x32xf32>
    %c3_212 = arith.constant 3 : index
    %c0_213 = arith.constant 0 : index
    %c0_214 = arith.constant 0 : index
    %449 = vector.load %arg11[%c3_212, %c0_213, %c0_214] : memref<8x1x32xf32, #tpu.memory_space<vmem>>, vector<1x1x32xf32>
    %450 = vector.shape_cast %449 : vector<1x1x32xf32> to vector<1x32xf32>
    %451 = vector.broadcast %450 : vector<1x32xf32> to vector<32x32xf32>
    %452 = arith.addf %448, %451 : vector<32x32xf32>
    %453 = arith.addf %350, %452 : vector<32x32xf32>
    %cst_215 = arith.constant 0.000000e+00 : f32
    %454 = vector.broadcast %cst_215 : f32 to vector<32x32xf32>
    %455 = arith.cmpf oge, %453, %454 : vector<32x32xf32>
    %cst_216 = arith.constant 0.00999999977 : f32
    %456 = vector.broadcast %cst_216 : f32 to vector<32x32xf32>
    %457 = arith.mulf %456, %453 : vector<32x32xf32>
    %458 = arith.select %455, %453, %457 : vector<32x32xi1>, vector<32x32xf32>
    %459 = arith.truncf %458 : vector<32x32xf32> to vector<32x32xbf16>
    %c4 = arith.constant 4 : index
    %c0_217 = arith.constant 0 : index
    %c0_218 = arith.constant 0 : index
    %460 = vector.load %arg2[%c4, %c0_217, %c0_218] : memref<8x32x16xbf16, #tpu.memory_space<vmem>>, vector<1x32x16xbf16>
    %461 = vector.shape_cast %460 : vector<1x32x16xbf16> to vector<32x16xbf16>
    %cst_219 = arith.constant dense<0.000000e+00> : vector<32x16xf32>
    %462 = tpu.matmul %459, %461, %cst_219 {dimension_numbers = #tpu.dot_dimension_numbers<[1], [0], [0], [1], [0, 0, 1, 1], [], []>} : vector<32x32xbf16>, vector<32x16xbf16>, vector<32x16xf32> -> vector<32x16xf32>
    %c4_220 = arith.constant 4 : index
    %c0_221 = arith.constant 0 : index
    %c0_222 = arith.constant 0 : index
    %463 = vector.load %arg3[%c4_220, %c0_221, %c0_222] : memref<8x1x16xf32, #tpu.memory_space<vmem>>, vector<1x1x16xf32>
    %464 = vector.shape_cast %463 : vector<1x1x16xf32> to vector<1x16xf32>
    %465 = vector.broadcast %464 : vector<1x16xf32> to vector<32x16xf32>
    %466 = arith.addf %462, %465 : vector<32x16xf32>
    %c4_223 = arith.constant 4 : index
    %c0_224 = arith.constant 0 : index
    %c0_225 = arith.constant 0 : index
    %467 = vector.load %arg4[%c4_223, %c0_224, %c0_225] : memref<8x1x16xf32, #tpu.memory_space<vmem>>, vector<1x1x16xf32>
    %468 = vector.shape_cast %467 : vector<1x1x16xf32> to vector<1x16xf32>
    %c4_226 = arith.constant 4 : index
    %c0_227 = arith.constant 0 : index
    %c0_228 = arith.constant 0 : index
    %469 = vector.load %arg5[%c4_226, %c0_227, %c0_228] : memref<8x1x16xf32, #tpu.memory_space<vmem>>, vector<1x1x16xf32>
    %470 = vector.shape_cast %469 : vector<1x1x16xf32> to vector<1x16xf32>
    %cst_229 = arith.constant dense<0.000000e+00> : vector<32xf32>
    %471 = vector.multi_reduction <add>, %466, %cst_229 [1] : vector<32x16xf32> to vector<32xf32>
    %472 = vector.shape_cast %471 : vector<32xf32> to vector<32x1xf32>
    %cst_230 = arith.constant 1.600000e+01 : f32
    %473 = vector.broadcast %cst_230 : f32 to vector<32x1xf32>
    %474 = arith.divf %472, %473 : vector<32x1xf32>
    %475 = vector.broadcast %474 : vector<32x1xf32> to vector<32x16xf32>
    %476 = arith.subf %466, %475 : vector<32x16xf32>
    %477 = arith.mulf %476, %476 : vector<32x16xf32>
    %cst_231 = arith.constant dense<0.000000e+00> : vector<32xf32>
    %478 = vector.multi_reduction <add>, %477, %cst_231 [1] : vector<32x16xf32> to vector<32xf32>
    %479 = vector.shape_cast %478 : vector<32xf32> to vector<32x1xf32>
    %cst_232 = arith.constant 1.600000e+01 : f32
    %480 = vector.broadcast %cst_232 : f32 to vector<32x1xf32>
    %481 = arith.divf %479, %480 : vector<32x1xf32>
    %482 = vector.broadcast %474 : vector<32x1xf32> to vector<32x16xf32>
    %483 = arith.subf %466, %482 : vector<32x16xf32>
    %cst_233 = arith.constant 9.99999974E-6 : f32
    %484 = vector.broadcast %cst_233 : f32 to vector<32x1xf32>
    %485 = arith.addf %481, %484 : vector<32x1xf32>
    %486 = math.rsqrt %485 : vector<32x1xf32>
    %487 = vector.broadcast %486 : vector<32x1xf32> to vector<32x16xf32>
    %488 = arith.mulf %483, %487 : vector<32x16xf32>
    %489 = vector.broadcast %468 : vector<1x16xf32> to vector<32x16xf32>
    %490 = arith.mulf %488, %489 : vector<32x16xf32>
    %491 = vector.broadcast %470 : vector<1x16xf32> to vector<32x16xf32>
    %492 = arith.addf %490, %491 : vector<32x16xf32>
    %cst_234 = arith.constant 0.000000e+00 : f32
    %493 = vector.broadcast %cst_234 : f32 to vector<32x16xf32>
    %494 = arith.cmpf oge, %492, %493 : vector<32x16xf32>
    %cst_235 = arith.constant 0.00999999977 : f32
    %495 = vector.broadcast %cst_235 : f32 to vector<32x16xf32>
    %496 = arith.mulf %495, %492 : vector<32x16xf32>
    %497 = arith.select %494, %492, %496 : vector<32x16xi1>, vector<32x16xf32>
    %cst_236 = arith.constant 0.000000e+00 : f32
    %498 = vector.broadcast %cst_236 : f32 to vector<2x16xf32>
    %499 = vector.extract_strided_slice %497 {offsets = [0, 0], sizes = [30, 16], strides = [1, 1]} : vector<32x16xf32> to vector<30x16xf32>
    %500 = tpu.concatenate %498, %499 in 0 : vector<2x16xf32>, vector<30x16xf32> -> vector<32x16xf32>
    %c2_i32_237 = arith.constant 2 : i32
    %501 = vector.broadcast %c2_i32_237 : i32 to vector<32x1xi32>
    %502 = arith.cmpi sge, %17, %501 : vector<32x1xi32>
    %cst_238 = arith.constant 0.000000e+00 : f32
    %503 = vector.shape_cast %502 : vector<32x1xi1> to vector<32x1xi1>
    %504 = vector.broadcast %503 : vector<32x1xi1> to vector<32x16xi1>
    %505 = vector.broadcast %cst_238 : f32 to vector<32x16xf32>
    %506 = arith.select %504, %500, %505 : vector<32x16xi1>, vector<32x16xf32>
    %cst_239 = arith.constant 0.000000e+00 : f32
    %507 = vector.broadcast %cst_239 : f32 to vector<1x16xf32>
    %508 = vector.extract_strided_slice %497 {offsets = [0, 0], sizes = [31, 16], strides = [1, 1]} : vector<32x16xf32> to vector<31x16xf32>
    %509 = tpu.concatenate %507, %508 in 0 : vector<1x16xf32>, vector<31x16xf32> -> vector<32x16xf32>
    %c1_i32_240 = arith.constant 1 : i32
    %510 = vector.broadcast %c1_i32_240 : i32 to vector<32x1xi32>
    %511 = arith.cmpi sge, %17, %510 : vector<32x1xi32>
    %cst_241 = arith.constant 0.000000e+00 : f32
    %512 = vector.shape_cast %511 : vector<32x1xi1> to vector<32x1xi1>
    %513 = vector.broadcast %512 : vector<32x1xi1> to vector<32x16xi1>
    %514 = vector.broadcast %cst_241 : f32 to vector<32x16xf32>
    %515 = arith.select %513, %509, %514 : vector<32x16xi1>, vector<32x16xf32>
    %516 = tpu.concatenate %506, %515, %497 in 1 : vector<32x16xf32>, vector<32x16xf32>, vector<32x16xf32> -> vector<32x48xf32>
    %517 = arith.truncf %516 : vector<32x48xf32> to vector<32x48xbf16>
    %c4_242 = arith.constant 4 : index
    %c0_243 = arith.constant 0 : index
    %c0_244 = arith.constant 0 : index
    %518 = vector.load %arg6[%c4_242, %c0_243, %c0_244] : memref<8x48x16xbf16, #tpu.memory_space<vmem>>, vector<1x48x16xbf16>
    %519 = vector.shape_cast %518 : vector<1x48x16xbf16> to vector<48x16xbf16>
    %cst_245 = arith.constant dense<0.000000e+00> : vector<32x16xf32>
    %520 = tpu.matmul %517, %519, %cst_245 {dimension_numbers = #tpu.dot_dimension_numbers<[1], [0], [0], [1], [0, 0, 1, 1], [], []>} : vector<32x48xbf16>, vector<48x16xbf16>, vector<32x16xf32> -> vector<32x16xf32>
    %c4_246 = arith.constant 4 : index
    %c0_247 = arith.constant 0 : index
    %c0_248 = arith.constant 0 : index
    %521 = vector.load %arg7[%c4_246, %c0_247, %c0_248] : memref<8x1x16xf32, #tpu.memory_space<vmem>>, vector<1x1x16xf32>
    %522 = vector.shape_cast %521 : vector<1x1x16xf32> to vector<1x16xf32>
    %523 = vector.broadcast %522 : vector<1x16xf32> to vector<32x16xf32>
    %524 = arith.addf %520, %523 : vector<32x16xf32>
    %c4_249 = arith.constant 4 : index
    %c0_250 = arith.constant 0 : index
    %c0_251 = arith.constant 0 : index
    %525 = vector.load %arg8[%c4_249, %c0_250, %c0_251] : memref<8x1x16xf32, #tpu.memory_space<vmem>>, vector<1x1x16xf32>
    %526 = vector.shape_cast %525 : vector<1x1x16xf32> to vector<1x16xf32>
    %c4_252 = arith.constant 4 : index
    %c0_253 = arith.constant 0 : index
    %c0_254 = arith.constant 0 : index
    %527 = vector.load %arg9[%c4_252, %c0_253, %c0_254] : memref<8x1x16xf32, #tpu.memory_space<vmem>>, vector<1x1x16xf32>
    %528 = vector.shape_cast %527 : vector<1x1x16xf32> to vector<1x16xf32>
    %cst_255 = arith.constant dense<0.000000e+00> : vector<32xf32>
    %529 = vector.multi_reduction <add>, %524, %cst_255 [1] : vector<32x16xf32> to vector<32xf32>
    %530 = vector.shape_cast %529 : vector<32xf32> to vector<32x1xf32>
    %cst_256 = arith.constant 1.600000e+01 : f32
    %531 = vector.broadcast %cst_256 : f32 to vector<32x1xf32>
    %532 = arith.divf %530, %531 : vector<32x1xf32>
    %533 = vector.broadcast %532 : vector<32x1xf32> to vector<32x16xf32>
    %534 = arith.subf %524, %533 : vector<32x16xf32>
    %535 = arith.mulf %534, %534 : vector<32x16xf32>
    %cst_257 = arith.constant dense<0.000000e+00> : vector<32xf32>
    %536 = vector.multi_reduction <add>, %535, %cst_257 [1] : vector<32x16xf32> to vector<32xf32>
    %537 = vector.shape_cast %536 : vector<32xf32> to vector<32x1xf32>
    %cst_258 = arith.constant 1.600000e+01 : f32
    %538 = vector.broadcast %cst_258 : f32 to vector<32x1xf32>
    %539 = arith.divf %537, %538 : vector<32x1xf32>
    %540 = vector.broadcast %532 : vector<32x1xf32> to vector<32x16xf32>
    %541 = arith.subf %524, %540 : vector<32x16xf32>
    %cst_259 = arith.constant 9.99999974E-6 : f32
    %542 = vector.broadcast %cst_259 : f32 to vector<32x1xf32>
    %543 = arith.addf %539, %542 : vector<32x1xf32>
    %544 = math.rsqrt %543 : vector<32x1xf32>
    %545 = vector.broadcast %544 : vector<32x1xf32> to vector<32x16xf32>
    %546 = arith.mulf %541, %545 : vector<32x16xf32>
    %547 = vector.broadcast %526 : vector<1x16xf32> to vector<32x16xf32>
    %548 = arith.mulf %546, %547 : vector<32x16xf32>
    %549 = vector.broadcast %528 : vector<1x16xf32> to vector<32x16xf32>
    %550 = arith.addf %548, %549 : vector<32x16xf32>
    %cst_260 = arith.constant 0.000000e+00 : f32
    %551 = vector.broadcast %cst_260 : f32 to vector<32x16xf32>
    %552 = arith.cmpf oge, %550, %551 : vector<32x16xf32>
    %cst_261 = arith.constant 0.00999999977 : f32
    %553 = vector.broadcast %cst_261 : f32 to vector<32x16xf32>
    %554 = arith.mulf %553, %550 : vector<32x16xf32>
    %555 = arith.select %552, %550, %554 : vector<32x16xi1>, vector<32x16xf32>
    %556 = arith.truncf %555 : vector<32x16xf32> to vector<32x16xbf16>
    %c4_262 = arith.constant 4 : index
    %c0_263 = arith.constant 0 : index
    %c0_264 = arith.constant 0 : index
    %557 = vector.load %arg10[%c4_262, %c0_263, %c0_264] : memref<8x16x32xbf16, #tpu.memory_space<vmem>>, vector<1x16x32xbf16>
    %558 = vector.shape_cast %557 : vector<1x16x32xbf16> to vector<16x32xbf16>
    %cst_265 = arith.constant dense<0.000000e+00> : vector<32x32xf32>
    %559 = tpu.matmul %556, %558, %cst_265 {dimension_numbers = #tpu.dot_dimension_numbers<[1], [0], [0], [1], [0, 0, 1, 1], [], []>} : vector<32x16xbf16>, vector<16x32xbf16>, vector<32x32xf32> -> vector<32x32xf32>
    %c4_266 = arith.constant 4 : index
    %c0_267 = arith.constant 0 : index
    %c0_268 = arith.constant 0 : index
    %560 = vector.load %arg11[%c4_266, %c0_267, %c0_268] : memref<8x1x32xf32, #tpu.memory_space<vmem>>, vector<1x1x32xf32>
    %561 = vector.shape_cast %560 : vector<1x1x32xf32> to vector<1x32xf32>
    %562 = vector.broadcast %561 : vector<1x32xf32> to vector<32x32xf32>
    %563 = arith.addf %559, %562 : vector<32x32xf32>
    %564 = arith.addf %453, %563 : vector<32x32xf32>
    %cst_269 = arith.constant 0.000000e+00 : f32
    %565 = vector.broadcast %cst_269 : f32 to vector<32x32xf32>
    %566 = arith.cmpf oge, %564, %565 : vector<32x32xf32>
    %cst_270 = arith.constant 0.00999999977 : f32
    %567 = vector.broadcast %cst_270 : f32 to vector<32x32xf32>
    %568 = arith.mulf %567, %564 : vector<32x32xf32>
    %569 = arith.select %566, %564, %568 : vector<32x32xi1>, vector<32x32xf32>
    %570 = arith.truncf %569 : vector<32x32xf32> to vector<32x32xbf16>
    %c5 = arith.constant 5 : index
    %c0_271 = arith.constant 0 : index
    %c0_272 = arith.constant 0 : index
    %571 = vector.load %arg2[%c5, %c0_271, %c0_272] : memref<8x32x16xbf16, #tpu.memory_space<vmem>>, vector<1x32x16xbf16>
    %572 = vector.shape_cast %571 : vector<1x32x16xbf16> to vector<32x16xbf16>
    %cst_273 = arith.constant dense<0.000000e+00> : vector<32x16xf32>
    %573 = tpu.matmul %570, %572, %cst_273 {dimension_numbers = #tpu.dot_dimension_numbers<[1], [0], [0], [1], [0, 0, 1, 1], [], []>} : vector<32x32xbf16>, vector<32x16xbf16>, vector<32x16xf32> -> vector<32x16xf32>
    %c5_274 = arith.constant 5 : index
    %c0_275 = arith.constant 0 : index
    %c0_276 = arith.constant 0 : index
    %574 = vector.load %arg3[%c5_274, %c0_275, %c0_276] : memref<8x1x16xf32, #tpu.memory_space<vmem>>, vector<1x1x16xf32>
    %575 = vector.shape_cast %574 : vector<1x1x16xf32> to vector<1x16xf32>
    %576 = vector.broadcast %575 : vector<1x16xf32> to vector<32x16xf32>
    %577 = arith.addf %573, %576 : vector<32x16xf32>
    %c5_277 = arith.constant 5 : index
    %c0_278 = arith.constant 0 : index
    %c0_279 = arith.constant 0 : index
    %578 = vector.load %arg4[%c5_277, %c0_278, %c0_279] : memref<8x1x16xf32, #tpu.memory_space<vmem>>, vector<1x1x16xf32>
    %579 = vector.shape_cast %578 : vector<1x1x16xf32> to vector<1x16xf32>
    %c5_280 = arith.constant 5 : index
    %c0_281 = arith.constant 0 : index
    %c0_282 = arith.constant 0 : index
    %580 = vector.load %arg5[%c5_280, %c0_281, %c0_282] : memref<8x1x16xf32, #tpu.memory_space<vmem>>, vector<1x1x16xf32>
    %581 = vector.shape_cast %580 : vector<1x1x16xf32> to vector<1x16xf32>
    %cst_283 = arith.constant dense<0.000000e+00> : vector<32xf32>
    %582 = vector.multi_reduction <add>, %577, %cst_283 [1] : vector<32x16xf32> to vector<32xf32>
    %583 = vector.shape_cast %582 : vector<32xf32> to vector<32x1xf32>
    %cst_284 = arith.constant 1.600000e+01 : f32
    %584 = vector.broadcast %cst_284 : f32 to vector<32x1xf32>
    %585 = arith.divf %583, %584 : vector<32x1xf32>
    %586 = vector.broadcast %585 : vector<32x1xf32> to vector<32x16xf32>
    %587 = arith.subf %577, %586 : vector<32x16xf32>
    %588 = arith.mulf %587, %587 : vector<32x16xf32>
    %cst_285 = arith.constant dense<0.000000e+00> : vector<32xf32>
    %589 = vector.multi_reduction <add>, %588, %cst_285 [1] : vector<32x16xf32> to vector<32xf32>
    %590 = vector.shape_cast %589 : vector<32xf32> to vector<32x1xf32>
    %cst_286 = arith.constant 1.600000e+01 : f32
    %591 = vector.broadcast %cst_286 : f32 to vector<32x1xf32>
    %592 = arith.divf %590, %591 : vector<32x1xf32>
    %593 = vector.broadcast %585 : vector<32x1xf32> to vector<32x16xf32>
    %594 = arith.subf %577, %593 : vector<32x16xf32>
    %cst_287 = arith.constant 9.99999974E-6 : f32
    %595 = vector.broadcast %cst_287 : f32 to vector<32x1xf32>
    %596 = arith.addf %592, %595 : vector<32x1xf32>
    %597 = math.rsqrt %596 : vector<32x1xf32>
    %598 = vector.broadcast %597 : vector<32x1xf32> to vector<32x16xf32>
    %599 = arith.mulf %594, %598 : vector<32x16xf32>
    %600 = vector.broadcast %579 : vector<1x16xf32> to vector<32x16xf32>
    %601 = arith.mulf %599, %600 : vector<32x16xf32>
    %602 = vector.broadcast %581 : vector<1x16xf32> to vector<32x16xf32>
    %603 = arith.addf %601, %602 : vector<32x16xf32>
    %cst_288 = arith.constant 0.000000e+00 : f32
    %604 = vector.broadcast %cst_288 : f32 to vector<32x16xf32>
    %605 = arith.cmpf oge, %603, %604 : vector<32x16xf32>
    %cst_289 = arith.constant 0.00999999977 : f32
    %606 = vector.broadcast %cst_289 : f32 to vector<32x16xf32>
    %607 = arith.mulf %606, %603 : vector<32x16xf32>
    %608 = arith.select %605, %603, %607 : vector<32x16xi1>, vector<32x16xf32>
    %cst_290 = arith.constant 0.000000e+00 : f32
    %609 = vector.broadcast %cst_290 : f32 to vector<4x16xf32>
    %610 = vector.extract_strided_slice %608 {offsets = [0, 0], sizes = [28, 16], strides = [1, 1]} : vector<32x16xf32> to vector<28x16xf32>
    %611 = tpu.concatenate %609, %610 in 0 : vector<4x16xf32>, vector<28x16xf32> -> vector<32x16xf32>
    %c4_i32_291 = arith.constant 4 : i32
    %612 = vector.broadcast %c4_i32_291 : i32 to vector<32x1xi32>
    %613 = arith.cmpi sge, %17, %612 : vector<32x1xi32>
    %cst_292 = arith.constant 0.000000e+00 : f32
    %614 = vector.shape_cast %613 : vector<32x1xi1> to vector<32x1xi1>
    %615 = vector.broadcast %614 : vector<32x1xi1> to vector<32x16xi1>
    %616 = vector.broadcast %cst_292 : f32 to vector<32x16xf32>
    %617 = arith.select %615, %611, %616 : vector<32x16xi1>, vector<32x16xf32>
    %cst_293 = arith.constant 0.000000e+00 : f32
    %618 = vector.broadcast %cst_293 : f32 to vector<2x16xf32>
    %619 = vector.extract_strided_slice %608 {offsets = [0, 0], sizes = [30, 16], strides = [1, 1]} : vector<32x16xf32> to vector<30x16xf32>
    %620 = tpu.concatenate %618, %619 in 0 : vector<2x16xf32>, vector<30x16xf32> -> vector<32x16xf32>
    %c2_i32_294 = arith.constant 2 : i32
    %621 = vector.broadcast %c2_i32_294 : i32 to vector<32x1xi32>
    %622 = arith.cmpi sge, %17, %621 : vector<32x1xi32>
    %cst_295 = arith.constant 0.000000e+00 : f32
    %623 = vector.shape_cast %622 : vector<32x1xi1> to vector<32x1xi1>
    %624 = vector.broadcast %623 : vector<32x1xi1> to vector<32x16xi1>
    %625 = vector.broadcast %cst_295 : f32 to vector<32x16xf32>
    %626 = arith.select %624, %620, %625 : vector<32x16xi1>, vector<32x16xf32>
    %627 = tpu.concatenate %617, %626, %608 in 1 : vector<32x16xf32>, vector<32x16xf32>, vector<32x16xf32> -> vector<32x48xf32>
    %628 = arith.truncf %627 : vector<32x48xf32> to vector<32x48xbf16>
    %c5_296 = arith.constant 5 : index
    %c0_297 = arith.constant 0 : index
    %c0_298 = arith.constant 0 : index
    %629 = vector.load %arg6[%c5_296, %c0_297, %c0_298] : memref<8x48x16xbf16, #tpu.memory_space<vmem>>, vector<1x48x16xbf16>
    %630 = vector.shape_cast %629 : vector<1x48x16xbf16> to vector<48x16xbf16>
    %cst_299 = arith.constant dense<0.000000e+00> : vector<32x16xf32>
    %631 = tpu.matmul %628, %630, %cst_299 {dimension_numbers = #tpu.dot_dimension_numbers<[1], [0], [0], [1], [0, 0, 1, 1], [], []>} : vector<32x48xbf16>, vector<48x16xbf16>, vector<32x16xf32> -> vector<32x16xf32>
    %c5_300 = arith.constant 5 : index
    %c0_301 = arith.constant 0 : index
    %c0_302 = arith.constant 0 : index
    %632 = vector.load %arg7[%c5_300, %c0_301, %c0_302] : memref<8x1x16xf32, #tpu.memory_space<vmem>>, vector<1x1x16xf32>
    %633 = vector.shape_cast %632 : vector<1x1x16xf32> to vector<1x16xf32>
    %634 = vector.broadcast %633 : vector<1x16xf32> to vector<32x16xf32>
    %635 = arith.addf %631, %634 : vector<32x16xf32>
    %c5_303 = arith.constant 5 : index
    %c0_304 = arith.constant 0 : index
    %c0_305 = arith.constant 0 : index
    %636 = vector.load %arg8[%c5_303, %c0_304, %c0_305] : memref<8x1x16xf32, #tpu.memory_space<vmem>>, vector<1x1x16xf32>
    %637 = vector.shape_cast %636 : vector<1x1x16xf32> to vector<1x16xf32>
    %c5_306 = arith.constant 5 : index
    %c0_307 = arith.constant 0 : index
    %c0_308 = arith.constant 0 : index
    %638 = vector.load %arg9[%c5_306, %c0_307, %c0_308] : memref<8x1x16xf32, #tpu.memory_space<vmem>>, vector<1x1x16xf32>
    %639 = vector.shape_cast %638 : vector<1x1x16xf32> to vector<1x16xf32>
    %cst_309 = arith.constant dense<0.000000e+00> : vector<32xf32>
    %640 = vector.multi_reduction <add>, %635, %cst_309 [1] : vector<32x16xf32> to vector<32xf32>
    %641 = vector.shape_cast %640 : vector<32xf32> to vector<32x1xf32>
    %cst_310 = arith.constant 1.600000e+01 : f32
    %642 = vector.broadcast %cst_310 : f32 to vector<32x1xf32>
    %643 = arith.divf %641, %642 : vector<32x1xf32>
    %644 = vector.broadcast %643 : vector<32x1xf32> to vector<32x16xf32>
    %645 = arith.subf %635, %644 : vector<32x16xf32>
    %646 = arith.mulf %645, %645 : vector<32x16xf32>
    %cst_311 = arith.constant dense<0.000000e+00> : vector<32xf32>
    %647 = vector.multi_reduction <add>, %646, %cst_311 [1] : vector<32x16xf32> to vector<32xf32>
    %648 = vector.shape_cast %647 : vector<32xf32> to vector<32x1xf32>
    %cst_312 = arith.constant 1.600000e+01 : f32
    %649 = vector.broadcast %cst_312 : f32 to vector<32x1xf32>
    %650 = arith.divf %648, %649 : vector<32x1xf32>
    %651 = vector.broadcast %643 : vector<32x1xf32> to vector<32x16xf32>
    %652 = arith.subf %635, %651 : vector<32x16xf32>
    %cst_313 = arith.constant 9.99999974E-6 : f32
    %653 = vector.broadcast %cst_313 : f32 to vector<32x1xf32>
    %654 = arith.addf %650, %653 : vector<32x1xf32>
    %655 = math.rsqrt %654 : vector<32x1xf32>
    %656 = vector.broadcast %655 : vector<32x1xf32> to vector<32x16xf32>
    %657 = arith.mulf %652, %656 : vector<32x16xf32>
    %658 = vector.broadcast %637 : vector<1x16xf32> to vector<32x16xf32>
    %659 = arith.mulf %657, %658 : vector<32x16xf32>
    %660 = vector.broadcast %639 : vector<1x16xf32> to vector<32x16xf32>
    %661 = arith.addf %659, %660 : vector<32x16xf32>
    %cst_314 = arith.constant 0.000000e+00 : f32
    %662 = vector.broadcast %cst_314 : f32 to vector<32x16xf32>
    %663 = arith.cmpf oge, %661, %662 : vector<32x16xf32>
    %cst_315 = arith.constant 0.00999999977 : f32
    %664 = vector.broadcast %cst_315 : f32 to vector<32x16xf32>
    %665 = arith.mulf %664, %661 : vector<32x16xf32>
    %666 = arith.select %663, %661, %665 : vector<32x16xi1>, vector<32x16xf32>
    %667 = arith.truncf %666 : vector<32x16xf32> to vector<32x16xbf16>
    %c5_316 = arith.constant 5 : index
    %c0_317 = arith.constant 0 : index
    %c0_318 = arith.constant 0 : index
    %668 = vector.load %arg10[%c5_316, %c0_317, %c0_318] : memref<8x16x32xbf16, #tpu.memory_space<vmem>>, vector<1x16x32xbf16>
    %669 = vector.shape_cast %668 : vector<1x16x32xbf16> to vector<16x32xbf16>
    %cst_319 = arith.constant dense<0.000000e+00> : vector<32x32xf32>
    %670 = tpu.matmul %667, %669, %cst_319 {dimension_numbers = #tpu.dot_dimension_numbers<[1], [0], [0], [1], [0, 0, 1, 1], [], []>} : vector<32x16xbf16>, vector<16x32xbf16>, vector<32x32xf32> -> vector<32x32xf32>
    %c5_320 = arith.constant 5 : index
    %c0_321 = arith.constant 0 : index
    %c0_322 = arith.constant 0 : index
    %671 = vector.load %arg11[%c5_320, %c0_321, %c0_322] : memref<8x1x32xf32, #tpu.memory_space<vmem>>, vector<1x1x32xf32>
    %672 = vector.shape_cast %671 : vector<1x1x32xf32> to vector<1x32xf32>
    %673 = vector.broadcast %672 : vector<1x32xf32> to vector<32x32xf32>
    %674 = arith.addf %670, %673 : vector<32x32xf32>
    %675 = arith.addf %564, %674 : vector<32x32xf32>
    %cst_323 = arith.constant 0.000000e+00 : f32
    %676 = vector.broadcast %cst_323 : f32 to vector<32x32xf32>
    %677 = arith.cmpf oge, %675, %676 : vector<32x32xf32>
    %cst_324 = arith.constant 0.00999999977 : f32
    %678 = vector.broadcast %cst_324 : f32 to vector<32x32xf32>
    %679 = arith.mulf %678, %675 : vector<32x32xf32>
    %680 = arith.select %677, %675, %679 : vector<32x32xi1>, vector<32x32xf32>
    %681 = arith.truncf %680 : vector<32x32xf32> to vector<32x32xbf16>
    %c6 = arith.constant 6 : index
    %c0_325 = arith.constant 0 : index
    %c0_326 = arith.constant 0 : index
    %682 = vector.load %arg2[%c6, %c0_325, %c0_326] : memref<8x32x16xbf16, #tpu.memory_space<vmem>>, vector<1x32x16xbf16>
    %683 = vector.shape_cast %682 : vector<1x32x16xbf16> to vector<32x16xbf16>
    %cst_327 = arith.constant dense<0.000000e+00> : vector<32x16xf32>
    %684 = tpu.matmul %681, %683, %cst_327 {dimension_numbers = #tpu.dot_dimension_numbers<[1], [0], [0], [1], [0, 0, 1, 1], [], []>} : vector<32x32xbf16>, vector<32x16xbf16>, vector<32x16xf32> -> vector<32x16xf32>
    %c6_328 = arith.constant 6 : index
    %c0_329 = arith.constant 0 : index
    %c0_330 = arith.constant 0 : index
    %685 = vector.load %arg3[%c6_328, %c0_329, %c0_330] : memref<8x1x16xf32, #tpu.memory_space<vmem>>, vector<1x1x16xf32>
    %686 = vector.shape_cast %685 : vector<1x1x16xf32> to vector<1x16xf32>
    %687 = vector.broadcast %686 : vector<1x16xf32> to vector<32x16xf32>
    %688 = arith.addf %684, %687 : vector<32x16xf32>
    %c6_331 = arith.constant 6 : index
    %c0_332 = arith.constant 0 : index
    %c0_333 = arith.constant 0 : index
    %689 = vector.load %arg4[%c6_331, %c0_332, %c0_333] : memref<8x1x16xf32, #tpu.memory_space<vmem>>, vector<1x1x16xf32>
    %690 = vector.shape_cast %689 : vector<1x1x16xf32> to vector<1x16xf32>
    %c6_334 = arith.constant 6 : index
    %c0_335 = arith.constant 0 : index
    %c0_336 = arith.constant 0 : index
    %691 = vector.load %arg5[%c6_334, %c0_335, %c0_336] : memref<8x1x16xf32, #tpu.memory_space<vmem>>, vector<1x1x16xf32>
    %692 = vector.shape_cast %691 : vector<1x1x16xf32> to vector<1x16xf32>
    %cst_337 = arith.constant dense<0.000000e+00> : vector<32xf32>
    %693 = vector.multi_reduction <add>, %688, %cst_337 [1] : vector<32x16xf32> to vector<32xf32>
    %694 = vector.shape_cast %693 : vector<32xf32> to vector<32x1xf32>
    %cst_338 = arith.constant 1.600000e+01 : f32
    %695 = vector.broadcast %cst_338 : f32 to vector<32x1xf32>
    %696 = arith.divf %694, %695 : vector<32x1xf32>
    %697 = vector.broadcast %696 : vector<32x1xf32> to vector<32x16xf32>
    %698 = arith.subf %688, %697 : vector<32x16xf32>
    %699 = arith.mulf %698, %698 : vector<32x16xf32>
    %cst_339 = arith.constant dense<0.000000e+00> : vector<32xf32>
    %700 = vector.multi_reduction <add>, %699, %cst_339 [1] : vector<32x16xf32> to vector<32xf32>
    %701 = vector.shape_cast %700 : vector<32xf32> to vector<32x1xf32>
    %cst_340 = arith.constant 1.600000e+01 : f32
    %702 = vector.broadcast %cst_340 : f32 to vector<32x1xf32>
    %703 = arith.divf %701, %702 : vector<32x1xf32>
    %704 = vector.broadcast %696 : vector<32x1xf32> to vector<32x16xf32>
    %705 = arith.subf %688, %704 : vector<32x16xf32>
    %cst_341 = arith.constant 9.99999974E-6 : f32
    %706 = vector.broadcast %cst_341 : f32 to vector<32x1xf32>
    %707 = arith.addf %703, %706 : vector<32x1xf32>
    %708 = math.rsqrt %707 : vector<32x1xf32>
    %709 = vector.broadcast %708 : vector<32x1xf32> to vector<32x16xf32>
    %710 = arith.mulf %705, %709 : vector<32x16xf32>
    %711 = vector.broadcast %690 : vector<1x16xf32> to vector<32x16xf32>
    %712 = arith.mulf %710, %711 : vector<32x16xf32>
    %713 = vector.broadcast %692 : vector<1x16xf32> to vector<32x16xf32>
    %714 = arith.addf %712, %713 : vector<32x16xf32>
    %cst_342 = arith.constant 0.000000e+00 : f32
    %715 = vector.broadcast %cst_342 : f32 to vector<32x16xf32>
    %716 = arith.cmpf oge, %714, %715 : vector<32x16xf32>
    %cst_343 = arith.constant 0.00999999977 : f32
    %717 = vector.broadcast %cst_343 : f32 to vector<32x16xf32>
    %718 = arith.mulf %717, %714 : vector<32x16xf32>
    %719 = arith.select %716, %714, %718 : vector<32x16xi1>, vector<32x16xf32>
    %cst_344 = arith.constant 0.000000e+00 : f32
    %720 = vector.broadcast %cst_344 : f32 to vector<8x16xf32>
    %721 = vector.extract_strided_slice %719 {offsets = [0, 0], sizes = [24, 16], strides = [1, 1]} : vector<32x16xf32> to vector<24x16xf32>
    %722 = tpu.concatenate %720, %721 in 0 : vector<8x16xf32>, vector<24x16xf32> -> vector<32x16xf32>
    %c8_i32_345 = arith.constant 8 : i32
    %723 = vector.broadcast %c8_i32_345 : i32 to vector<32x1xi32>
    %724 = arith.cmpi sge, %17, %723 : vector<32x1xi32>
    %cst_346 = arith.constant 0.000000e+00 : f32
    %725 = vector.shape_cast %724 : vector<32x1xi1> to vector<32x1xi1>
    %726 = vector.broadcast %725 : vector<32x1xi1> to vector<32x16xi1>
    %727 = vector.broadcast %cst_346 : f32 to vector<32x16xf32>
    %728 = arith.select %726, %722, %727 : vector<32x16xi1>, vector<32x16xf32>
    %cst_347 = arith.constant 0.000000e+00 : f32
    %729 = vector.broadcast %cst_347 : f32 to vector<4x16xf32>
    %730 = vector.extract_strided_slice %719 {offsets = [0, 0], sizes = [28, 16], strides = [1, 1]} : vector<32x16xf32> to vector<28x16xf32>
    %731 = tpu.concatenate %729, %730 in 0 : vector<4x16xf32>, vector<28x16xf32> -> vector<32x16xf32>
    %c4_i32_348 = arith.constant 4 : i32
    %732 = vector.broadcast %c4_i32_348 : i32 to vector<32x1xi32>
    %733 = arith.cmpi sge, %17, %732 : vector<32x1xi32>
    %cst_349 = arith.constant 0.000000e+00 : f32
    %734 = vector.shape_cast %733 : vector<32x1xi1> to vector<32x1xi1>
    %735 = vector.broadcast %734 : vector<32x1xi1> to vector<32x16xi1>
    %736 = vector.broadcast %cst_349 : f32 to vector<32x16xf32>
    %737 = arith.select %735, %731, %736 : vector<32x16xi1>, vector<32x16xf32>
    %738 = tpu.concatenate %728, %737, %719 in 1 : vector<32x16xf32>, vector<32x16xf32>, vector<32x16xf32> -> vector<32x48xf32>
    %739 = arith.truncf %738 : vector<32x48xf32> to vector<32x48xbf16>
    %c6_350 = arith.constant 6 : index
    %c0_351 = arith.constant 0 : index
    %c0_352 = arith.constant 0 : index
    %740 = vector.load %arg6[%c6_350, %c0_351, %c0_352] : memref<8x48x16xbf16, #tpu.memory_space<vmem>>, vector<1x48x16xbf16>
    %741 = vector.shape_cast %740 : vector<1x48x16xbf16> to vector<48x16xbf16>
    %cst_353 = arith.constant dense<0.000000e+00> : vector<32x16xf32>
    %742 = tpu.matmul %739, %741, %cst_353 {dimension_numbers = #tpu.dot_dimension_numbers<[1], [0], [0], [1], [0, 0, 1, 1], [], []>} : vector<32x48xbf16>, vector<48x16xbf16>, vector<32x16xf32> -> vector<32x16xf32>
    %c6_354 = arith.constant 6 : index
    %c0_355 = arith.constant 0 : index
    %c0_356 = arith.constant 0 : index
    %743 = vector.load %arg7[%c6_354, %c0_355, %c0_356] : memref<8x1x16xf32, #tpu.memory_space<vmem>>, vector<1x1x16xf32>
    %744 = vector.shape_cast %743 : vector<1x1x16xf32> to vector<1x16xf32>
    %745 = vector.broadcast %744 : vector<1x16xf32> to vector<32x16xf32>
    %746 = arith.addf %742, %745 : vector<32x16xf32>
    %c6_357 = arith.constant 6 : index
    %c0_358 = arith.constant 0 : index
    %c0_359 = arith.constant 0 : index
    %747 = vector.load %arg8[%c6_357, %c0_358, %c0_359] : memref<8x1x16xf32, #tpu.memory_space<vmem>>, vector<1x1x16xf32>
    %748 = vector.shape_cast %747 : vector<1x1x16xf32> to vector<1x16xf32>
    %c6_360 = arith.constant 6 : index
    %c0_361 = arith.constant 0 : index
    %c0_362 = arith.constant 0 : index
    %749 = vector.load %arg9[%c6_360, %c0_361, %c0_362] : memref<8x1x16xf32, #tpu.memory_space<vmem>>, vector<1x1x16xf32>
    %750 = vector.shape_cast %749 : vector<1x1x16xf32> to vector<1x16xf32>
    %cst_363 = arith.constant dense<0.000000e+00> : vector<32xf32>
    %751 = vector.multi_reduction <add>, %746, %cst_363 [1] : vector<32x16xf32> to vector<32xf32>
    %752 = vector.shape_cast %751 : vector<32xf32> to vector<32x1xf32>
    %cst_364 = arith.constant 1.600000e+01 : f32
    %753 = vector.broadcast %cst_364 : f32 to vector<32x1xf32>
    %754 = arith.divf %752, %753 : vector<32x1xf32>
    %755 = vector.broadcast %754 : vector<32x1xf32> to vector<32x16xf32>
    %756 = arith.subf %746, %755 : vector<32x16xf32>
    %757 = arith.mulf %756, %756 : vector<32x16xf32>
    %cst_365 = arith.constant dense<0.000000e+00> : vector<32xf32>
    %758 = vector.multi_reduction <add>, %757, %cst_365 [1] : vector<32x16xf32> to vector<32xf32>
    %759 = vector.shape_cast %758 : vector<32xf32> to vector<32x1xf32>
    %cst_366 = arith.constant 1.600000e+01 : f32
    %760 = vector.broadcast %cst_366 : f32 to vector<32x1xf32>
    %761 = arith.divf %759, %760 : vector<32x1xf32>
    %762 = vector.broadcast %754 : vector<32x1xf32> to vector<32x16xf32>
    %763 = arith.subf %746, %762 : vector<32x16xf32>
    %cst_367 = arith.constant 9.99999974E-6 : f32
    %764 = vector.broadcast %cst_367 : f32 to vector<32x1xf32>
    %765 = arith.addf %761, %764 : vector<32x1xf32>
    %766 = math.rsqrt %765 : vector<32x1xf32>
    %767 = vector.broadcast %766 : vector<32x1xf32> to vector<32x16xf32>
    %768 = arith.mulf %763, %767 : vector<32x16xf32>
    %769 = vector.broadcast %748 : vector<1x16xf32> to vector<32x16xf32>
    %770 = arith.mulf %768, %769 : vector<32x16xf32>
    %771 = vector.broadcast %750 : vector<1x16xf32> to vector<32x16xf32>
    %772 = arith.addf %770, %771 : vector<32x16xf32>
    %cst_368 = arith.constant 0.000000e+00 : f32
    %773 = vector.broadcast %cst_368 : f32 to vector<32x16xf32>
    %774 = arith.cmpf oge, %772, %773 : vector<32x16xf32>
    %cst_369 = arith.constant 0.00999999977 : f32
    %775 = vector.broadcast %cst_369 : f32 to vector<32x16xf32>
    %776 = arith.mulf %775, %772 : vector<32x16xf32>
    %777 = arith.select %774, %772, %776 : vector<32x16xi1>, vector<32x16xf32>
    %778 = arith.truncf %777 : vector<32x16xf32> to vector<32x16xbf16>
    %c6_370 = arith.constant 6 : index
    %c0_371 = arith.constant 0 : index
    %c0_372 = arith.constant 0 : index
    %779 = vector.load %arg10[%c6_370, %c0_371, %c0_372] : memref<8x16x32xbf16, #tpu.memory_space<vmem>>, vector<1x16x32xbf16>
    %780 = vector.shape_cast %779 : vector<1x16x32xbf16> to vector<16x32xbf16>
    %cst_373 = arith.constant dense<0.000000e+00> : vector<32x32xf32>
    %781 = tpu.matmul %778, %780, %cst_373 {dimension_numbers = #tpu.dot_dimension_numbers<[1], [0], [0], [1], [0, 0, 1, 1], [], []>} : vector<32x16xbf16>, vector<16x32xbf16>, vector<32x32xf32> -> vector<32x32xf32>
    %c6_374 = arith.constant 6 : index
    %c0_375 = arith.constant 0 : index
    %c0_376 = arith.constant 0 : index
    %782 = vector.load %arg11[%c6_374, %c0_375, %c0_376] : memref<8x1x32xf32, #tpu.memory_space<vmem>>, vector<1x1x32xf32>
    %783 = vector.shape_cast %782 : vector<1x1x32xf32> to vector<1x32xf32>
    %784 = vector.broadcast %783 : vector<1x32xf32> to vector<32x32xf32>
    %785 = arith.addf %781, %784 : vector<32x32xf32>
    %786 = arith.addf %675, %785 : vector<32x32xf32>
    %cst_377 = arith.constant 0.000000e+00 : f32
    %787 = vector.broadcast %cst_377 : f32 to vector<32x32xf32>
    %788 = arith.cmpf oge, %786, %787 : vector<32x32xf32>
    %cst_378 = arith.constant 0.00999999977 : f32
    %789 = vector.broadcast %cst_378 : f32 to vector<32x32xf32>
    %790 = arith.mulf %789, %786 : vector<32x32xf32>
    %791 = arith.select %788, %786, %790 : vector<32x32xi1>, vector<32x32xf32>
    %792 = arith.truncf %791 : vector<32x32xf32> to vector<32x32xbf16>
    %c7 = arith.constant 7 : index
    %c0_379 = arith.constant 0 : index
    %c0_380 = arith.constant 0 : index
    %793 = vector.load %arg2[%c7, %c0_379, %c0_380] : memref<8x32x16xbf16, #tpu.memory_space<vmem>>, vector<1x32x16xbf16>
    %794 = vector.shape_cast %793 : vector<1x32x16xbf16> to vector<32x16xbf16>
    %cst_381 = arith.constant dense<0.000000e+00> : vector<32x16xf32>
    %795 = tpu.matmul %792, %794, %cst_381 {dimension_numbers = #tpu.dot_dimension_numbers<[1], [0], [0], [1], [0, 0, 1, 1], [], []>} : vector<32x32xbf16>, vector<32x16xbf16>, vector<32x16xf32> -> vector<32x16xf32>
    %c7_382 = arith.constant 7 : index
    %c0_383 = arith.constant 0 : index
    %c0_384 = arith.constant 0 : index
    %796 = vector.load %arg3[%c7_382, %c0_383, %c0_384] : memref<8x1x16xf32, #tpu.memory_space<vmem>>, vector<1x1x16xf32>
    %797 = vector.shape_cast %796 : vector<1x1x16xf32> to vector<1x16xf32>
    %798 = vector.broadcast %797 : vector<1x16xf32> to vector<32x16xf32>
    %799 = arith.addf %795, %798 : vector<32x16xf32>
    %c7_385 = arith.constant 7 : index
    %c0_386 = arith.constant 0 : index
    %c0_387 = arith.constant 0 : index
    %800 = vector.load %arg4[%c7_385, %c0_386, %c0_387] : memref<8x1x16xf32, #tpu.memory_space<vmem>>, vector<1x1x16xf32>
    %801 = vector.shape_cast %800 : vector<1x1x16xf32> to vector<1x16xf32>
    %c7_388 = arith.constant 7 : index
    %c0_389 = arith.constant 0 : index
    %c0_390 = arith.constant 0 : index
    %802 = vector.load %arg5[%c7_388, %c0_389, %c0_390] : memref<8x1x16xf32, #tpu.memory_space<vmem>>, vector<1x1x16xf32>
    %803 = vector.shape_cast %802 : vector<1x1x16xf32> to vector<1x16xf32>
    %cst_391 = arith.constant dense<0.000000e+00> : vector<32xf32>
    %804 = vector.multi_reduction <add>, %799, %cst_391 [1] : vector<32x16xf32> to vector<32xf32>
    %805 = vector.shape_cast %804 : vector<32xf32> to vector<32x1xf32>
    %cst_392 = arith.constant 1.600000e+01 : f32
    %806 = vector.broadcast %cst_392 : f32 to vector<32x1xf32>
    %807 = arith.divf %805, %806 : vector<32x1xf32>
    %808 = vector.broadcast %807 : vector<32x1xf32> to vector<32x16xf32>
    %809 = arith.subf %799, %808 : vector<32x16xf32>
    %810 = arith.mulf %809, %809 : vector<32x16xf32>
    %cst_393 = arith.constant dense<0.000000e+00> : vector<32xf32>
    %811 = vector.multi_reduction <add>, %810, %cst_393 [1] : vector<32x16xf32> to vector<32xf32>
    %812 = vector.shape_cast %811 : vector<32xf32> to vector<32x1xf32>
    %cst_394 = arith.constant 1.600000e+01 : f32
    %813 = vector.broadcast %cst_394 : f32 to vector<32x1xf32>
    %814 = arith.divf %812, %813 : vector<32x1xf32>
    %815 = vector.broadcast %807 : vector<32x1xf32> to vector<32x16xf32>
    %816 = arith.subf %799, %815 : vector<32x16xf32>
    %cst_395 = arith.constant 9.99999974E-6 : f32
    %817 = vector.broadcast %cst_395 : f32 to vector<32x1xf32>
    %818 = arith.addf %814, %817 : vector<32x1xf32>
    %819 = math.rsqrt %818 : vector<32x1xf32>
    %820 = vector.broadcast %819 : vector<32x1xf32> to vector<32x16xf32>
    %821 = arith.mulf %816, %820 : vector<32x16xf32>
    %822 = vector.broadcast %801 : vector<1x16xf32> to vector<32x16xf32>
    %823 = arith.mulf %821, %822 : vector<32x16xf32>
    %824 = vector.broadcast %803 : vector<1x16xf32> to vector<32x16xf32>
    %825 = arith.addf %823, %824 : vector<32x16xf32>
    %cst_396 = arith.constant 0.000000e+00 : f32
    %826 = vector.broadcast %cst_396 : f32 to vector<32x16xf32>
    %827 = arith.cmpf oge, %825, %826 : vector<32x16xf32>
    %cst_397 = arith.constant 0.00999999977 : f32
    %828 = vector.broadcast %cst_397 : f32 to vector<32x16xf32>
    %829 = arith.mulf %828, %825 : vector<32x16xf32>
    %830 = arith.select %827, %825, %829 : vector<32x16xi1>, vector<32x16xf32>
    %cst_398 = arith.constant 0.000000e+00 : f32
    %831 = vector.broadcast %cst_398 : f32 to vector<32x16xf32>
    %cst_399 = arith.constant 0.000000e+00 : f32
    %832 = vector.broadcast %cst_399 : f32 to vector<8x16xf32>
    %833 = vector.extract_strided_slice %830 {offsets = [0, 0], sizes = [24, 16], strides = [1, 1]} : vector<32x16xf32> to vector<24x16xf32>
    %834 = tpu.concatenate %832, %833 in 0 : vector<8x16xf32>, vector<24x16xf32> -> vector<32x16xf32>
    %c8_i32_400 = arith.constant 8 : i32
    %835 = vector.broadcast %c8_i32_400 : i32 to vector<32x1xi32>
    %836 = arith.cmpi sge, %17, %835 : vector<32x1xi32>
    %cst_401 = arith.constant 0.000000e+00 : f32
    %837 = vector.shape_cast %836 : vector<32x1xi1> to vector<32x1xi1>
    %838 = vector.broadcast %837 : vector<32x1xi1> to vector<32x16xi1>
    %839 = vector.broadcast %cst_401 : f32 to vector<32x16xf32>
    %840 = arith.select %838, %834, %839 : vector<32x16xi1>, vector<32x16xf32>
    %841 = tpu.concatenate %831, %840, %830 in 1 : vector<32x16xf32>, vector<32x16xf32>, vector<32x16xf32> -> vector<32x48xf32>
    %842 = arith.truncf %841 : vector<32x48xf32> to vector<32x48xbf16>
    %c7_402 = arith.constant 7 : index
    %c0_403 = arith.constant 0 : index
    %c0_404 = arith.constant 0 : index
    %843 = vector.load %arg6[%c7_402, %c0_403, %c0_404] : memref<8x48x16xbf16, #tpu.memory_space<vmem>>, vector<1x48x16xbf16>
    %844 = vector.shape_cast %843 : vector<1x48x16xbf16> to vector<48x16xbf16>
    %cst_405 = arith.constant dense<0.000000e+00> : vector<32x16xf32>
    %845 = tpu.matmul %842, %844, %cst_405 {dimension_numbers = #tpu.dot_dimension_numbers<[1], [0], [0], [1], [0, 0, 1, 1], [], []>} : vector<32x48xbf16>, vector<48x16xbf16>, vector<32x16xf32> -> vector<32x16xf32>
    %c7_406 = arith.constant 7 : index
    %c0_407 = arith.constant 0 : index
    %c0_408 = arith.constant 0 : index
    %846 = vector.load %arg7[%c7_406, %c0_407, %c0_408] : memref<8x1x16xf32, #tpu.memory_space<vmem>>, vector<1x1x16xf32>
    %847 = vector.shape_cast %846 : vector<1x1x16xf32> to vector<1x16xf32>
    %848 = vector.broadcast %847 : vector<1x16xf32> to vector<32x16xf32>
    %849 = arith.addf %845, %848 : vector<32x16xf32>
    %c7_409 = arith.constant 7 : index
    %c0_410 = arith.constant 0 : index
    %c0_411 = arith.constant 0 : index
    %850 = vector.load %arg8[%c7_409, %c0_410, %c0_411] : memref<8x1x16xf32, #tpu.memory_space<vmem>>, vector<1x1x16xf32>
    %851 = vector.shape_cast %850 : vector<1x1x16xf32> to vector<1x16xf32>
    %c7_412 = arith.constant 7 : index
    %c0_413 = arith.constant 0 : index
    %c0_414 = arith.constant 0 : index
    %852 = vector.load %arg9[%c7_412, %c0_413, %c0_414] : memref<8x1x16xf32, #tpu.memory_space<vmem>>, vector<1x1x16xf32>
    %853 = vector.shape_cast %852 : vector<1x1x16xf32> to vector<1x16xf32>
    %cst_415 = arith.constant dense<0.000000e+00> : vector<32xf32>
    %854 = vector.multi_reduction <add>, %849, %cst_415 [1] : vector<32x16xf32> to vector<32xf32>
    %855 = vector.shape_cast %854 : vector<32xf32> to vector<32x1xf32>
    %cst_416 = arith.constant 1.600000e+01 : f32
    %856 = vector.broadcast %cst_416 : f32 to vector<32x1xf32>
    %857 = arith.divf %855, %856 : vector<32x1xf32>
    %858 = vector.broadcast %857 : vector<32x1xf32> to vector<32x16xf32>
    %859 = arith.subf %849, %858 : vector<32x16xf32>
    %860 = arith.mulf %859, %859 : vector<32x16xf32>
    %cst_417 = arith.constant dense<0.000000e+00> : vector<32xf32>
    %861 = vector.multi_reduction <add>, %860, %cst_417 [1] : vector<32x16xf32> to vector<32xf32>
    %862 = vector.shape_cast %861 : vector<32xf32> to vector<32x1xf32>
    %cst_418 = arith.constant 1.600000e+01 : f32
    %863 = vector.broadcast %cst_418 : f32 to vector<32x1xf32>
    %864 = arith.divf %862, %863 : vector<32x1xf32>
    %865 = vector.broadcast %857 : vector<32x1xf32> to vector<32x16xf32>
    %866 = arith.subf %849, %865 : vector<32x16xf32>
    %cst_419 = arith.constant 9.99999974E-6 : f32
    %867 = vector.broadcast %cst_419 : f32 to vector<32x1xf32>
    %868 = arith.addf %864, %867 : vector<32x1xf32>
    %869 = math.rsqrt %868 : vector<32x1xf32>
    %870 = vector.broadcast %869 : vector<32x1xf32> to vector<32x16xf32>
    %871 = arith.mulf %866, %870 : vector<32x16xf32>
    %872 = vector.broadcast %851 : vector<1x16xf32> to vector<32x16xf32>
    %873 = arith.mulf %871, %872 : vector<32x16xf32>
    %874 = vector.broadcast %853 : vector<1x16xf32> to vector<32x16xf32>
    %875 = arith.addf %873, %874 : vector<32x16xf32>
    %cst_420 = arith.constant 0.000000e+00 : f32
    %876 = vector.broadcast %cst_420 : f32 to vector<32x16xf32>
    %877 = arith.cmpf oge, %875, %876 : vector<32x16xf32>
    %cst_421 = arith.constant 0.00999999977 : f32
    %878 = vector.broadcast %cst_421 : f32 to vector<32x16xf32>
    %879 = arith.mulf %878, %875 : vector<32x16xf32>
    %880 = arith.select %877, %875, %879 : vector<32x16xi1>, vector<32x16xf32>
    %881 = arith.truncf %880 : vector<32x16xf32> to vector<32x16xbf16>
    %c7_422 = arith.constant 7 : index
    %c0_423 = arith.constant 0 : index
    %c0_424 = arith.constant 0 : index
    %882 = vector.load %arg10[%c7_422, %c0_423, %c0_424] : memref<8x16x32xbf16, #tpu.memory_space<vmem>>, vector<1x16x32xbf16>
    %883 = vector.shape_cast %882 : vector<1x16x32xbf16> to vector<16x32xbf16>
    %cst_425 = arith.constant dense<0.000000e+00> : vector<32x32xf32>
    %884 = tpu.matmul %881, %883, %cst_425 {dimension_numbers = #tpu.dot_dimension_numbers<[1], [0], [0], [1], [0, 0, 1, 1], [], []>} : vector<32x16xbf16>, vector<16x32xbf16>, vector<32x32xf32> -> vector<32x32xf32>
    %c7_426 = arith.constant 7 : index
    %c0_427 = arith.constant 0 : index
    %c0_428 = arith.constant 0 : index
    %885 = vector.load %arg11[%c7_426, %c0_427, %c0_428] : memref<8x1x32xf32, #tpu.memory_space<vmem>>, vector<1x1x32xf32>
    %886 = vector.shape_cast %885 : vector<1x1x32xf32> to vector<1x32xf32>
    %887 = vector.broadcast %886 : vector<1x32xf32> to vector<32x32xf32>
    %888 = arith.addf %884, %887 : vector<32x32xf32>
    %889 = arith.addf %786, %888 : vector<32x32xf32>
    %c0_429 = arith.constant 0 : index
    %c0_430 = arith.constant 0 : index
    %890 = vector.load %arg12[%c0_429, %c0_430] : memref<32x32xf32, #tpu.memory_space<vmem>>, vector<32x32xf32>
    tpu.vector_store %arg12[%c0_429, %c0_430], %889 {strides = array<i32>} : memref<32x32xf32, #tpu.memory_space<vmem>>, vector<32x32xf32>,
    return
  }
  func.func @transform_0(%arg0: i32) -> (i32, i32) {
    %c0_i32 = arith.constant 0 : i32
    %c0_i32_0 = arith.constant 0 : i32
    return %arg0, %c0_i32 : i32, i32
  }
  func.func @transform_1(%arg0: i32) -> (i32, i32, i32) {
    %c0_i32 = arith.constant 0 : i32
    %c0_i32_0 = arith.constant 0 : i32
    %c0_i32_1 = arith.constant 0 : i32
    %c0_i32_2 = arith.constant 0 : i32
    return %c0_i32, %c0_i32_0, %c0_i32_1 : i32, i32, i32
  }
  func.func @transform_2(%arg0: i32) -> (i32, i32, i32) {
    %c0_i32 = arith.constant 0 : i32
    %c0_i32_0 = arith.constant 0 : i32
    %c0_i32_1 = arith.constant 0 : i32
    %c0_i32_2 = arith.constant 0 : i32
    return %c0_i32, %c0_i32_0, %c0_i32_1 : i32, i32, i32
  }
  func.func @transform_3(%arg0: i32) -> (i32, i32, i32) {
    %c0_i32 = arith.constant 0 : i32
    %c0_i32_0 = arith.constant 0 : i32
    %c0_i32_1 = arith.constant 0 : i32
    %c0_i32_2 = arith.constant 0 : i32
    return %c0_i32, %c0_i32_0, %c0_i32_1 : i32, i32, i32
  }
  func.func @transform_4(%arg0: i32) -> (i32, i32, i32) {
    %c0_i32 = arith.constant 0 : i32
    %c0_i32_0 = arith.constant 0 : i32
    %c0_i32_1 = arith.constant 0 : i32
    %c0_i32_2 = arith.constant 0 : i32
    return %c0_i32, %c0_i32_0, %c0_i32_1 : i32, i32, i32
  }
  func.func @transform_5(%arg0: i32) -> (i32, i32, i32) {
    %c0_i32 = arith.constant 0 : i32
    %c0_i32_0 = arith.constant 0 : i32
    %c0_i32_1 = arith.constant 0 : i32
    %c0_i32_2 = arith.constant 0 : i32
    return %c0_i32, %c0_i32_0, %c0_i32_1 : i32, i32, i32
  }
  func.func @transform_6(%arg0: i32) -> (i32, i32, i32) {
    %c0_i32 = arith.constant 0 : i32
    %c0_i32_0 = arith.constant 0 : i32
    %c0_i32_1 = arith.constant 0 : i32
    %c0_i32_2 = arith.constant 0 : i32
    return %c0_i32, %c0_i32_0, %c0_i32_1 : i32, i32, i32
  }
  func.func @transform_7(%arg0: i32) -> (i32, i32, i32) {
    %c0_i32 = arith.constant 0 : i32
    %c0_i32_0 = arith.constant 0 : i32
    %c0_i32_1 = arith.constant 0 : i32
    %c0_i32_2 = arith.constant 0 : i32
    return %c0_i32, %c0_i32_0, %c0_i32_1 : i32, i32, i32
  }
  func.func @transform_8(%arg0: i32) -> (i32, i32, i32) {
    %c0_i32 = arith.constant 0 : i32
    %c0_i32_0 = arith.constant 0 : i32
    %c0_i32_1 = arith.constant 0 : i32
    %c0_i32_2 = arith.constant 0 : i32
    return %c0_i32, %c0_i32_0, %c0_i32_1 : i32, i32, i32
  }
  func.func @transform_9(%arg0: i32) -> (i32, i32, i32) {
    %c0_i32 = arith.constant 0 : i32
    %c0_i32_0 = arith.constant 0 : i32
    %c0_i32_1 = arith.constant 0 : i32
    %c0_i32_2 = arith.constant 0 : i32
    return %c0_i32, %c0_i32_0, %c0_i32_1 : i32, i32, i32
  }
  func.func @transform_10(%arg0: i32) -> (i32, i32, i32) {
    %c0_i32 = arith.constant 0 : i32
    %c0_i32_0 = arith.constant 0 : i32
    %c0_i32_1 = arith.constant 0 : i32
    %c0_i32_2 = arith.constant 0 : i32
    return %c0_i32, %c0_i32_0, %c0_i32_1 : i32, i32, i32
  }
  func.func @transform_11(%arg0: i32) -> (i32, i32) {
    %c0_i32 = arith.constant 0 : i32
    %c0_i32_0 = arith.constant 0 : i32
    return %arg0, %c0_i32 : i32, i32
  }
}

</mosaic_0001>

<llo_original>
// kernel: _lambda_.3
$region0: #{_lambda_.3}
  #allocation0 [shape = 'u32[]', space=smem, size = 0x4, offset = 0x4, fixed_abs, tag = 'smem constant byte address 0x4 - core index']
  #allocation1 [shape = 'u32[144,128]{1,0:T(1,128)}', space=vmem, size = 0x12000, scoped, tag = 'internal scratch']
  %s0 = inlined_call_operand.vmem [shape: f32[32,32], index: 0, kind: input, shape index: {}]
  %s1 = inlined_call_operand.vmem [shape: bf16[32,128], index: 1, kind: input, shape index: {}]
  %s2 = inlined_call_operand.vmem [shape: f32[1,128], index: 2, kind: input, shape index: {}]
  %s3 = inlined_call_operand.hbm [shape: f32[32,128], index: 3, kind: output, shape index: {}]
  %s4 = sld [smem:[#allocation0]]
  $region22: #{_lambda_.3} parent=0
    _
  %s6 = ssub.s32 1, %s4
  %s7 = scalar_select 0, %s6, %s4
  $region1: #{_lambda_.3} parent=0
    #allocation2 [shape = 'u8[16384]{0}', space=vmem, size = 0x4000, scoped, tag = 'output window, operand 0, single buffered']
    #allocation3 [shape = 's32[1]{0}', space=sflag, size = 0x4, scoped, tag = 'scoped memory for _lambda_.3']
    %8 = vsyncpa [#allocation3], 0
    // Predicated region
    $region2: #{_lambda_.3} parent=1 // pred_check
      _
    $region3: #{_lambda_.3} parent=1 // pred_check_branch
      %10 = sbr.rel (0) target = $region5
    $region4: #{_lambda_.3} parent=1 // pred_region
      _
    $region5: #{_lambda_.3} parent=1 // pred_fallthru
      _
    // Predicated region
    $region6: #{_lambda_.3} parent=1 // pred_check
      _
    $region7: #{_lambda_.3} parent=1 // pred_check_branch
      %12 = sbr.rel (0) target = $region9
    $region8: #{_lambda_.3} parent=1 // pred_region
      _
    $region9: #{_lambda_.3} parent=1 // pred_fallthru
      _
    // Predicated region
    $region10: #{_lambda_.3} parent=1 // pred_check
      _
    $region11: #{_lambda_.3} parent=1 // pred_check_branch
      %14 = sbr.rel (0) target = $region13
    $region12: #{_lambda_.3} parent=1 // pred_region
      _
    $region13: #{_lambda_.3} parent=1 // pred_fallthru
      _
    %v16 = vld [vmem:[%s0] sm:$0xff]
    %v17 = vld [vmem:[%s0 + $0x8] sm:$0xff]
    %v18 = vld [vmem:[%s0 + $0x10] sm:$0xff]
    %v19 = vld [vmem:[%s0 + $0x18] sm:$0xff]
    %v20 = vpack.c.bf16 %v17, %v16
    %v21 = vpack.c.bf16 %v19, %v18
    %v22 = vld [vmem:[%s1] sm:$0xf]
    %v23 = vld [vmem:[%s1 + $0x4] sm:$0xf]
    %v24 = vld [vmem:[%s1 + $0x8] sm:$0xf]
    %v25 = vld [vmem:[%s1 + $0xc] sm:$0xf]
    %v26 = vld [vmem:[%s2] sm:$0x1]
    %v28 = vlaneseq
    %v29 = vshrl.u32 %v28, 7
    %v30 = vsub.s32 0, %v29
    %v31 = vrot.slane %v26, %v30
    %v37 = vunpack.c.l.b16 %v22
    %v38 = vunpack.c.l.b16 %v23
    %v39 = vunpack.c.l.b16 %v24
    %v40 = vunpack.c.l.b16 %v25
    %v41 = vpack.c.b16 %v38, %v37
    %v42 = vpack.c.b16 %v40, %v39
    %vm45 = vcmask 261120
    %v47 = vsel %vm45, %v20, 0
    %v50 = vsel %vm45, %v21, 0
    %52 = vmatprep.subr.bf16.mxu0 0
    %53 = vmatpush1.bf16.msra.mxu0 %v41
    %54 = vmatprep.subr.bf16.mxu0 0
    %55 = vmatpush1.bf16.msra.mxu0 %v42
    %56 = vmatprep.subr.bf16.mxu0 0
    %57 = vmatpush1.bf16.msra.mxu0 0
    %58 = vmatprep.subr.bf16.mxu0 0
    %59 = vmatpush1.bf16.msra.mxu0 0
    %60 = vmatprep.subr.bf16.mxu0 0
    %61 = vmatpush1.bf16.msra.mxu0 0
    %62 = vmatprep.subr.bf16.mxu0 0
    %63 = vmatpush1.bf16.msra.mxu0 0
    %64 = vmatprep.subr.bf16.mxu0 0
    %65 = vmatpush1.bf16.msra.mxu0 0
    %66 = vmatprep.subr.bf16.mxu0 0
    %67 = vmatpush1.bf16.msra.mxu0 0
    %68 = vmatprep.subr.bf16.mxu0 0
    %69 = vmatpush1.bf16.msra.mxu0 0
    %70 = vmatprep.subr.bf16.mxu0 0
    %71 = vmatpush1.bf16.msra.mxu0 0
    %72 = vmatprep.subr.bf16.mxu0 0
    %73 = vmatpush1.bf16.msra.mxu0 0
    %74 = vmatprep.subr.bf16.mxu0 0
    %75 = vmatpush1.bf16.msra.mxu0 0
    %76 = vmatprep.subr.bf16.mxu0 0
    %77 = vmatpush1.bf16.msra.mxu0 0
    %78 = vmatprep.subr.bf16.mxu0 0
    %79 = vmatpush1.bf16.msra.mxu0 0
    %80 = vmatprep.subr.bf16.mxu0 0
    %81 = vmatpush1.bf16.msra.mxu0 0
    %82 = vmatprep.subr.bf16.mxu0 0
    %83 = vmatpush1.bf16.msra.mxu0 0
    %84 = vmatprep.mubr.bf16.mxu0 0
    %85 = vmatmul.mubr.bf16.gmra.mrb[0].mxu0 %v47
    %v86 = vpop.f32.mrb[0].mxu0
    %v87 = vadd.f32 %v31, %v86
    %v88 = vpop.f32.mrb[0].mxu0
    %v89 = vpop.f32.mrb[0].mxu0
    %v90 = vadd.f32 %v31, %v89
    %v91 = vpop.f32.mrb[0].mxu0
    %92 = vmatprep.mubr.bf16.mxu0 0
    %93 = vmatmul.mubr.bf16.gmra.mrb[0].mxu0 %v50
    %v94 = vpop.f32.mrb[0].mxu0
    %v95 = vadd.f32 %v31, %v94
    %v96 = vpop.f32.mrb[0].mxu0
    %v97 = vpop.f32.mrb[0].mxu0
    %v98 = vadd.f32 %v31, %v97
    %v99 = vpop.f32.mrb[0].mxu0
    %100 = vdwg.mxu0
    %101 = vst [vmem:[#allocation2] sm:$0xff] %v87
    %102 = vst [vmem:[#allocation2 + $0x8] sm:$0xff] %v90
    %103 = vst [vmem:[#allocation2 + $0x10] sm:$0xff] %v95
    %104 = vst [vmem:[#allocation2 + $0x18] sm:$0xff] %v98
    // Predicated region
    $region14: #{_lambda_.3} parent=1 // pred_check
      _
    $region15: #{_lambda_.3} parent=1 // pred_check_branch
      %106 = sbr.rel (0) target = $region17
    $region16: #{_lambda_.3} parent=1 // pred_region
      %s108 = ssub.s32 512, 512
      %109 = vsyncadd [#allocation3], %s108
      %s110 = sshll.u32 [#allocation2], 4
      %s111 = int_to_ptr.vmem [resolvable:$true] %s110
      %116 = dma.vmem_to_hbm [thread:$0]  %s111, 512, %s3, [#allocation3], 128, 128, 8
    $region17: #{_lambda_.3} parent=1 // pred_fallthru
      _
    // Predicated region
    $region18: #{_lambda_.3} parent=1 // pred_check
      _
    $region19: #{_lambda_.3} parent=1 // pred_check_branch
      %118 = sbr.rel (0) target = $region21
    $region20: #{_lambda_.3} parent=1 // pred_region
      %119 = dma.done [#allocation3], 512
    $region21: #{_lambda_.3} parent=1 // pred_fallthru
      _
    %120 = vsyncpa [#allocation3], 1

// kernel: _lambda_.2
$region0: #{_lambda_.2}
  #allocation0 [shape = 'u32[]', space=smem, size = 0x4, offset = 0x4, fixed_abs, tag = 'smem constant byte address 0x4 - core index']
  #allocation1 [shape = 'u32[144,128]{1,0:T(1,128)}', space=vmem, size = 0x12000, scoped, tag = 'internal scratch']
  %s0 = inlined_call_operand.vmem [shape: f32[32,32], index: 0, kind: input, shape index: {}]
  %s1 = inlined_call_operand.vmem [shape: bf16[8,32,16], index: 1, kind: input, shape index: {}]
  %s2 = inlined_call_operand.hbm [shape: f32[8,1,16], index: 2, kind: input, shape index: {}]
  %s3 = inlined_call_operand.vmem [shape: f32[8,1,16], index: 3, kind: input, shape index: {}, may-alias: {3,7}]
  %s4 = inlined_call_operand.vmem [shape: f32[8,1,16], index: 4, kind: input, shape index: {}, may-alias: {4,8}]
  %s5 = inlined_call_operand.vmem [shape: bf16[8,48,16], index: 5, kind: input, shape index: {}]
  %s6 = inlined_call_operand.hbm [shape: f32[8,1,16], index: 6, kind: input, shape index: {}]
  %s7 = inlined_call_operand.vmem [shape: f32[8,1,16], index: 7, kind: input, shape index: {}, may-alias: {3,7}]
  %s8 = inlined_call_operand.vmem [shape: f32[8,1,16], index: 8, kind: input, shape index: {}, may-alias: {4,8}]
  %s9 = inlined_call_operand.hbm [shape: bf16[8,16,32], index: 9, kind: input, shape index: {}]
  %s10 = inlined_call_operand.vmem [shape: f32[8,1,32], index: 10, kind: input, shape index: {}]
  %s11 = inlined_call_operand.vmem [shape: f32[32,32], index: 11, kind: output, shape index: {}]
  %s12 = sld [smem:[#allocation0]]
  $region66: #{_lambda_.2} parent=0
    _
  %s14 = ssub.s32 1, %s12
  %s15 = scalar_select 0, %s14, %s12
  $region1: #{_lambda_.2} parent=0
    #allocation2 [shape = 'u8[4096]{0}', space=vmem, size = 0x1000, scoped, tag = 'input window, operand 2, single buffered']
    #allocation3 [shape = 's32[1]{0}', space=sflag, size = 0x4, scoped, tag = 'scoped memory for _lambda_.2']
    #allocation4 [shape = 'u8[4096]{0}', space=vmem, size = 0x1000, scoped, tag = 'input window, operand 6, single buffered']
    #allocation5 [shape = 's32[1]{0}', space=sflag, size = 0x4, scoped, tag = 'scoped memory for _lambda_.2']
    #allocation6 [shape = 'u8[32768]{0}', space=vmem, size = 0x8000, scoped, tag = 'input window, operand 9, single buffered']
    %16 = vsyncpa [#allocation3], 0
    %17 = vsyncpa [#allocation5], 0
    // Predicated region
    $region2: #{_lambda_.2} parent=1 // pred_check
      _
    $region3: #{_lambda_.2} parent=1 // pred_check_branch
      %19 = sbr.rel (0) target = $region5
    $region4: #{_lambda_.2} parent=1 // pred_region
      _
    $region5: #{_lambda_.2} parent=1 // pred_fallthru
      _
    // Predicated region
    $region6: #{_lambda_.2} parent=1 // pred_check
      _
    $region7: #{_lambda_.2} parent=1 // pred_check_branch
      %21 = sbr.rel (0) target = $region9
    $region8: #{_lambda_.2} parent=1 // pred_region
      _
    $region9: #{_lambda_.2} parent=1 // pred_fallthru
      _
    // Predicated region
    $region10: #{_lambda_.2} parent=1 // pred_check
      _
    $region11: #{_lambda_.2} parent=1 // pred_check_branch
      %23 = sbr.rel (0) target = $region13
    $region12: #{_lambda_.2} parent=1 // pred_region
      %s25 = ssub.s32 128, 128
      %26 = vsyncadd [#allocation3], %s25
      %s27 = sshll.u32 [#allocation2], 4
      %s28 = int_to_ptr.vmem [resolvable:$true] %s27
      %33 = dma.hbm_to_vmem [thread:$0]  %s2, 128, %s28, [#allocation3], 16, 16, 1
    $region13: #{_lambda_.2} parent=1 // pred_fallthru
      _
    // Predicated region
    $region14: #{_lambda_.2} parent=1 // pred_check
      _
    $region15: #{_lambda_.2} parent=1 // pred_check_branch
      %35 = sbr.rel (0) target = $region17
    $region16: #{_lambda_.2} parent=1 // pred_region
      _
    $region17: #{_lambda_.2} parent=1 // pred_fallthru
      _
    // Predicated region
    $region18: #{_lambda_.2} parent=1 // pred_check
      _
    $region19: #{_lambda_.2} parent=1 // pred_check_branch
      %37 = sbr.rel (0) target = $region21
    $region20: #{_lambda_.2} parent=1 // pred_region
      _
    $region21: #{_lambda_.2} parent=1 // pred_fallthru
      _
    // Predicated region
    $region22: #{_lambda_.2} parent=1 // pred_check
      _
    $region23: #{_lambda_.2} parent=1 // pred_check_branch
      %39 = sbr.rel (0) target = $region25
    $region24: #{_lambda_.2} parent=1 // pred_region
      _
    $region25: #{_lambda_.2} parent=1 // pred_fallthru
      _
    // Predicated region
    $region26: #{_lambda_.2} parent=1 // pred_check
      _
    $region27: #{_lambda_.2} parent=1 // pred_check_branch
      %41 = sbr.rel (0) target = $region29
    $region28: #{_lambda_.2} parent=1 // pred_region
      %s43 = ssub.s32 128, 128
      %44 = vsyncadd [#allocation5], %s43
      %s45 = sshll.u32 [#allocation4], 4
      %s46 = int_to_ptr.vmem [resolvable:$true] %s45
      %51 = dma.hbm_to_vmem [thread:$0]  %s6, 128, %s46, [#allocation5], 16, 16, 1
    $region29: #{_lambda_.2} parent=1 // pred_fallthru
      _
    // Predicated region
    $region30: #{_lambda_.2} parent=1 // pred_check
      _
    $region31: #{_lambda_.2} parent=1 // pred_check_branch
      %53 = sbr.rel (0) target = $region33
    $region32: #{_lambda_.2} parent=1 // pred_region
      _
    $region33: #{_lambda_.2} parent=1 // pred_fallthru
      _
    // Predicated region
    $region34: #{_lambda_.2} parent=1 // pred_check
      _
    $region35: #{_lambda_.2} parent=1 // pred_check_branch
      %55 = sbr.rel (0) target = $region37
    $region36: #{_lambda_.2} parent=1 // pred_region
      _
    $region37: #{_lambda_.2} parent=1 // pred_fallthru
      _
    // Predicated region
    $region38: #{_lambda_.2} parent=1 // pred_check
      _
    $region39: #{_lambda_.2} parent=1 // pred_check_branch
      %57 = sbr.rel (0) target = $region41
    $region40: #{_lambda_.2} parent=1 // pred_region
      %s59 = ssub.s32 1024, 1024
      %60 = vsyncadd [#allocation5], %s59
      %s61 = sshll.u32 [#allocation6], 4
      %s62 = int_to_ptr.vmem [resolvable:$true] %s61
      %67 = dma.hbm_to_vmem [thread:$0]  %s9, 1024, %s62, [#allocation5], 64, 64, 4
    $region41: #{_lambda_.2} parent=1 // pred_fallthru
      _
    // Predicated region
    $region42: #{_lambda_.2} parent=1 // pred_check
      _
    $region43: #{_lambda_.2} parent=1 // pred_check_branch
      %69 = sbr.rel (0) target = $region45
    $region44: #{_lambda_.2} parent=1 // pred_region
      _
    $region45: #{_lambda_.2} parent=1 // pred_fallthru
      _
    // Predicated region
    $region46: #{_lambda_.2} parent=1 // pred_check
      _
    $region47: #{_lambda_.2} parent=1 // pred_check_branch
      %71 = sbr.rel (0) target = $region49
    $region48: #{_lambda_.2} parent=1 // pred_region
      %72 = dma.done [#allocation3], 128
    $region49: #{_lambda_.2} parent=1 // pred_fallthru
      _
    // Predicated region
    $region50: #{_lambda_.2} parent=1 // pred_check
      _
    $region51: #{_lambda_.2} parent=1 // pred_check_branch
      %74 = sbr.rel (0) target = $region53
    $region52: #{_lambda_.2} parent=1 // pred_region
      %75 = dma.done [#allocation5], 128
    $region53: #{_lambda_.2} parent=1 // pred_fallthru
      _
    // Predicated region
    $region54: #{_lambda_.2} parent=1 // pred_check
      _
    $region55: #{_lambda_.2} parent=1 // pred_check_branch
      %77 = sbr.rel (0) target = $region57
    $region56: #{_lambda_.2} parent=1 // pred_region
      %78 = dma.done [#allocation5], 1024
    $region57: #{_lambda_.2} parent=1 // pred_fallthru
      _
    %v80 = vld [vmem:[%s0] sm:$0xff]
    %v81 = vld [vmem:[%s0 + $0x8] sm:$0xff]
    %v82 = vld [vmem:[%s0 + $0x10] sm:$0xff]
    %v83 = vld [vmem:[%s0 + $0x18] sm:$0xff]
    %v84 = vlaneseq
    %v85 = vshrl.u32 %v84, 7
    %v86 = vadd.s32 %v85, 8
    %v87 = vadd.s32 %v85, 16
    %v88 = vadd.s32 %v85, 24
    %vm89 = vcmp.lt.s32.totalorder %v85, 0
    %v90 = vsub.s32 0, %v85
    %v91 = vsel %vm89, %v90, %v85
    %v92 = vshrl.u32 %v91, 4
    %v93 = vand.u32 %v91, 15
    %v94 = vsub.s32 0, %v93
    %v95 = vsel %vm89, %v94, %v93
    %vm96 = vcmp.lt.s32.totalorder %v86, 0
    %v97 = vsub.s32 0, %v86
    %v98 = vsel %vm96, %v97, %v86
    %v99 = vshrl.u32 %v98, 4
    %v100 = vand.u32 %v98, 15
    %v101 = vsub.s32 0, %v100
    %v102 = vsel %vm96, %v101, %v100
    %vm103 = vcmp.lt.s32.totalorder %v87, 0
    %v104 = vsub.s32 0, %v87
    %v105 = vsel %vm103, %v104, %v87
    %v106 = vshrl.u32 %v105, 4
    %v107 = vand.u32 %v105, 15
    %v108 = vsub.s32 0, %v107
    %v109 = vsel %vm103, %v108, %v107
    %vm110 = vcmp.lt.s32.totalorder %v88, 0
    %v111 = vsub.s32 0, %v88
    %v112 = vsel %vm110, %v111, %v88
    %v113 = vshrl.u32 %v112, 4
    %v114 = vand.u32 %v112, 15
    %v115 = vsub.s32 0, %v114
    %v116 = vsel %vm110, %v115, %v114
    %vm117 = vcmp.ne.s32.totalorder %v95, 0
    %vm118 = vcmp.ne.s32.totalorder %v102, 0
    %vm119 = vcmp.ne.s32.totalorder %v109, 0
    %vm120 = vcmp.ne.s32.totalorder %v116, 0
    %vm121 = vcmp.lt.s32.totalorder %v95, 0
    %vm122 = vcmp.lt.s32.totalorder %v102, 0
    %vm123 = vcmp.lt.s32.totalorder %v109, 0
    %vm124 = vcmp.lt.s32.totalorder %v116, 0
    %vm125 = vmand %vm121, %vm117
    %vm126 = vmand %vm122, %vm118
    %vm127 = vmand %vm123, %vm119
    %vm128 = vmand %vm124, %vm120
    %v129 = vadd.s32 %v95, 16
    %v130 = vadd.s32 %v102, 16
    %v131 = vadd.s32 %v109, 16
    %v132 = vadd.s32 %v116, 16
    %v133 = vsel %vm125, %v129, %v95
    %v134 = vsel %vm126, %v130, %v102
    %v135 = vsel %vm127, %v131, %v109
    %v136 = vsel %vm128, %v132, %v116
    %vm137 = vcmp.ge.f32.partialorder %v80, 0.0
    %vm138 = vcmp.ge.f32.partialorder %v81, 0.0
    %vm139 = vcmp.ge.f32.partialorder %v82, 0.0
    %vm140 = vcmp.ge.f32.partialorder %v83, 0.0
    %v141 = vmul.f32 %v80, 0.01
    %v142 = vmul.f32 %v81, 0.01
    %v143 = vmul.f32 %v82, 0.01
    %v144 = vmul.f32 %v83, 0.01
    %v145 = vsel %vm137, %v80, %v141
    %v146 = vsel %vm138, %v81, %v142
    %v147 = vsel %vm139, %v82, %v143
    %v148 = vsel %vm140, %v83, %v144
    %v149 = vpack.c.bf16 %v146, %v145
    %v150 = vpack.c.bf16 %v148, %v147
    %v151 = vld [vmem:[%s1] sm:$0xf]
    %v152 = vld [vmem:[%s1 + $0x4] sm:$0xf]
    %v153 = vld [vmem:[%s1 + $0x8] sm:$0xf]
    %v154 = vld [vmem:[%s1 + $0xc] sm:$0xf]
    %v155 = vld [vmem:[#allocation2] sm:$0x1]
    %v157 = vlaneseq
    %v158 = vshrl.u32 %v157, 7
    %v159 = vsub.s32 0, %v158
    %v160 = vrot.slane %v155, %v159
    %v166 = vunpack.c.l.b16 %v151
    %v167 = vunpack.c.l.b16 %v152
    %v168 = vunpack.c.l.b16 %v153
    %v169 = vunpack.c.l.b16 %v154
    %v170 = vpack.c.b16 %v167, %v166
    %v171 = vpack.c.b16 %v169, %v168
    %vm174 = vcmask 261120
    %v176 = vsel %vm174, %v149, 0
    %v179 = vsel %vm174, %v150, 0
    %181 = vmatprep.subr.bf16.mxu0 0
    %182 = vmatpush1.bf16.msra.mxu0 %v170
    %183 = vmatprep.subr.bf16.mxu0 0
    %184 = vmatpush1.bf16.msra.mxu0 %v171
    %185 = vmatprep.subr.bf16.mxu0 0
    %186 = vmatpush1.bf16.msra.mxu0 0
    %187 = vmatprep.subr.bf16.mxu0 0
    %188 = vmatpush1.bf16.msra.mxu0 0
    %189 = vmatprep.subr.bf16.mxu0 0
    %190 = vmatpush1.bf16.msra.mxu0 0
    %191 = vmatprep.subr.bf16.mxu0 0
    %192 = vmatpush1.bf16.msra.mxu0 0
    %193 = vmatprep.subr.bf16.mxu0 0
    %194 = vmatpush1.bf16.msra.mxu0 0
    %195 = vmatprep.subr.bf16.mxu0 0
    %196 = vmatpush1.bf16.msra.mxu0 0
    %197 = vmatprep.subr.bf16.mxu0 0
    %198 = vmatpush1.bf16.msra.mxu0 0
    %199 = vmatprep.subr.bf16.mxu0 0
    %200 = vmatpush1.bf16.msra.mxu0 0
    %201 = vmatprep.subr.bf16.mxu0 0
    %202 = vmatpush1.bf16.msra.mxu0 0
    %203 = vmatprep.subr.bf16.mxu0 0
    %204 = vmatpush1.bf16.msra.mxu0 0
    %205 = vmatprep.subr.bf16.mxu0 0
    %206 = vmatpush1.bf16.msra.mxu0 0
    %207 = vmatprep.subr.bf16.mxu0 0
    %208 = vmatpush1.bf16.msra.mxu0 0
    %209 = vmatprep.subr.bf16.mxu0 0
    %210 = vmatpush1.bf16.msra.mxu0 0
    %211 = vmatprep.subr.bf16.mxu0 0
    %212 = vmatpush1.bf16.msra.mxu0 0
    %213 = vmatprep.mubr.bf16.mxu0 0
    %214 = vmatmul.mubr.bf16.gmra.mrb[0].mxu0 %v176
    %v215 = vpop.f32.mrb[0].mxu0
    %v216 = vadd.f32 %v160, %v215
    %v217 = vpop.f32.mrb[0].mxu0
    %v218 = vpop.f32.mrb[0].mxu0
    %v219 = vadd.f32 %v160, %v218
    %v220 = vpop.f32.mrb[0].mxu0
    %221 = vmatprep.mubr.bf16.mxu0 0
    %222 = vmatmul.mubr.bf16.gmra.mrb[0].mxu0 %v179
    %v223 = vpop.f32.mrb[0].mxu0
    %v224 = vadd.f32 %v160, %v223
    %v225 = vpop.f32.mrb[0].mxu0
    %v226 = vpop.f32.mrb[0].mxu0
    %v227 = vadd.f32 %v160, %v226
    %v228 = vpop.f32.mrb[0].mxu0
    %229 = vdwg.mxu0
    %v230 = vld [vmem:[%s3] sm:$0x1]
    %v231 = vld [vmem:[%s4] sm:$0x1]
    %vm232 = vcmask 130048
    %v233 = vsel %vm232, %v216, 0.0
    %234 = vadd.xlane.f32.xlu0 %v233
    %v235 = vpop.xlane.xlu0 %234
    %v236 = vsel %vm232, %v219, 0.0
    %237 = vadd.xlane.f32.xlu0 %v236
    %v238 = vpop.xlane.xlu0 %237
    %v239 = vsel %vm232, %v224, 0.0
    %240 = vadd.xlane.f32.xlu0 %v239
    %v241 = vpop.xlane.xlu0 %240
    %v242 = vsel %vm232, %v227, 0.0
    %243 = vadd.xlane.f32.xlu0 %v242
    %v244 = vpop.xlane.xlu0 %243
    %v245 = vrcp.pop 16.0
    %v246 = vmul.f32 %v235, %v245
    %v247 = vmul.f32 %v238, %v245
    %v248 = vmul.f32 %v241, %v245
    %v249 = vmul.f32 %v244, %v245
    %v250 = vsub.f32 %v216, %v246
    %v251 = vsub.f32 %v219, %v247
    %v252 = vsub.f32 %v224, %v248
    %v253 = vsub.f32 %v227, %v249
    %v254 = vmul.f32 %v250, %v250
    %v255 = vmul.f32 %v251, %v251
    %v256 = vmul.f32 %v252, %v252
    %v257 = vmul.f32 %v253, %v253
    %v258 = vsel %vm232, %v254, 0.0
    %259 = vadd.xlane.f32.xlu0 %v258
    %v260 = vpop.xlane.xlu0 %259
    %v261 = vsel %vm232, %v255, 0.0
    %262 = vadd.xlane.f32.xlu0 %v261
    %v263 = vpop.xlane.xlu0 %262
    %v264 = vsel %vm232, %v256, 0.0
    %265 = vadd.xlane.f32.xlu0 %v264
    %v266 = vpop.xlane.xlu0 %265
    %v267 = vsel %vm232, %v257, 0.0
    %268 = vadd.xlane.f32.xlu0 %v267
    %v269 = vpop.xlane.xlu0 %268
    %v270 = vmul.f32 %v260, %v245
    %v271 = vmul.f32 %v263, %v245
    %v272 = vmul.f32 %v266, %v245
    %v273 = vmul.f32 %v269, %v245
    %v274 = vadd.f32 %v270, 1e-05
    %v275 = vadd.f32 %v271, 1e-05
    %v276 = vadd.f32 %v272, 1e-05
    %v277 = vadd.f32 %v273, 1e-05
    %v278 = vrsqrt.pop %v274
    %v279 = vrsqrt.pop %v275
    %v280 = vrsqrt.pop %v276
    %v281 = vrsqrt.pop %v277
    %v282 = vmul.f32 %v250, %v278
    %v283 = vmul.f32 %v251, %v279
    %v284 = vmul.f32 %v252, %v280
    %v285 = vmul.f32 %v253, %v281
    %v287 = vlaneseq
    %v288 = vshrl.u32 %v287, 7
    %v289 = vsub.s32 0, %v288
    %v290 = vrot.slane %v230, %v289
    %v292 = vmul.f32 %v282, %v290
    %v293 = vmul.f32 %v283, %v290
    %v294 = vmul.f32 %v284, %v290
    %v295 = vmul.f32 %v285, %v290
    %v297 = vlaneseq
    %v298 = vshrl.u32 %v297, 7
    %v299 = vsub.s32 0, %v298
    %v300 = vrot.slane %v231, %v299
    %v302 = vadd.f32 %v292, %v300
    %v303 = vadd.f32 %v293, %v300
    %v304 = vadd.f32 %v294, %v300
    %v305 = vadd.f32 %v295, %v300
    %vm306 = vcmp.ge.f32.partialorder %v302, 0.0
    %vm307 = vcmp.ge.f32.partialorder %v303, 0.0
    %vm308 = vcmp.ge.f32.partialorder %v304, 0.0
    %vm309 = vcmp.ge.f32.partialorder %v305, 0.0
    %v310 = vmul.f32 %v302, 0.01
    %v311 = vmul.f32 %v303, 0.01
    %v312 = vmul.f32 %v304, 0.01
    %v313 = vmul.f32 %v305, 0.01
    %v314 = vsel %vm306, %v302, %v310
    %v315 = vsel %vm307, %v303, %v311
    %v316 = vsel %vm308, %v304, %v312
    %v317 = vsel %vm309, %v305, %v313
    %vm322 = vcmask 1041408
    %v323 = vrot.slane %v314, 6
    %v324 = vrot.slane %v315, 6
    %v325 = vsel %vm322, %v323, %v324
    %v326 = vrot.slane %v316, 6
    %v327 = vsel %vm322, %v324, %v326
    %v328 = vrot.slane %v317, 6
    %v329 = vsel %vm322, %v326, %v328
    %v334 = vsel %vm322, 0.0, %v323
    %vm335 = vcmp.ge.s32.totalorder %v133, 2
    %vm336 = vcmp.ge.s32.totalorder %v134, 2
    %vm337 = vcmp.ge.s32.totalorder %v135, 2
    %vm338 = vcmp.ge.s32.totalorder %v136, 2
    %v339 = vsel %vm335, 1, 0
    %v340 = vsel %vm336, 1, 0
    %v341 = vsel %vm337, 1, 0
    %v342 = vsel %vm338, 1, 0
    %vm343 = vcmp.eq.s32.totalorder %v339, 1
    %vm344 = vcmp.eq.s32.totalorder %v340, 1
    %vm345 = vcmp.eq.s32.totalorder %v341, 1
    %vm346 = vcmp.eq.s32.totalorder %v342, 1
    %v347 = vsel %vm343, %v334, 0.0
    %v348 = vsel %vm344, %v325, 0.0
    %v349 = vsel %vm345, %v327, 0.0
    %v350 = vsel %vm346, %v329, 0.0
    %vm351 = vcmask 1040384
    %v352 = vrot.slane %v314, 7
    %v353 = vrot.slane %v315, 7
    %v354 = vsel %vm351, %v352, %v353
    %v355 = vrot.slane %v316, 7
    %v356 = vsel %vm351, %v353, %v355
    %v357 = vrot.slane %v317, 7
    %v358 = vsel %vm351, %v355, %v357
    %v363 = vsel %vm351, 0.0, %v352
    %vm364 = vcmp.ge.s32.totalorder %v133, 1
    %vm365 = vcmp.ge.s32.totalorder %v134, 1
    %vm366 = vcmp.ge.s32.totalorder %v135, 1
    %vm367 = vcmp.ge.s32.totalorder %v136, 1
    %v368 = vsel %vm364, 1, 0
    %v369 = vsel %vm365, 1, 0
    %v370 = vsel %vm366, 1, 0
    %v371 = vsel %vm367, 1, 0
    %vm372 = vcmp.eq.s32.totalorder %v368, 1
    %vm373 = vcmp.eq.s32.totalorder %v369, 1
    %vm374 = vcmp.eq.s32.totalorder %v370, 1
    %vm375 = vcmp.eq.s32.totalorder %v371, 1
    %v376 = vsel %vm372, %v363, 0.0
    %v377 = vsel %vm373, %v354, 0.0
    %v378 = vsel %vm374, %v356, 0.0
    %v379 = vsel %vm375, %v358, 0.0
    %384 = vrot.lane.b32.xlu0 %v376, 16
    %v385 = vpop.permute.xlu0 %384
    %386 = vrot.lane.b32.xlu0 %v377, 16
    %v387 = vpop.permute.xlu0 %386
    %388 = vrot.lane.b32.xlu0 %v378, 16
    %v389 = vpop.permute.xlu0 %388
    %390 = vrot.lane.b32.xlu0 %v379, 16
    %v391 = vpop.permute.xlu0 %390
    %396 = vrot.lane.b32.xlu0 %v314, 32
    %v397 = vpop.permute.xlu0 %396
    %398 = vrot.lane.b32.xlu0 %v315, 32
    %v399 = vpop.permute.xlu0 %398
    %400 = vrot.lane.b32.xlu0 %v316, 32
    %v401 = vpop.permute.xlu0 %400
    %402 = vrot.lane.b32.xlu0 %v317, 32
    %v403 = vpop.permute.xlu0 %402
    %v408 = vsel %vm232, %v347, %v385
    %v409 = vsel %vm232, %v348, %v387
    %v410 = vsel %vm232, %v349, %v389
    %v411 = vsel %vm232, %v350, %v391
    %v412 = vsel %vm174, %v408, %v397
    %v413 = vsel %vm174, %v409, %v399
    %v414 = vsel %vm174, %v410, %v401
    %v415 = vsel %vm174, %v411, %v403
    %v416 = vpack.c.bf16 %v413, %v412
    %v417 = vpack.c.bf16 %v415, %v414
    %v418 = vld [vmem:[%s5] sm:$0xf]
    %v419 = vld [vmem:[%s5 + $0x4] sm:$0xf]
    %v420 = vld [vmem:[%s5 + $0x8] sm:$0xf]
    %v421 = vld [vmem:[%s5 + $0xc] sm:$0xf]
    %v422 = vld [vmem:[%s5 + $0x10] sm:$0xf]
    %v423 = vld [vmem:[%s5 + $0x14] sm:$0xf]
    %v424 = vld [vmem:[#allocation4] sm:$0x1]
    %v426 = vlaneseq
    %v427 = vshrl.u32 %v426, 7
    %v428 = vsub.s32 0, %v427
    %v429 = vrot.slane %v424, %v428
    %v437 = vunpack.c.l.b16 %v418
    %v438 = vunpack.c.l.b16 %v419
    %v439 = vunpack.c.l.b16 %v420
    %v440 = vunpack.c.l.b16 %v421
    %v441 = vunpack.c.l.b16 %v422
    %v442 = vunpack.c.l.b16 %v423
    %v443 = vpack.c.b16 %v438, %v437
    %v444 = vpack.c.b16 %v440, %v439
    %v445 = vpack.c.b16 %v442, %v441
    %vm449 = vcmask 392192
    %v451 = vsel %vm449, %v416, 0
    %v454 = vsel %vm449, %v417, 0
    %456 = vmatprep.subr.bf16.mxu0 0
    %457 = vmatpush1.bf16.msra.mxu0 %v443
    %458 = vmatprep.subr.bf16.mxu0 0
    %459 = vmatpush1.bf16.msra.mxu0 %v444
    %460 = vmatprep.subr.bf16.mxu0 0
    %461 = vmatpush1.bf16.msra.mxu0 %v445
    %462 = vmatprep.subr.bf16.mxu0 0
    %463 = vmatpush1.bf16.msra.mxu0 0
    %464 = vmatprep.subr.bf16.mxu0 0
    %465 = vmatpush1.bf16.msra.mxu0 0
    %466 = vmatprep.subr.bf16.mxu0 0
    %467 = vmatpush1.bf16.msra.mxu0 0
    %468 = vmatprep.subr.bf16.mxu0 0
    %469 = vmatpush1.bf16.msra.mxu0 0
    %470 = vmatprep.subr.bf16.mxu0 0
    %471 = vmatpush1.bf16.msra.mxu0 0
    %472 = vmatprep.subr.bf16.mxu0 0
    %473 = vmatpush1.bf16.msra.mxu0 0
    %474 = vmatprep.subr.bf16.mxu0 0
    %475 = vmatpush1.bf16.msra.mxu0 0
    %476 = vmatprep.subr.bf16.mxu0 0
    %477 = vmatpush1.bf16.msra.mxu0 0
    %478 = vmatprep.subr.bf16.mxu0 0
    %479 = vmatpush1.bf16.msra.mxu0 0
    %480 = vmatprep.subr.bf16.mxu0 0
    %481 = vmatpush1.bf16.msra.mxu0 0
    %482 = vmatprep.subr.bf16.mxu0 0
    %483 = vmatpush1.bf16.msra.mxu0 0
    %484 = vmatprep.subr.bf16.mxu0 0
    %485 = vmatpush1.bf16.msra.mxu0 0
    %486 = vmatprep.subr.bf16.mxu0 0
    %487 = vmatpush1.bf16.msra.mxu0 0
    %488 = vmatprep.mubr.bf16.mxu0 0
    %489 = vmatmul.mubr.bf16.gmra.mrb[0].mxu0 %v451
    %v490 = vpop.f32.mrb[0].mxu0
    %v491 = vadd.f32 %v429, %v490
    %v492 = vpop.f32.mrb[0].mxu0
    %v493 = vpop.f32.mrb[0].mxu0
    %v494 = vadd.f32 %v429, %v493
    %v495 = vpop.f32.mrb[0].mxu0
    %496 = vmatprep.mubr.bf16.mxu0 0
    %497 = vmatmul.mubr.bf16.gmra.mrb[0].mxu0 %v454
    %v498 = vpop.f32.mrb[0].mxu0
    %v499 = vadd.f32 %v429, %v498
    %v500 = vpop.f32.mrb[0].mxu0
    %v501 = vpop.f32.mrb[0].mxu0
    %v502 = vadd.f32 %v429, %v501
    %v503 = vpop.f32.mrb[0].mxu0
    %504 = vdwg.mxu0
    %v505 = vld [vmem:[%s7] sm:$0x1]
    %v506 = vld [vmem:[%s8] sm:$0x1]
    %v507 = vsel %vm232, %v491, 0.0
    %508 = vadd.xlane.f32.xlu0 %v507
    %v509 = vpop.xlane.xlu0 %508
    %v510 = vsel %vm232, %v494, 0.0
    %511 = vadd.xlane.f32.xlu0 %v510
    %v512 = vpop.xlane.xlu0 %511
    %v513 = vsel %vm232, %v499, 0.0
    %514 = vadd.xlane.f32.xlu0 %v513
    %v515 = vpop.xlane.xlu0 %514
    %v516 = vsel %vm232, %v502, 0.0
    %517 = vadd.xlane.f32.xlu0 %v516
    %v518 = vpop.xlane.xlu0 %517
    %v519 = vmul.f32 %v509, %v245
    %v520 = vmul.f32 %v512, %v245
    %v521 = vmul.f32 %v515, %v245
    %v522 = vmul.f32 %v518, %v245
    %v523 = vsub.f32 %v491, %v519
    %v524 = vsub.f32 %v494, %v520
    %v525 = vsub.f32 %v499, %v521
    %v526 = vsub.f32 %v502, %v522
    %v527 = vmul.f32 %v523, %v523
    %v528 = vmul.f32 %v524, %v524
    %v529 = vmul.f32 %v525, %v525
    %v530 = vmul.f32 %v526, %v526
    %v531 = vsel %vm232, %v527, 0.0
    %532 = vadd.xlane.f32.xlu0 %v531
    %v533 = vpop.xlane.xlu0 %532
    %v534 = vsel %vm232, %v528, 0.0
    %535 = vadd.xlane.f32.xlu0 %v534
    %v536 = vpop.xlane.xlu0 %535
    %v537 = vsel %vm232, %v529, 0.0
    %538 = vadd.xlane.f32.xlu0 %v537
    %v539 = vpop.xlane.xlu0 %538
    %v540 = vsel %vm232, %v530, 0.0
    %541 = vadd.xlane.f32.xlu0 %v540
    %v542 = vpop.xlane.xlu0 %541
    %v543 = vmul.f32 %v533, %v245
    %v544 = vmul.f32 %v536, %v245
    %v545 = vmul.f32 %v539, %v245
    %v546 = vmul.f32 %v542, %v245
    %v547 = vadd.f32 %v543, 1e-05
    %v548 = vadd.f32 %v544, 1e-05
    %v549 = vadd.f32 %v545, 1e-05
    %v550 = vadd.f32 %v546, 1e-05
    %v551 = vrsqrt.pop %v547
    %v552 = vrsqrt.pop %v548
    %v553 = vrsqrt.pop %v549
    %v554 = vrsqrt.pop %v550
    %v555 = vmul.f32 %v523, %v551
    %v556 = vmul.f32 %v524, %v552
    %v557 = vmul.f32 %v525, %v553
    %v558 = vmul.f32 %v526, %v554
    %v560 = vlaneseq
    %v561 = vshrl.u32 %v560, 7
    %v562 = vsub.s32 0, %v561
    %v563 = vrot.slane %v505, %v562
    %v565 = vmul.f32 %v555, %v563
    %v566 = vmul.f32 %v556, %v563
    %v567 = vmul.f32 %v557, %v563
    %v568 = vmul.f32 %v558, %v563
    %v570 = vlaneseq
    %v571 = vshrl.u32 %v570, 7
    %v572 = vsub.s32 0, %v571
    %v573 = vrot.slane %v506, %v572
    %v575 = vadd.f32 %v565, %v573
    %v576 = vadd.f32 %v566, %v573
    %v577 = vadd.f32 %v567, %v573
    %v578 = vadd.f32 %v568, %v573
    %vm579 = vcmp.ge.f32.partialorder %v575, 0.0
    %vm580 = vcmp.ge.f32.partialorder %v576, 0.0
    %vm581 = vcmp.ge.f32.partialorder %v577, 0.0
    %vm582 = vcmp.ge.f32.partialorder %v578, 0.0
    %v583 = vmul.f32 %v575, 0.01
    %v584 = vmul.f32 %v576, 0.01
    %v585 = vmul.f32 %v577, 0.01
    %v586 = vmul.f32 %v578, 0.01
    %v587 = vsel %vm579, %v575, %v583
    %v588 = vsel %vm580, %v576, %v584
    %v589 = vsel %vm581, %v577, %v585
    %v590 = vsel %vm582, %v578, %v586
    %v591 = vpack.c.bf16 %v588, %v587
    %v592 = vpack.c.bf16 %v590, %v589
    %v593 = vld [vmem:[#allocation6] sm:$0xf]
    %v594 = vld [vmem:[#allocation6 + $0x4] sm:$0xf]
    %v595 = vld [vmem:[%s10] sm:$0x1]
    %v597 = vlaneseq
    %v598 = vshrl.u32 %v597, 7
    %v599 = vsub.s32 0, %v598
    %v600 = vrot.slane %v595, %v599
    %v604 = vunpack.c.l.b16 %v593
    %v605 = vunpack.c.l.b16 %v594
    %v606 = vpack.c.b16 %v605, %v604
    %v609 = vsel %vm232, %v591, 0
    %v612 = vsel %vm232, %v592, 0
    %614 = vmatprep.subr.bf16.mxu0 0
    %615 = vmatpush1.bf16.msra.mxu0 %v606
    %616 = vmatprep.subr.bf16.mxu0 0
    %617 = vmatpush1.bf16.msra.mxu0 0
    %618 = vmatprep.subr.bf16.mxu0 0
    %619 = vmatpush1.bf16.msra.mxu0 0
    %620 = vmatprep.subr.bf16.mxu0 0
    %621 = vmatpush1.bf16.msra.mxu0 0
    %622 = vmatprep.subr.bf16.mxu0 0
    %623 = vmatpush1.bf16.msra.mxu0 0
    %624 = vmatprep.subr.bf16.mxu0 0
    %625 = vmatpush1.bf16.msra.mxu0 0
    %626 = vmatprep.subr.bf16.mxu0 0
    %627 = vmatpush1.bf16.msra.mxu0 0
    %628 = vmatprep.subr.bf16.mxu0 0
    %629 = vmatpush1.bf16.msra.mxu0 0
    %630 = vmatprep.subr.bf16.mxu0 0
    %631 = vmatpush1.bf16.msra.mxu0 0
    %632 = vmatprep.subr.bf16.mxu0 0
    %633 = vmatpush1.bf16.msra.mxu0 0
    %634 = vmatprep.subr.bf16.mxu0 0
    %635 = vmatpush1.bf16.msra.mxu0 0
    %636 = vmatprep.subr.bf16.mxu0 0
    %637 = vmatpush1.bf16.msra.mxu0 0
    %638 = vmatprep.subr.bf16.mxu0 0
    %639 = vmatpush1.bf16.msra.mxu0 0
    %640 = vmatprep.subr.bf16.mxu0 0
    %641 = vmatpush1.bf16.msra.mxu0 0
    %642 = vmatprep.subr.bf16.mxu0 0
    %643 = vmatpush1.bf16.msra.mxu0 0
    %644 = vmatprep.subr.bf16.mxu0 0
    %645 = vmatpush1.bf16.msra.mxu0 0
    %646 = vmatprep.mubr.bf16.mxu0 0
    %647 = vmatmul.mubr.bf16.gmra.mrb[0].mxu0 %v609
    %v648 = vpop.f32.mrb[0].mxu0
    %v649 = vadd.f32 %v600, %v648
    %v650 = vpop.f32.mrb[0].mxu0
    %v651 = vpop.f32.mrb[0].mxu0
    %v652 = vadd.f32 %v600, %v651
    %v653 = vpop.f32.mrb[0].mxu0
    %654 = vmatprep.mubr.bf16.mxu0 0
    %655 = vmatmul.mubr.bf16.gmra.mrb[0].mxu0 %v612
    %v656 = vpop.f32.mrb[0].mxu0
    %v657 = vadd.f32 %v600, %v656
    %v658 = vpop.f32.mrb[0].mxu0
    %v659 = vpop.f32.mrb[0].mxu0
    %v660 = vadd.f32 %v600, %v659
    %v661 = vpop.f32.mrb[0].mxu0
    %662 = vdwg.mxu0
    %v663 = vadd.f32 %v80, %v649
    %v664 = vadd.f32 %v81, %v652
    %v665 = vadd.f32 %v82, %v657
    %v666 = vadd.f32 %v83, %v660
    %vm667 = vcmp.ge.f32.partialorder %v663, 0.0
    %vm668 = vcmp.ge.f32.partialorder %v664, 0.0
    %vm669 = vcmp.ge.f32.partialorder %v665, 0.0
    %vm670 = vcmp.ge.f32.partialorder %v666, 0.0
    %v671 = vmul.f32 %v663, 0.01
    %v672 = vmul.f32 %v664, 0.01
    %v673 = vmul.f32 %v665, 0.01
    %v674 = vmul.f32 %v666, 0.01
    %v675 = vsel %vm667, %v663, %v671
    %v676 = vsel %vm668, %v664, %v672
    %v677 = vsel %vm669, %v665, %v673
    %v678 = vsel %vm670, %v666, %v674
    %v679 = vpack.c.bf16 %v676, %v675
    %v680 = vpack.c.bf16 %v678, %v677
    %s681 = scalar_lea.vmem %s1, 16
    %v682 = vld [vmem:[%s681] sm:$0xf]
    %v683 = vld [vmem:[%s681 + $0x4] sm:$0xf]
    %v684 = vld [vmem:[%s681 + $0x8] sm:$0xf]
    %v685 = vld [vmem:[%s681 + $0xc] sm:$0xf]
    %s686 = scalar_lea.vmem [#allocation2], 1
    %v687 = vld [vmem:[%s686] sm:$0x1]
    %v689 = vlaneseq
    %v690 = vshrl.u32 %v689, 7
    %v691 = vsub.s32 0, %v690
    %v692 = vrot.slane %v687, %v691
    %v698 = vunpack.c.l.b16 %v682
    %v699 = vunpack.c.l.b16 %v683
    %v700 = vunpack.c.l.b16 %v684
    %v701 = vunpack.c.l.b16 %v685
    %v702 = vpack.c.b16 %v699, %v698
    %v703 = vpack.c.b16 %v701, %v700
    %v707 = vsel %vm174, %v679, 0
    %v710 = vsel %vm174, %v680, 0
    %712 = vmatprep.subr.bf16.mxu0 0
    %713 = vmatpush1.bf16.msra.mxu0 %v702
    %714 = vmatprep.subr.bf16.mxu0 0
    %715 = vmatpush1.bf16.msra.mxu0 %v703
    %716 = vmatprep.subr.bf16.mxu0 0
    %717 = vmatpush1.bf16.msra.mxu0 0
    %718 = vmatprep.subr.bf16.mxu0 0
    %719 = vmatpush1.bf16.msra.mxu0 0
    %720 = vmatprep.subr.bf16.mxu0 0
    %721 = vmatpush1.bf16.msra.mxu0 0
    %722 = vmatprep.subr.bf16.mxu0 0
    %723 = vmatpush1.bf16.msra.mxu0 0
    %724 = vmatprep.subr.bf16.mxu0 0
    %725 = vmatpush1.bf16.msra.mxu0 0
    %726 = vmatprep.subr.bf16.mxu0 0
    %727 = vmatpush1.bf16.msra.mxu0 0
    %728 = vmatprep.subr.bf16.mxu0 0
    %729 = vmatpush1.bf16.msra.mxu0 0
    %730 = vmatprep.subr.bf16.mxu0 0
    %731 = vmatpush1.bf16.msra.mxu0 0
    %732 = vmatprep.subr.bf16.mxu0 0
    %733 = vmatpush1.bf16.msra.mxu0 0
    %734 = vmatprep.subr.bf16.mxu0 0
    %735 = vmatpush1.bf16.msra.mxu0 0
    %736 = vmatprep.subr.bf16.mxu0 0
    %737 = vmatpush1.bf16.msra.mxu0 0
    %738 = vmatprep.subr.bf16.mxu0 0
    %739 = vmatpush1.bf16.msra.mxu0 0
    %740 = vmatprep.subr.bf16.mxu0 0
    %741 = vmatpush1.bf16.msra.mxu0 0
    %742 = vmatprep.subr.bf16.mxu0 0
    %743 = vmatpush1.bf16.msra.mxu0 0
    %744 = vmatprep.mubr.bf16.mxu0 0
    %745 = vmatmul.mubr.bf16.gmra.mrb[0].mxu0 %v707
    %v746 = vpop.f32.mrb[0].mxu0
    %v747 = vadd.f32 %v692, %v746
    %v748 = vpop.f32.mrb[0].mxu0
    %v749 = vpop.f32.mrb[0].mxu0
    %v750 = vadd.f32 %v692, %v749
    %v751 = vpop.f32.mrb[0].mxu0
    %752 = vmatprep.mubr.bf16.mxu0 0
    %753 = vmatmul.mubr.bf16.gmra.mrb[0].mxu0 %v710
    %v754 = vpop.f32.mrb[0].mxu0
    %v755 = vadd.f32 %v692, %v754
    %v756 = vpop.f32.mrb[0].mxu0
    %v757 = vpop.f32.mrb[0].mxu0
    %v758 = vadd.f32 %v692, %v757
    %v759 = vpop.f32.mrb[0].mxu0
    %760 = vdwg.mxu0
    %s761 = scalar_lea.vmem %s3, 1
    %v762 = vld [vmem:[%s761] sm:$0x1]
    %s763 = scalar_lea.vmem %s4, 1
    %v764 = vld [vmem:[%s763] sm:$0x1]
    %v765 = vsel %vm232, %v747, 0.0
    %766 = vadd.xlane.f32.xlu0 %v765
    %v767 = vpop.xlane.xlu0 %766
    %v768 = vsel %vm232, %v750, 0.0
    %769 = vadd.xlane.f32.xlu0 %v768
    %v770 = vpop.xlane.xlu0 %769
    %v771 = vsel %vm232, %v755, 0.0
    %772 = vadd.xlane.f32.xlu0 %v771
    %v773 = vpop.xlane.xlu0 %772
    %v774 = vsel %vm232, %v758, 0.0
    %775 = vadd.xlane.f32.xlu0 %v774
    %v776 = vpop.xlane.xlu0 %775
    %v777 = vmul.f32 %v767, %v245
    %v778 = vmul.f32 %v770, %v245
    %v779 = vmul.f32 %v773, %v245
    %v780 = vmul.f32 %v776, %v245
    %v781 = vsub.f32 %v747, %v777
    %v782 = vsub.f32 %v750, %v778
    %v783 = vsub.f32 %v755, %v779
    %v784 = vsub.f32 %v758, %v780
    %v785 = vmul.f32 %v781, %v781
    %v786 = vmul.f32 %v782, %v782
    %v787 = vmul.f32 %v783, %v783
    %v788 = vmul.f32 %v784, %v784
    %v789 = vsel %vm232, %v785, 0.0
    %790 = vadd.xlane.f32.xlu0 %v789
    %v791 = vpop.xlane.xlu0 %790
    %v792 = vsel %vm232, %v786, 0.0
    %793 = vadd.xlane.f32.xlu0 %v792
    %v794 = vpop.xlane.xlu0 %793
    %v795 = vsel %vm232, %v787, 0.0
    %796 = vadd.xlane.f32.xlu0 %v795
    %v797 = vpop.xlane.xlu0 %796
    %v798 = vsel %vm232, %v788, 0.0
    %799 = vadd.xlane.f32.xlu0 %v798
    %v800 = vpop.xlane.xlu0 %799
    %v801 = vmul.f32 %v791, %v245
    %v802 = vmul.f32 %v794, %v245
    %v803 = vmul.f32 %v797, %v245
    %v804 = vmul.f32 %v800, %v245
    %v805 = vadd.f32 %v801, 1e-05
    %v806 = vadd.f32 %v802, 1e-05
    %v807 = vadd.f32 %v803, 1e-05
    %v808 = vadd.f32 %v804, 1e-05
    %v809 = vrsqrt.pop %v805
    %v810 = vrsqrt.pop %v806
    %v811 = vrsqrt.pop %v807
    %v812 = vrsqrt.pop %v808
    %v813 = vmul.f32 %v781, %v809
    %v814 = vmul.f32 %v782, %v810
    %v815 = vmul.f32 %v783, %v811
    %v816 = vmul.f32 %v784, %v812
    %v818 = vlaneseq
    %v819 = vshrl.u32 %v818, 7
    %v820 = vsub.s32 0, %v819
    %v821 = vrot.slane %v762, %v820
    %v823 = vmul.f32 %v813, %v821
    %v824 = vmul.f32 %v814, %v821
    %v825 = vmul.f32 %v815, %v821
    %v826 = vmul.f32 %v816, %v821
    %v828 = vlaneseq
    %v829 = vshrl.u32 %v828, 7
    %v830 = vsub.s32 0, %v829
    %v831 = vrot.slane %v764, %v830
    %v833 = vadd.f32 %v823, %v831
    %v834 = vadd.f32 %v824, %v831
    %v835 = vadd.f32 %v825, %v831
    %v836 = vadd.f32 %v826, %v831
    %vm837 = vcmp.ge.f32.partialorder %v833, 0.0
    %vm838 = vcmp.ge.f32.partialorder %v834, 0.0
    %vm839 = vcmp.ge.f32.partialorder %v835, 0.0
    %vm840 = vcmp.ge.f32.partialorder %v836, 0.0
    %v841 = vmul.f32 %v833, 0.01
    %v842 = vmul.f32 %v834, 0.01
    %v843 = vmul.f32 %v835, 0.01
    %v844 = vmul.f32 %v836, 0.01
    %v845 = vsel %vm837, %v833, %v841
    %v846 = vsel %vm838, %v834, %v842
    %v847 = vsel %vm839, %v835, %v843
    %v848 = vsel %vm840, %v836, %v844
    %vm853 = vcmask 1043456
    %v854 = vrot.slane %v845, 4
    %v855 = vrot.slane %v846, 4
    %v856 = vsel %vm853, %v854, %v855
    %v857 = vrot.slane %v847, 4
    %v858 = vsel %vm853, %v855, %v857
    %v859 = vrot.slane %v848, 4
    %v860 = vsel %vm853, %v857, %v859
    %v865 = vsel %vm853, 0.0, %v854
    %vm866 = vcmp.ge.s32.totalorder %v133, 4
    %vm867 = vcmp.ge.s32.totalorder %v134, 4
    %vm868 = vcmp.ge.s32.totalorder %v135, 4
    %vm869 = vcmp.ge.s32.totalorder %v136, 4
    %v870 = vsel %vm866, 1, 0
    %v871 = vsel %vm867, 1, 0
    %v872 = vsel %vm868, 1, 0
    %v873 = vsel %vm869, 1, 0
    %vm874 = vcmp.eq.s32.totalorder %v870, 1
    %vm875 = vcmp.eq.s32.totalorder %v871, 1
    %vm876 = vcmp.eq.s32.totalorder %v872, 1
    %vm877 = vcmp.eq.s32.totalorder %v873, 1
    %v878 = vsel %vm874, %v865, 0.0
    %v879 = vsel %vm875, %v856, 0.0
    %v880 = vsel %vm876, %v858, 0.0
    %v881 = vsel %vm877, %v860, 0.0
    %v882 = vrot.slane %v845, 6
    %v883 = vrot.slane %v846, 6
    %v884 = vsel %vm322, %v882, %v883
    %v885 = vrot.slane %v847, 6
    %v886 = vsel %vm322, %v883, %v885
    %v887 = vrot.slane %v848, 6
    %v888 = vsel %vm322, %v885, %v887
    %v893 = vsel %vm322, 0.0, %v882
    %v894 = vsel %vm343, %v893, 0.0
    %v895 = vsel %vm344, %v884, 0.0
    %v896 = vsel %vm345, %v886, 0.0
    %v897 = vsel %vm346, %v888, 0.0
    %902 = vrot.lane.b32.xlu0 %v894, 16
    %v903 = vpop.permute.xlu0 %902
    %904 = vrot.lane.b32.xlu0 %v895, 16
    %v905 = vpop.permute.xlu0 %904
    %906 = vrot.lane.b32.xlu0 %v896, 16
    %v907 = vpop.permute.xlu0 %906
    %908 = vrot.lane.b32.xlu0 %v897, 16
    %v909 = vpop.permute.xlu0 %908
    %914 = vrot.lane.b32.xlu0 %v845, 32
    %v915 = vpop.permute.xlu0 %914
    %916 = vrot.lane.b32.xlu0 %v846, 32
    %v917 = vpop.permute.xlu0 %916
    %918 = vrot.lane.b32.xlu0 %v847, 32
    %v919 = vpop.permute.xlu0 %918
    %920 = vrot.lane.b32.xlu0 %v848, 32
    %v921 = vpop.permute.xlu0 %920
    %v926 = vsel %vm232, %v878, %v903
    %v927 = vsel %vm232, %v879, %v905
    %v928 = vsel %vm232, %v880, %v907
    %v929 = vsel %vm232, %v881, %v909
    %v930 = vsel %vm174, %v926, %v915
    %v931 = vsel %vm174, %v927, %v917
    %v932 = vsel %vm174, %v928, %v919
    %v933 = vsel %vm174, %v929, %v921
    %v934 = vpack.c.bf16 %v931, %v930
    %v935 = vpack.c.bf16 %v933, %v932
    %s936 = scalar_lea.vmem %s5, 24
    %v937 = vld [vmem:[%s936] sm:$0xf]
    %v938 = vld [vmem:[%s936 + $0x4] sm:$0xf]
    %v939 = vld [vmem:[%s936 + $0x8] sm:$0xf]
    %v940 = vld [vmem:[%s936 + $0xc] sm:$0xf]
    %v941 = vld [vmem:[%s936 + $0x10] sm:$0xf]
    %v942 = vld [vmem:[%s936 + $0x14] sm:$0xf]
    %s943 = scalar_lea.vmem [#allocation4], 1
    %v944 = vld [vmem:[%s943] sm:$0x1]
    %v946 = vlaneseq
    %v947 = vshrl.u32 %v946, 7
    %v948 = vsub.s32 0, %v947
    %v949 = vrot.slane %v944, %v948
    %v957 = vunpack.c.l.b16 %v937
    %v958 = vunpack.c.l.b16 %v938
    %v959 = vunpack.c.l.b16 %v939
    %v960 = vunpack.c.l.b16 %v940
    %v961 = vunpack.c.l.b16 %v941
    %v962 = vunpack.c.l.b16 %v942
    %v963 = vpack.c.b16 %v958, %v957
    %v964 = vpack.c.b16 %v960, %v959
    %v965 = vpack.c.b16 %v962, %v961
    %v970 = vsel %vm449, %v934, 0
    %v973 = vsel %vm449, %v935, 0
    %975 = vmatprep.subr.bf16.mxu0 0
    %976 = vmatpush1.bf16.msra.mxu0 %v963
    %977 = vmatprep.subr.bf16.mxu0 0
    %978 = vmatpush1.bf16.msra.mxu0 %v964
    %979 = vmatprep.subr.bf16.mxu0 0
    %980 = vmatpush1.bf16.msra.mxu0 %v965
    %981 = vmatprep.subr.bf16.mxu0 0
    %982 = vmatpush1.bf16.msra.mxu0 0
    %983 = vmatprep.subr.bf16.mxu0 0
    %984 = vmatpush1.bf16.msra.mxu0 0
    %985 = vmatprep.subr.bf16.mxu0 0
    %986 = vmatpush1.bf16.msra.mxu0 0
    %987 = vmatprep.subr.bf16.mxu0 0
    %988 = vmatpush1.bf16.msra.mxu0 0
    %989 = vmatprep.subr.bf16.mxu0 0
    %990 = vmatpush1.bf16.msra.mxu0 0
    %991 = vmatprep.subr.bf16.mxu0 0
    %992 = vmatpush1.bf16.msra.mxu0 0
    %993 = vmatprep.subr.bf16.mxu0 0
    %994 = vmatpush1.bf16.msra.mxu0 0
    %995 = vmatprep.subr.bf16.mxu0 0
    %996 = vmatpush1.bf16.msra.mxu0 0
    %997 = vmatprep.subr.bf16.mxu0 0
    %998 = vmatpush1.bf16.msra.mxu0 0
    %999 = vmatprep.subr.bf16.mxu0 0
    %1000 = vmatpush1.bf16.msra.mxu0 0
    %1001 = vmatprep.subr.bf16.mxu0 0
    %1002 = vmatpush1.bf16.msra.mxu0 0
    %1003 = vmatprep.subr.bf16.mxu0 0
    %1004 = vmatpush1.bf16.msra.mxu0 0
    %1005 = vmatprep.subr.bf16.mxu0 0
    %1006 = vmatpush1.bf16.msra.mxu0 0
    %1007 = vmatprep.mubr.bf16.mxu0 0
    %1008 = vmatmul.mubr.bf16.gmra.mrb[0].mxu0 %v970
    %v1009 = vpop.f32.mrb[0].mxu0
    %v1010 = vadd.f32 %v949, %v1009
    %v1011 = vpop.f32.mrb[0].mxu0
    %v1012 = vpop.f32.mrb[0].mxu0
    %v1013 = vadd.f32 %v949, %v1012
    %v1014 = vpop.f32.mrb[0].mxu0
    %1015 = vmatprep.mubr.bf16.mxu0 0
    %1016 = vmatmul.mubr.bf16.gmra.mrb[0].mxu0 %v973
    %v1017 = vpop.f32.mrb[0].mxu0
    %v1018 = vadd.f32 %v949, %v1017
    %v1019 = vpop.f32.mrb[0].mxu0
    %v1020 = vpop.f32.mrb[0].mxu0
    %v1021 = vadd.f32 %v949, %v1020
    %v1022 = vpop.f32.mrb[0].mxu0
    %1023 = vdwg.mxu0
    %s1024 = scalar_lea.vmem %s7, 1
    %v1025 = vld [vmem:[%s1024] sm:$0x1]
    %s1026 = scalar_lea.vmem %s8, 1
    %v1027 = vld [vmem:[%s1026] sm:$0x1]
    %v1028 = vsel %vm232, %v1010, 0.0
    %1029 = vadd.xlane.f32.xlu0 %v1028
    %v1030 = vpop.xlane.xlu0 %1029
    %v1031 = vsel %vm232, %v1013, 0.0
    %1032 = vadd.xlane.f32.xlu0 %v1031
    %v1033 = vpop.xlane.xlu0 %1032
    %v1034 = vsel %vm232, %v1018, 0.0
    %1035 = vadd.xlane.f32.xlu0 %v1034
    %v1036 = vpop.xlane.xlu0 %1035
    %v1037 = vsel %vm232, %v1021, 0.0
    %1038 = vadd.xlane.f32.xlu0 %v1037
    %v1039 = vpop.xlane.xlu0 %1038
    %v1040 = vmul.f32 %v1030, %v245
    %v1041 = vmul.f32 %v1033, %v245
    %v1042 = vmul.f32 %v1036, %v245
    %v1043 = vmul.f32 %v1039, %v245
    %v1044 = vsub.f32 %v1010, %v1040
    %v1045 = vsub.f32 %v1013, %v1041
    %v1046 = vsub.f32 %v1018, %v1042
    %v1047 = vsub.f32 %v1021, %v1043
    %v1048 = vmul.f32 %v1044, %v1044
    %v1049 = vmul.f32 %v1045, %v1045
    %v1050 = vmul.f32 %v1046, %v1046
    %v1051 = vmul.f32 %v1047, %v1047
    %v1052 = vsel %vm232, %v1048, 0.0
    %1053 = vadd.xlane.f32.xlu0 %v1052
    %v1054 = vpop.xlane.xlu0 %1053
    %v1055 = vsel %vm232, %v1049, 0.0
    %1056 = vadd.xlane.f32.xlu0 %v1055
    %v1057 = vpop.xlane.xlu0 %1056
    %v1058 = vsel %vm232, %v1050, 0.0
    %1059 = vadd.xlane.f32.xlu0 %v1058
    %v1060 = vpop.xlane.xlu0 %1059
    %v1061 = vsel %vm232, %v1051, 0.0
    %1062 = vadd.xlane.f32.xlu0 %v1061
    %v1063 = vpop.xlane.xlu0 %1062
    %v1064 = vmul.f32 %v1054, %v245
    %v1065 = vmul.f32 %v1057, %v245
    %v1066 = vmul.f32 %v1060, %v245
    %v1067 = vmul.f32 %v1063, %v245
    %v1068 = vadd.f32 %v1064, 1e-05
    %v1069 = vadd.f32 %v1065, 1e-05
    %v1070 = vadd.f32 %v1066, 1e-05
    %v1071 = vadd.f32 %v1067, 1e-05
    %v1072 = vrsqrt.pop %v1068
    %v1073 = vrsqrt.pop %v1069
    %v1074 = vrsqrt.pop %v1070
    %v1075 = vrsqrt.pop %v1071
    %v1076 = vmul.f32 %v1044, %v1072
    %v1077 = vmul.f32 %v1045, %v1073
    %v1078 = vmul.f32 %v1046, %v1074
    %v1079 = vmul.f32 %v1047, %v1075
    %v1081 = vlaneseq
    %v1082 = vshrl.u32 %v1081, 7
    %v1083 = vsub.s32 0, %v1082
    %v1084 = vrot.slane %v1025, %v1083
    %v1086 = vmul.f32 %v1076, %v1084
    %v1087 = vmul.f32 %v1077, %v1084
    %v1088 = vmul.f32 %v1078, %v1084
    %v1089 = vmul.f32 %v1079, %v1084
    %v1091 = vlaneseq
    %v1092 = vshrl.u32 %v1091, 7
    %v1093 = vsub.s32 0, %v1092
    %v1094 = vrot.slane %v1027, %v1093
    %v1096 = vadd.f32 %v1086, %v1094
    %v1097 = vadd.f32 %v1087, %v1094
    %v1098 = vadd.f32 %v1088, %v1094
    %v1099 = vadd.f32 %v1089, %v1094
    %vm1100 = vcmp.ge.f32.partialorder %v1096, 0.0
    %vm1101 = vcmp.ge.f32.partialorder %v1097, 0.0
    %vm1102 = vcmp.ge.f32.partialorder %v1098, 0.0
    %vm1103 = vcmp.ge.f32.partialorder %v1099, 0.0
    %v1104 = vmul.f32 %v1096, 0.01
    %v1105 = vmul.f32 %v1097, 0.01
    %v1106 = vmul.f32 %v1098, 0.01
    %v1107 = vmul.f32 %v1099, 0.01
    %v1108 = vsel %vm1100, %v1096, %v1104
    %v1109 = vsel %vm1101, %v1097, %v1105
    %v1110 = vsel %vm1102, %v1098, %v1106
    %v1111 = vsel %vm1103, %v1099, %v1107
    %v1112 = vpack.c.bf16 %v1109, %v1108
    %v1113 = vpack.c.bf16 %v1111, %v1110
    %s1114 = scalar_lea.vmem [#allocation6], 8
    %v1115 = vld [vmem:[%s1114] sm:$0xf]
    %v1116 = vld [vmem:[%s1114 + $0x4] sm:$0xf]
    %s1117 = scalar_lea.vmem %s10, 1
    %v1118 = vld [vmem:[%s1117] sm:$0x1]
    %v1120 = vlaneseq
    %v1121 = vshrl.u32 %v1120, 7
    %v1122 = vsub.s32 0, %v1121
    %v1123 = vrot.slane %v1118, %v1122
    %v1127 = vunpack.c.l.b16 %v1115
    %v1128 = vunpack.c.l.b16 %v1116
    %v1129 = vpack.c.b16 %v1128, %v1127
    %v1132 = vsel %vm232, %v1112, 0
    %v1135 = vsel %vm232, %v1113, 0
    %1137 = vmatprep.subr.bf16.mxu0 0
    %1138 = vmatpush1.bf16.msra.mxu0 %v1129
    %1139 = vmatprep.subr.bf16.mxu0 0
    %1140 = vmatpush1.bf16.msra.mxu0 0
    %1141 = vmatprep.subr.bf16.mxu0 0
    %1142 = vmatpush1.bf16.msra.mxu0 0
    %1143 = vmatprep.subr.bf16.mxu0 0
    %1144 = vmatpush1.bf16.msra.mxu0 0
    %1145 = vmatprep.subr.bf16.mxu0 0
    %1146 = vmatpush1.bf16.msra.mxu0 0
    %1147 = vmatprep.subr.bf16.mxu0 0
    %1148 = vmatpush1.bf16.msra.mxu0 0
    %1149 = vmatprep.subr.bf16.mxu0 0
    %1150 = vmatpush1.bf16.msra.mxu0 0
    %1151 = vmatprep.subr.bf16.mxu0 0
    %1152 = vmatpush1.bf16.msra.mxu0 0
    %1153 = vmatprep.subr.bf16.mxu0 0
    %1154 = vmatpush1.bf16.msra.mxu0 0
    %1155 = vmatprep.subr.bf16.mxu0 0
    %1156 = vmatpush1.bf16.msra.mxu0 0
    %1157 = vmatprep.subr.bf16.mxu0 0
    %1158 = vmatpush1.bf16.msra.mxu0 0
    %1159 = vmatprep.subr.bf16.mxu0 0
    %1160 = vmatpush1.bf16.msra.mxu0 0
    %1161 = vmatprep.subr.bf16.mxu0 0
    %1162 = vmatpush1.bf16.msra.mxu0 0
    %1163 = vmatprep.subr.bf16.mxu0 0
    %1164 = vmatpush1.bf16.msra.mxu0 0
    %1165 = vmatprep.subr.bf16.mxu0 0
    %1166 = vmatpush1.bf16.msra.mxu0 0
    %1167 = vmatprep.subr.bf16.mxu0 0
    %1168 = vmatpush1.bf16.msra.mxu0 0
    %1169 = vmatprep.mubr.bf16.mxu0 0
    %1170 = vmatmul.mubr.bf16.gmra.mrb[0].mxu0 %v1132
    %v1171 = vpop.f32.mrb[0].mxu0
    %v1172 = vadd.f32 %v1123, %v1171
    %v1173 = vpop.f32.mrb[0].mxu0
    %v1174 = vpop.f32.mrb[0].mxu0
    %v1175 = vadd.f32 %v1123, %v1174
    %v1176 = vpop.f32.mrb[0].mxu0
    %1177 = vmatprep.mubr.bf16.mxu0 0
    %1178 = vmatmul.mubr.bf16.gmra.mrb[0].mxu0 %v1135
    %v1179 = vpop.f32.mrb[0].mxu0
    %v1180 = vadd.f32 %v1123, %v1179
    %v1181 = vpop.f32.mrb[0].mxu0
    %v1182 = vpop.f32.mrb[0].mxu0
    %v1183 = vadd.f32 %v1123, %v1182
    %v1184 = vpop.f32.mrb[0].mxu0
    %1185 = vdwg.mxu0
    %v1186 = vadd.f32 %v663, %v1172
    %v1187 = vadd.f32 %v664, %v1175
    %v1188 = vadd.f32 %v665, %v1180
    %v1189 = vadd.f32 %v666, %v1183
    %vm1190 = vcmp.ge.f32.partialorder %v1186, 0.0
    %vm1191 = vcmp.ge.f32.partialorder %v1187, 0.0
    %vm1192 = vcmp.ge.f32.partialorder %v1188, 0.0
    %vm1193 = vcmp.ge.f32.partialorder %v1189, 0.0
    %v1194 = vmul.f32 %v1186, 0.01
    %v1195 = vmul.f32 %v1187, 0.01
    %v1196 = vmul.f32 %v1188, 0.01
    %v1197 = vmul.f32 %v1189, 0.01
    %v1198 = vsel %vm1190, %v1186, %v1194
    %v1199 = vsel %vm1191, %v1187, %v1195
    %v1200 = vsel %vm1192, %v1188, %v1196
    %v1201 = vsel %vm1193, %v1189, %v1197
    %v1202 = vpack.c.bf16 %v1199, %v1198
    %v1203 = vpack.c.bf16 %v1201, %v1200
    %s1204 = scalar_lea.vmem %s1, 32
    %v1205 = vld [vmem:[%s1204] sm:$0xf]
    %v1206 = vld [vmem:[%s1204 + $0x4] sm:$0xf]
    %v1207 = vld [vmem:[%s1204 + $0x8] sm:$0xf]
    %v1208 = vld [vmem:[%s1204 + $0xc] sm:$0xf]
    %s1209 = scalar_lea.vmem [#allocation2], 2
    %v1210 = vld [vmem:[%s1209] sm:$0x1]
    %v1212 = vlaneseq
    %v1213 = vshrl.u32 %v1212, 7
    %v1214 = vsub.s32 0, %v1213
    %v1215 = vrot.slane %v1210, %v1214
    %v1221 = vunpack.c.l.b16 %v1205
    %v1222 = vunpack.c.l.b16 %v1206
    %v1223 = vunpack.c.l.b16 %v1207
    %v1224 = vunpack.c.l.b16 %v1208
    %v1225 = vpack.c.b16 %v1222, %v1221
    %v1226 = vpack.c.b16 %v1224, %v1223
    %v1230 = vsel %vm174, %v1202, 0
    %v1233 = vsel %vm174, %v1203, 0
    %1235 = vmatprep.subr.bf16.mxu0 0
    %1236 = vmatpush1.bf16.msra.mxu0 %v1225
    %1237 = vmatprep.subr.bf16.mxu0 0
    %1238 = vmatpush1.bf16.msra.mxu0 %v1226
    %1239 = vmatprep.subr.bf16.mxu0 0
    %1240 = vmatpush1.bf16.msra.mxu0 0
    %1241 = vmatprep.subr.bf16.mxu0 0
    %1242 = vmatpush1.bf16.msra.mxu0 0
    %1243 = vmatprep.subr.bf16.mxu0 0
    %1244 = vmatpush1.bf16.msra.mxu0 0
    %1245 = vmatprep.subr.bf16.mxu0 0
    %1246 = vmatpush1.bf16.msra.mxu0 0
    %1247 = vmatprep.subr.bf16.mxu0 0
    %1248 = vmatpush1.bf16.msra.mxu0 0
    %1249 = vmatprep.subr.bf16.mxu0 0
    %1250 = vmatpush1.bf16.msra.mxu0 0
    %1251 = vmatprep.subr.bf16.mxu0 0
    %1252 = vmatpush1.bf16.msra.mxu0 0
    %1253 = vmatprep.subr.bf16.mxu0 0
    %1254 = vmatpush1.bf16.msra.mxu0 0
    %1255 = vmatprep.subr.bf16.mxu0 0
    %1256 = vmatpush1.bf16.msra.mxu0 0
    %1257 = vmatprep.subr.bf16.mxu0 0
    %1258 = vmatpush1.bf16.msra.mxu0 0
    %1259 = vmatprep.subr.bf16.mxu0 0
    %1260 = vmatpush1.bf16.msra.mxu0 0
    %1261 = vmatprep.subr.bf16.mxu0 0
    %1262 = vmatpush1.bf16.msra.mxu0 0
    %1263 = vmatprep.subr.bf16.mxu0 0
    %1264 = vmatpush1.bf16.msra.mxu0 0
    %1265 = vmatprep.subr.bf16.mxu0 0
    %1266 = vmatpush1.bf16.msra.mxu0 0
    %1267 = vmatprep.mubr.bf16.mxu0 0
    %1268 = vmatmul.mubr.bf16.gmra.mrb[0].mxu0 %v1230
    %v1269 = vpop.f32.mrb[0].mxu0
    %v1270 = vadd.f32 %v1215, %v1269
    %v1271 = vpop.f32.mrb[0].mxu0
    %v1272 = vpop.f32.mrb[0].mxu0
    %v1273 = vadd.f32 %v1215, %v1272
    %v1274 = vpop.f32.mrb[0].mxu0
    %1275 = vmatprep.mubr.bf16.mxu0 0
    %1276 = vmatmul.mubr.bf16.gmra.mrb[0].mxu0 %v1233
    %v1277 = vpop.f32.mrb[0].mxu0
    %v1278 = vadd.f32 %v1215, %v1277
    %v1279 = vpop.f32.mrb[0].mxu0
    %v1280 = vpop.f32.mrb[0].mxu0
    %v1281 = vadd.f32 %v1215, %v1280
    %v1282 = vpop.f32.mrb[0].mxu0
    %1283 = vdwg.mxu0
    %s1284 = scalar_lea.vmem %s3, 2
    %v1285 = vld [vmem:[%s1284] sm:$0x1]
    %s1286 = scalar_lea.vmem %s4, 2
    %v1287 = vld [vmem:[%s1286] sm:$0x1]
    %v1288 = vsel %vm232, %v1270, 0.0
    %1289 = vadd.xlane.f32.xlu0 %v1288
    %v1290 = vpop.xlane.xlu0 %1289
    %v1291 = vsel %vm232, %v1273, 0.0
    %1292 = vadd.xlane.f32.xlu0 %v1291
    %v1293 = vpop.xlane.xlu0 %1292
    %v1294 = vsel %vm232, %v1278, 0.0
    %1295 = vadd.xlane.f32.xlu0 %v1294
    %v1296 = vpop.xlane.xlu0 %1295
    %v1297 = vsel %vm232, %v1281, 0.0
    %1298 = vadd.xlane.f32.xlu0 %v1297
    %v1299 = vpop.xlane.xlu0 %1298
    %v1300 = vmul.f32 %v1290, %v245
    %v1301 = vmul.f32 %v1293, %v245
    %v1302 = vmul.f32 %v1296, %v245
    %v1303 = vmul.f32 %v1299, %v245
    %v1304 = vsub.f32 %v1270, %v1300
    %v1305 = vsub.f32 %v1273, %v1301
    %v1306 = vsub.f32 %v1278, %v1302
    %v1307 = vsub.f32 %v1281, %v1303
    %v1308 = vmul.f32 %v1304, %v1304
    %v1309 = vmul.f32 %v1305, %v1305
    %v1310 = vmul.f32 %v1306, %v1306
    %v1311 = vmul.f32 %v1307, %v1307
    %v1312 = vsel %vm232, %v1308, 0.0
    %1313 = vadd.xlane.f32.xlu0 %v1312
    %v1314 = vpop.xlane.xlu0 %1313
    %v1315 = vsel %vm232, %v1309, 0.0
    %1316 = vadd.xlane.f32.xlu0 %v1315
    %v1317 = vpop.xlane.xlu0 %1316
    %v1318 = vsel %vm232, %v1310, 0.0
    %1319 = vadd.xlane.f32.xlu0 %v1318
    %v1320 = vpop.xlane.xlu0 %1319
    %v1321 = vsel %vm232, %v1311, 0.0
    %1322 = vadd.xlane.f32.xlu0 %v1321
    %v1323 = vpop.xlane.xlu0 %1322
    %v1324 = vmul.f32 %v1314, %v245
    %v1325 = vmul.f32 %v1317, %v245
    %v1326 = vmul.f32 %v1320, %v245
    %v1327 = vmul.f32 %v1323, %v245
    %v1328 = vadd.f32 %v1324, 1e-05
    %v1329 = vadd.f32 %v1325, 1e-05
    %v1330 = vadd.f32 %v1326, 1e-05
    %v1331 = vadd.f32 %v1327, 1e-05
    %v1332 = vrsqrt.pop %v1328
    %v1333 = vrsqrt.pop %v1329
    %v1334 = vrsqrt.pop %v1330
    %v1335 = vrsqrt.pop %v1331
    %v1336 = vmul.f32 %v1304, %v1332
    %v1337 = vmul.f32 %v1305, %v1333
    %v1338 = vmul.f32 %v1306, %v1334
    %v1339 = vmul.f32 %v1307, %v1335
    %v1341 = vlaneseq
    %v1342 = vshrl.u32 %v1341, 7
    %v1343 = vsub.s32 0, %v1342
    %v1344 = vrot.slane %v1285, %v1343
    %v1346 = vmul.f32 %v1336, %v1344
    %v1347 = vmul.f32 %v1337, %v1344
    %v1348 = vmul.f32 %v1338, %v1344
    %v1349 = vmul.f32 %v1339, %v1344
    %v1351 = vlaneseq
    %v1352 = vshrl.u32 %v1351, 7
    %v1353 = vsub.s32 0, %v1352
    %v1354 = vrot.slane %v1287, %v1353
    %v1356 = vadd.f32 %v1346, %v1354
    %v1357 = vadd.f32 %v1347, %v1354
    %v1358 = vadd.f32 %v1348, %v1354
    %v1359 = vadd.f32 %v1349, %v1354
    %vm1360 = vcmp.ge.f32.partialorder %v1356, 0.0
    %vm1361 = vcmp.ge.f32.partialorder %v1357, 0.0
    %vm1362 = vcmp.ge.f32.partialorder %v1358, 0.0
    %vm1363 = vcmp.ge.f32.partialorder %v1359, 0.0
    %v1364 = vmul.f32 %v1356, 0.01
    %v1365 = vmul.f32 %v1357, 0.01
    %v1366 = vmul.f32 %v1358, 0.01
    %v1367 = vmul.f32 %v1359, 0.01
    %v1368 = vsel %vm1360, %v1356, %v1364
    %v1369 = vsel %vm1361, %v1357, %v1365
    %v1370 = vsel %vm1362, %v1358, %v1366
    %v1371 = vsel %vm1363, %v1359, %v1367
    %vm1372 = vcmp.ge.s32.totalorder %v134, 8
    %vm1373 = vcmp.ge.s32.totalorder %v135, 8
    %vm1374 = vcmp.ge.s32.totalorder %v136, 8
    %v1375 = vsel %vm1372, 1, 0
    %v1376 = vsel %vm1373, 1, 0
    %v1377 = vsel %vm1374, 1, 0
    %vm1378 = vcmp.eq.s32.totalorder %v1375, 1
    %vm1379 = vcmp.eq.s32.totalorder %v1376, 1
    %vm1380 = vcmp.eq.s32.totalorder %v1377, 1
    %v1381 = vsel %vm1378, %v1368, 0.0
    %v1382 = vsel %vm1379, %v1369, 0.0
    %v1383 = vsel %vm1380, %v1370, 0.0
    %v1388 = vrot.slane %v1368, 4
    %v1389 = vrot.slane %v1369, 4
    %v1390 = vsel %vm853, %v1388, %v1389
    %v1391 = vrot.slane %v1370, 4
    %v1392 = vsel %vm853, %v1389, %v1391
    %v1393 = vrot.slane %v1371, 4
    %v1394 = vsel %vm853, %v1391, %v1393
    %v1399 = vsel %vm853, 0.0, %v1388
    %v1400 = vsel %vm874, %v1399, 0.0
    %v1401 = vsel %vm875, %v1390, 0.0
    %v1402 = vsel %vm876, %v1392, 0.0
    %v1403 = vsel %vm877, %v1394, 0.0
    %1408 = vrot.lane.b32.xlu0 %v1400, 16
    %v1409 = vpop.permute.xlu0 %1408
    %1410 = vrot.lane.b32.xlu0 %v1401, 16
    %v1411 = vpop.permute.xlu0 %1410
    %1412 = vrot.lane.b32.xlu0 %v1402, 16
    %v1413 = vpop.permute.xlu0 %1412
    %1414 = vrot.lane.b32.xlu0 %v1403, 16
    %v1415 = vpop.permute.xlu0 %1414
    %1420 = vrot.lane.b32.xlu0 %v1368, 32
    %v1421 = vpop.permute.xlu0 %1420
    %1422 = vrot.lane.b32.xlu0 %v1369, 32
    %v1423 = vpop.permute.xlu0 %1422
    %1424 = vrot.lane.b32.xlu0 %v1370, 32
    %v1425 = vpop.permute.xlu0 %1424
    %1426 = vrot.lane.b32.xlu0 %v1371, 32
    %v1427 = vpop.permute.xlu0 %1426
    %v1432 = vsel %vm232, 0.0, %v1409
    %v1433 = vsel %vm232, %v1381, %v1411
    %v1434 = vsel %vm232, %v1382, %v1413
    %v1435 = vsel %vm232, %v1383, %v1415
    %v1436 = vsel %vm174, %v1432, %v1421
    %v1437 = vsel %vm174, %v1433, %v1423
    %v1438 = vsel %vm174, %v1434, %v1425
    %v1439 = vsel %vm174, %v1435, %v1427
    %v1440 = vpack.c.bf16 %v1437, %v1436
    %v1441 = vpack.c.bf16 %v1439, %v1438
    %s1442 = scalar_lea.vmem %s5, 48
    %v1443 = vld [vmem:[%s1442] sm:$0xf]
    %v1444 = vld [vmem:[%s1442 + $0x4] sm:$0xf]
    %v1445 = vld [vmem:[%s1442 + $0x8] sm:$0xf]
    %v1446 = vld [vmem:[%s1442 + $0xc] sm:$0xf]
    %v1447 = vld [vmem:[%s1442 + $0x10] sm:$0xf]
    %v1448 = vld [vmem:[%s1442 + $0x14] sm:$0xf]
    %s1449 = scalar_lea.vmem [#allocation4], 2
    %v1450 = vld [vmem:[%s1449] sm:$0x1]
    %v1452 = vlaneseq
    %v1453 = vshrl.u32 %v1452, 7
    %v1454 = vsub.s32 0, %v1453
    %v1455 = vrot.slane %v1450, %v1454
    %v1463 = vunpack.c.l.b16 %v1443
    %v1464 = vunpack.c.l.b16 %v1444
    %v1465 = vunpack.c.l.b16 %v1445
    %v1466 = vunpack.c.l.b16 %v1446
    %v1467 = vunpack.c.l.b16 %v1447
    %v1468 = vunpack.c.l.b16 %v1448
    %v1469 = vpack.c.b16 %v1464, %v1463
    %v1470 = vpack.c.b16 %v1466, %v1465
    %v1471 = vpack.c.b16 %v1468, %v1467
    %v1476 = vsel %vm449, %v1440, 0
    %v1479 = vsel %vm449, %v1441, 0
    %1481 = vmatprep.subr.bf16.mxu0 0
    %1482 = vmatpush1.bf16.msra.mxu0 %v1469
    %1483 = vmatprep.subr.bf16.mxu0 0
    %1484 = vmatpush1.bf16.msra.mxu0 %v1470
    %1485 = vmatprep.subr.bf16.mxu0 0
    %1486 = vmatpush1.bf16.msra.mxu0 %v1471
    %1487 = vmatprep.subr.bf16.mxu0 0
    %1488 = vmatpush1.bf16.msra.mxu0 0
    %1489 = vmatprep.subr.bf16.mxu0 0
    %1490 = vmatpush1.bf16.msra.mxu0 0
    %1491 = vmatprep.subr.bf16.mxu0 0
    %1492 = vmatpush1.bf16.msra.mxu0 0
    %1493 = vmatprep.subr.bf16.mxu0 0
    %1494 = vmatpush1.bf16.msra.mxu0 0
    %1495 = vmatprep.subr.bf16.mxu0 0
    %1496 = vmatpush1.bf16.msra.mxu0 0
    %1497 = vmatprep.subr.bf16.mxu0 0
    %1498 = vmatpush1.bf16.msra.mxu0 0
    %1499 = vmatprep.subr.bf16.mxu0 0
    %1500 = vmatpush1.bf16.msra.mxu0 0
    %1501 = vmatprep.subr.bf16.mxu0 0
    %1502 = vmatpush1.bf16.msra.mxu0 0
    %1503 = vmatprep.subr.bf16.mxu0 0
    %1504 = vmatpush1.bf16.msra.mxu0 0
    %1505 = vmatprep.subr.bf16.mxu0 0
    %1506 = vmatpush1.bf16.msra.mxu0 0
    %1507 = vmatprep.subr.bf16.mxu0 0
    %1508 = vmatpush1.bf16.msra.mxu0 0
    %1509 = vmatprep.subr.bf16.mxu0 0
    %1510 = vmatpush1.bf16.msra.mxu0 0
    %1511 = vmatprep.subr.bf16.mxu0 0
    %1512 = vmatpush1.bf16.msra.mxu0 0
    %1513 = vmatprep.mubr.bf16.mxu0 0
    %1514 = vmatmul.mubr.bf16.gmra.mrb[0].mxu0 %v1476
    %v1515 = vpop.f32.mrb[0].mxu0
    %v1516 = vadd.f32 %v1455, %v1515
    %v1517 = vpop.f32.mrb[0].mxu0
    %v1518 = vpop.f32.mrb[0].mxu0
    %v1519 = vadd.f32 %v1455, %v1518
    %v1520 = vpop.f32.mrb[0].mxu0
    %1521 = vmatprep.mubr.bf16.mxu0 0
    %1522 = vmatmul.mubr.bf16.gmra.mrb[0].mxu0 %v1479
    %v1523 = vpop.f32.mrb[0].mxu0
    %v1524 = vadd.f32 %v1455, %v1523
    %v1525 = vpop.f32.mrb[0].mxu0
    %v1526 = vpop.f32.mrb[0].mxu0
    %v1527 = vadd.f32 %v1455, %v1526
    %v1528 = vpop.f32.mrb[0].mxu0
    %1529 = vdwg.mxu0
    %s1530 = scalar_lea.vmem %s7, 2
    %v1531 = vld [vmem:[%s1530] sm:$0x1]
    %s1532 = scalar_lea.vmem %s8, 2
    %v1533 = vld [vmem:[%s1532] sm:$0x1]
    %v1534 = vsel %vm232, %v1516, 0.0
    %1535 = vadd.xlane.f32.xlu0 %v1534
    %v1536 = vpop.xlane.xlu0 %1535
    %v1537 = vsel %vm232, %v1519, 0.0
    %1538 = vadd.xlane.f32.xlu0 %v1537
    %v1539 = vpop.xlane.xlu0 %1538
    %v1540 = vsel %vm232, %v1524, 0.0
    %1541 = vadd.xlane.f32.xlu0 %v1540
    %v1542 = vpop.xlane.xlu0 %1541
    %v1543 = vsel %vm232, %v1527, 0.0
    %1544 = vadd.xlane.f32.xlu0 %v1543
    %v1545 = vpop.xlane.xlu0 %1544
    %v1546 = vmul.f32 %v1536, %v245
    %v1547 = vmul.f32 %v1539, %v245
    %v1548 = vmul.f32 %v1542, %v245
    %v1549 = vmul.f32 %v1545, %v245
    %v1550 = vsub.f32 %v1516, %v1546
    %v1551 = vsub.f32 %v1519, %v1547
    %v1552 = vsub.f32 %v1524, %v1548
    %v1553 = vsub.f32 %v1527, %v1549
    %v1554 = vmul.f32 %v1550, %v1550
    %v1555 = vmul.f32 %v1551, %v1551
    %v1556 = vmul.f32 %v1552, %v1552
    %v1557 = vmul.f32 %v1553, %v1553
    %v1558 = vsel %vm232, %v1554, 0.0
    %1559 = vadd.xlane.f32.xlu0 %v1558
    %v1560 = vpop.xlane.xlu0 %1559
    %v1561 = vsel %vm232, %v1555, 0.0
    %1562 = vadd.xlane.f32.xlu0 %v1561
    %v1563 = vpop.xlane.xlu0 %1562
    %v1564 = vsel %vm232, %v1556, 0.0
    %1565 = vadd.xlane.f32.xlu0 %v1564
    %v1566 = vpop.xlane.xlu0 %1565
    %v1567 = vsel %vm232, %v1557, 0.0
    %1568 = vadd.xlane.f32.xlu0 %v1567
    %v1569 = vpop.xlane.xlu0 %1568
    %v1570 = vmul.f32 %v1560, %v245
    %v1571 = vmul.f32 %v1563, %v245
    %v1572 = vmul.f32 %v1566, %v245
    %v1573 = vmul.f32 %v1569, %v245
    %v1574 = vadd.f32 %v1570, 1e-05
    %v1575 = vadd.f32 %v1571, 1e-05
    %v1576 = vadd.f32 %v1572, 1e-05
    %v1577 = vadd.f32 %v1573, 1e-05
    %v1578 = vrsqrt.pop %v1574
    %v1579 = vrsqrt.pop %v1575
    %v1580 = vrsqrt.pop %v1576
    %v1581 = vrsqrt.pop %v1577
    %v1582 = vmul.f32 %v1550, %v1578
    %v1583 = vmul.f32 %v1551, %v1579
    %v1584 = vmul.f32 %v1552, %v1580
    %v1585 = vmul.f32 %v1553, %v1581
    %v1587 = vlaneseq
    %v1588 = vshrl.u32 %v1587, 7
    %v1589 = vsub.s32 0, %v1588
    %v1590 = vrot.slane %v1531, %v1589
    %v1592 = vmul.f32 %v1582, %v1590
    %v1593 = vmul.f32 %v1583, %v1590
    %v1594 = vmul.f32 %v1584, %v1590
    %v1595 = vmul.f32 %v1585, %v1590
    %v1597 = vlaneseq
    %v1598 = vshrl.u32 %v1597, 7
    %v1599 = vsub.s32 0, %v1598
    %v1600 = vrot.slane %v1533, %v1599
    %v1602 = vadd.f32 %v1592, %v1600
    %v1603 = vadd.f32 %v1593, %v1600
    %v1604 = vadd.f32 %v1594, %v1600
    %v1605 = vadd.f32 %v1595, %v1600
    %vm1606 = vcmp.ge.f32.partialorder %v1602, 0.0
    %vm1607 = vcmp.ge.f32.partialorder %v1603, 0.0
    %vm1608 = vcmp.ge.f32.partialorder %v1604, 0.0
    %vm1609 = vcmp.ge.f32.partialorder %v1605, 0.0
    %v1610 = vmul.f32 %v1602, 0.01
    %v1611 = vmul.f32 %v1603, 0.01
    %v1612 = vmul.f32 %v1604, 0.01
    %v1613 = vmul.f32 %v1605, 0.01
    %v1614 = vsel %vm1606, %v1602, %v1610
    %v1615 = vsel %vm1607, %v1603, %v1611
    %v1616 = vsel %vm1608, %v1604, %v1612
    %v1617 = vsel %vm1609, %v1605, %v1613
    %v1618 = vpack.c.bf16 %v1615, %v1614
    %v1619 = vpack.c.bf16 %v1617, %v1616
    %s1620 = scalar_lea.vmem [#allocation6], 16
    %v1621 = vld [vmem:[%s1620] sm:$0xf]
    %v1622 = vld [vmem:[%s1620 + $0x4] sm:$0xf]
    %s1623 = scalar_lea.vmem %s10, 2
    %v1624 = vld [vmem:[%s1623] sm:$0x1]
    %v1626 = vlaneseq
    %v1627 = vshrl.u32 %v1626, 7
    %v1628 = vsub.s32 0, %v1627
    %v1629 = vrot.slane %v1624, %v1628
    %v1633 = vunpack.c.l.b16 %v1621
    %v1634 = vunpack.c.l.b16 %v1622
    %v1635 = vpack.c.b16 %v1634, %v1633
    %v1638 = vsel %vm232, %v1618, 0
    %v1641 = vsel %vm232, %v1619, 0
    %1643 = vmatprep.subr.bf16.mxu0 0
    %1644 = vmatpush1.bf16.msra.mxu0 %v1635
    %1645 = vmatprep.subr.bf16.mxu0 0
    %1646 = vmatpush1.bf16.msra.mxu0 0
    %1647 = vmatprep.subr.bf16.mxu0 0
    %1648 = vmatpush1.bf16.msra.mxu0 0
    %1649 = vmatprep.subr.bf16.mxu0 0
    %1650 = vmatpush1.bf16.msra.mxu0 0
    %1651 = vmatprep.subr.bf16.mxu0 0
    %1652 = vmatpush1.bf16.msra.mxu0 0
    %1653 = vmatprep.subr.bf16.mxu0 0
    %1654 = vmatpush1.bf16.msra.mxu0 0
    %1655 = vmatprep.subr.bf16.mxu0 0
    %1656 = vmatpush1.bf16.msra.mxu0 0
    %1657 = vmatprep.subr.bf16.mxu0 0
    %1658 = vmatpush1.bf16.msra.mxu0 0
    %1659 = vmatprep.subr.bf16.mxu0 0
    %1660 = vmatpush1.bf16.msra.mxu0 0
    %1661 = vmatprep.subr.bf16.mxu0 0
    %1662 = vmatpush1.bf16.msra.mxu0 0
    %1663 = vmatprep.subr.bf16.mxu0 0
    %1664 = vmatpush1.bf16.msra.mxu0 0
    %1665 = vmatprep.subr.bf16.mxu0 0
    %1666 = vmatpush1.bf16.msra.mxu0 0
    %1667 = vmatprep.subr.bf16.mxu0 0
    %1668 = vmatpush1.bf16.msra.mxu0 0
    %1669 = vmatprep.subr.bf16.mxu0 0
    %1670 = vmatpush1.bf16.msra.mxu0 0
    %1671 = vmatprep.subr.bf16.mxu0 0
    %1672 = vmatpush1.bf16.msra.mxu0 0
    %1673 = vmatprep.subr.bf16.mxu0 0
    %1674 = vmatpush1.bf16.msra.mxu0 0
    %1675 = vmatprep.mubr.bf16.mxu0 0
    %1676 = vmatmul.mubr.bf16.gmra.mrb[0].mxu0 %v1638
    %v1677 = vpop.f32.mrb[0].mxu0
    %v1678 = vadd.f32 %v1629, %v1677
    %v1679 = vpop.f32.mrb[0].mxu0
    %v1680 = vpop.f32.mrb[0].mxu0
    %v1681 = vadd.f32 %v1629, %v1680
    %v1682 = vpop.f32.mrb[0].mxu0
    %1683 = vmatprep.mubr.bf16.mxu0 0
    %1684 = vmatmul.mubr.bf16.gmra.mrb[0].mxu0 %v1641
    %v1685 = vpop.f32.mrb[0].mxu0
    %v1686 = vadd.f32 %v1629, %v1685
    %v1687 = vpop.f32.mrb[0].mxu0
    %v1688 = vpop.f32.mrb[0].mxu0
    %v1689 = vadd.f32 %v1629, %v1688
    %v1690 = vpop.f32.mrb[0].mxu0
    %1691 = vdwg.mxu0
    %v1692 = vadd.f32 %v1186, %v1678
    %v1693 = vadd.f32 %v1187, %v1681
    %v1694 = vadd.f32 %v1188, %v1686
    %v1695 = vadd.f32 %v1189, %v1689
    %vm1696 = vcmp.ge.f32.partialorder %v1692, 0.0
    %vm1697 = vcmp.ge.f32.partialorder %v1693, 0.0
    %vm1698 = vcmp.ge.f32.partialorder %v1694, 0.0
    %vm1699 = vcmp.ge.f32.partialorder %v1695, 0.0
    %v1700 = vmul.f32 %v1692, 0.01
    %v1701 = vmul.f32 %v1693, 0.01
    %v1702 = vmul.f32 %v1694, 0.01
    %v1703 = vmul.f32 %v1695, 0.01
    %v1704 = vsel %vm1696, %v1692, %v1700
    %v1705 = vsel %vm1697, %v1693, %v1701
    %v1706 = vsel %vm1698, %v1694, %v1702
    %v1707 = vsel %vm1699, %v1695, %v1703
    %v1708 = vpack.c.bf16 %v1705, %v1704
    %v1709 = vpack.c.bf16 %v1707, %v1706
    %s1710 = scalar_lea.vmem %s1, 48
    %v1711 = vld [vmem:[%s1710] sm:$0xf]
    %v1712 = vld [vmem:[%s1710 + $0x4] sm:$0xf]
    %v1713 = vld [vmem:[%s1710 + $0x8] sm:$0xf]
    %v1714 = vld [vmem:[%s1710 + $0xc] sm:$0xf]
    %s1715 = scalar_lea.vmem [#allocation2], 3
    %v1716 = vld [vmem:[%s1715] sm:$0x1]
    %v1718 = vlaneseq
    %v1719 = vshrl.u32 %v1718, 7
    %v1720 = vsub.s32 0, %v1719
    %v1721 = vrot.slane %v1716, %v1720
    %v1727 = vunpack.c.l.b16 %v1711
    %v1728 = vunpack.c.l.b16 %v1712
    %v1729 = vunpack.c.l.b16 %v1713
    %v1730 = vunpack.c.l.b16 %v1714
    %v1731 = vpack.c.b16 %v1728, %v1727
    %v1732 = vpack.c.b16 %v1730, %v1729
    %v1736 = vsel %vm174, %v1708, 0
    %v1739 = vsel %vm174, %v1709, 0
    %1741 = vmatprep.subr.bf16.mxu0 0
    %1742 = vmatpush1.bf16.msra.mxu0 %v1731
    %1743 = vmatprep.subr.bf16.mxu0 0
    %1744 = vmatpush1.bf16.msra.mxu0 %v1732
    %1745 = vmatprep.subr.bf16.mxu0 0
    %1746 = vmatpush1.bf16.msra.mxu0 0
    %1747 = vmatprep.subr.bf16.mxu0 0
    %1748 = vmatpush1.bf16.msra.mxu0 0
    %1749 = vmatprep.subr.bf16.mxu0 0
    %1750 = vmatpush1.bf16.msra.mxu0 0
    %1751 = vmatprep.subr.bf16.mxu0 0
    %1752 = vmatpush1.bf16.msra.mxu0 0
    %1753 = vmatprep.subr.bf16.mxu0 0
    %1754 = vmatpush1.bf16.msra.mxu0 0
    %1755 = vmatprep.subr.bf16.mxu0 0
    %1756 = vmatpush1.bf16.msra.mxu0 0
    %1757 = vmatprep.subr.bf16.mxu0 0
    %1758 = vmatpush1.bf16.msra.mxu0 0
    %1759 = vmatprep.subr.bf16.mxu0 0
    %1760 = vmatpush1.bf16.msra.mxu0 0
    %1761 = vmatprep.subr.bf16.mxu0 0
    %1762 = vmatpush1.bf16.msra.mxu0 0
    %1763 = vmatprep.subr.bf16.mxu0 0
    %1764 = vmatpush1.bf16.msra.mxu0 0
    %1765 = vmatprep.subr.bf16.mxu0 0
    %1766 = vmatpush1.bf16.msra.mxu0 0
    %1767 = vmatprep.subr.bf16.mxu0 0
    %1768 = vmatpush1.bf16.msra.mxu0 0
    %1769 = vmatprep.subr.bf16.mxu0 0
    %1770 = vmatpush1.bf16.msra.mxu0 0
    %1771 = vmatprep.subr.bf16.mxu0 0
    %1772 = vmatpush1.bf16.msra.mxu0 0
    %1773 = vmatprep.mubr.bf16.mxu0 0
    %1774 = vmatmul.mubr.bf16.gmra.mrb[0].mxu0 %v1736
    %v1775 = vpop.f32.mrb[0].mxu0
    %v1776 = vadd.f32 %v1721, %v1775
    %v1777 = vpop.f32.mrb[0].mxu0
    %v1778 = vpop.f32.mrb[0].mxu0
    %v1779 = vadd.f32 %v1721, %v1778
    %v1780 = vpop.f32.mrb[0].mxu0
    %1781 = vmatprep.mubr.bf16.mxu0 0
    %1782 = vmatmul.mubr.bf16.gmra.mrb[0].mxu0 %v1739
    %v1783 = vpop.f32.mrb[0].mxu0
    %v1784 = vadd.f32 %v1721, %v1783
    %v1785 = vpop.f32.mrb[0].mxu0
    %v1786 = vpop.f32.mrb[0].mxu0
    %v1787 = vadd.f32 %v1721, %v1786
    %v1788 = vpop.f32.mrb[0].mxu0
    %1789 = vdwg.mxu0
    %s1790 = scalar_lea.vmem %s3, 3
    %v1791 = vld [vmem:[%s1790] sm:$0x1]
    %s1792 = scalar_lea.vmem %s4, 3
    %v1793 = vld [vmem:[%s1792] sm:$0x1]
    %v1794 = vsel %vm232, %v1776, 0.0
    %1795 = vadd.xlane.f32.xlu0 %v1794
    %v1796 = vpop.xlane.xlu0 %1795
    %v1797 = vsel %vm232, %v1779, 0.0
    %1798 = vadd.xlane.f32.xlu0 %v1797
    %v1799 = vpop.xlane.xlu0 %1798
    %v1800 = vsel %vm232, %v1784, 0.0
    %1801 = vadd.xlane.f32.xlu0 %v1800
    %v1802 = vpop.xlane.xlu0 %1801
    %v1803 = vsel %vm232, %v1787, 0.0
    %1804 = vadd.xlane.f32.xlu0 %v1803
    %v1805 = vpop.xlane.xlu0 %1804
    %v1806 = vmul.f32 %v1796, %v245
    %v1807 = vmul.f32 %v1799, %v245
    %v1808 = vmul.f32 %v1802, %v245
    %v1809 = vmul.f32 %v1805, %v245
    %v1810 = vsub.f32 %v1776, %v1806
    %v1811 = vsub.f32 %v1779, %v1807
    %v1812 = vsub.f32 %v1784, %v1808
    %v1813 = vsub.f32 %v1787, %v1809
    %v1814 = vmul.f32 %v1810, %v1810
    %v1815 = vmul.f32 %v1811, %v1811
    %v1816 = vmul.f32 %v1812, %v1812
    %v1817 = vmul.f32 %v1813, %v1813
    %v1818 = vsel %vm232, %v1814, 0.0
    %1819 = vadd.xlane.f32.xlu0 %v1818
    %v1820 = vpop.xlane.xlu0 %1819
    %v1821 = vsel %vm232, %v1815, 0.0
    %1822 = vadd.xlane.f32.xlu0 %v1821
    %v1823 = vpop.xlane.xlu0 %1822
    %v1824 = vsel %vm232, %v1816, 0.0
    %1825 = vadd.xlane.f32.xlu0 %v1824
    %v1826 = vpop.xlane.xlu0 %1825
    %v1827 = vsel %vm232, %v1817, 0.0
    %1828 = vadd.xlane.f32.xlu0 %v1827
    %v1829 = vpop.xlane.xlu0 %1828
    %v1830 = vmul.f32 %v1820, %v245
    %v1831 = vmul.f32 %v1823, %v245
    %v1832 = vmul.f32 %v1826, %v245
    %v1833 = vmul.f32 %v1829, %v245
    %v1834 = vadd.f32 %v1830, 1e-05
    %v1835 = vadd.f32 %v1831, 1e-05
    %v1836 = vadd.f32 %v1832, 1e-05
    %v1837 = vadd.f32 %v1833, 1e-05
    %v1838 = vrsqrt.pop %v1834
    %v1839 = vrsqrt.pop %v1835
    %v1840 = vrsqrt.pop %v1836
    %v1841 = vrsqrt.pop %v1837
    %v1842 = vmul.f32 %v1810, %v1838
    %v1843 = vmul.f32 %v1811, %v1839
    %v1844 = vmul.f32 %v1812, %v1840
    %v1845 = vmul.f32 %v1813, %v1841
    %v1847 = vlaneseq
    %v1848 = vshrl.u32 %v1847, 7
    %v1849 = vsub.s32 0, %v1848
    %v1850 = vrot.slane %v1791, %v1849
    %v1852 = vmul.f32 %v1842, %v1850
    %v1853 = vmul.f32 %v1843, %v1850
    %v1854 = vmul.f32 %v1844, %v1850
    %v1855 = vmul.f32 %v1845, %v1850
    %v1857 = vlaneseq
    %v1858 = vshrl.u32 %v1857, 7
    %v1859 = vsub.s32 0, %v1858
    %v1860 = vrot.slane %v1793, %v1859
    %v1862 = vadd.f32 %v1852, %v1860
    %v1863 = vadd.f32 %v1853, %v1860
    %v1864 = vadd.f32 %v1854, %v1860
    %v1865 = vadd.f32 %v1855, %v1860
    %vm1866 = vcmp.ge.f32.partialorder %v1862, 0.0
    %vm1867 = vcmp.ge.f32.partialorder %v1863, 0.0
    %vm1868 = vcmp.ge.f32.partialorder %v1864, 0.0
    %vm1869 = vcmp.ge.f32.partialorder %v1865, 0.0
    %v1870 = vmul.f32 %v1862, 0.01
    %v1871 = vmul.f32 %v1863, 0.01
    %v1872 = vmul.f32 %v1864, 0.01
    %v1873 = vmul.f32 %v1865, 0.01
    %v1874 = vsel %vm1866, %v1862, %v1870
    %v1875 = vsel %vm1867, %v1863, %v1871
    %v1876 = vsel %vm1868, %v1864, %v1872
    %v1877 = vsel %vm1869, %v1865, %v1873
    %v1878 = vsel %vm1378, %v1874, 0.0
    %v1879 = vsel %vm1379, %v1875, 0.0
    %v1880 = vsel %vm1380, %v1876, 0.0
    %1885 = vrot.lane.b32.xlu0 0.0, 16
    %v1886 = vpop.permute.xlu0 %1885
    %1887 = vrot.lane.b32.xlu0 %v1878, 16
    %v1888 = vpop.permute.xlu0 %1887
    %1889 = vrot.lane.b32.xlu0 %v1879, 16
    %v1890 = vpop.permute.xlu0 %1889
    %1891 = vrot.lane.b32.xlu0 %v1880, 16
    %v1892 = vpop.permute.xlu0 %1891
    %1901 = vrot.lane.b32.xlu0 %v1874, 32
    %v1902 = vpop.permute.xlu0 %1901
    %1903 = vrot.lane.b32.xlu0 %v1875, 32
    %v1904 = vpop.permute.xlu0 %1903
    %1905 = vrot.lane.b32.xlu0 %v1876, 32
    %v1906 = vpop.permute.xlu0 %1905
    %1907 = vrot.lane.b32.xlu0 %v1877, 32
    %v1908 = vpop.permute.xlu0 %1907
    %v1913 = vsel %vm232, 0.0, %v1886
    %v1914 = vsel %vm232, 0.0, %v1888
    %v1915 = vsel %vm232, 0.0, %v1890
    %v1916 = vsel %vm232, 0.0, %v1892
    %v1917 = vsel %vm174, %v1913, %v1902
    %v1918 = vsel %vm174, %v1914, %v1904
    %v1919 = vsel %vm174, %v1915, %v1906
    %v1920 = vsel %vm174, %v1916, %v1908
    %v1921 = vpack.c.bf16 %v1918, %v1917
    %v1922 = vpack.c.bf16 %v1920, %v1919
    %s1923 = scalar_lea.vmem %s5, 72
    %v1924 = vld [vmem:[%s1923] sm:$0xf]
    %v1925 = vld [vmem:[%s1923 + $0x4] sm:$0xf]
    %v1926 = vld [vmem:[%s1923 + $0x8] sm:$0xf]
    %v1927 = vld [vmem:[%s1923 + $0xc] sm:$0xf]
    %v1928 = vld [vmem:[%s1923 + $0x10] sm:$0xf]
    %v1929 = vld [vmem:[%s1923 + $0x14] sm:$0xf]
    %s1930 = scalar_lea.vmem [#allocation4], 3
    %v1931 = vld [vmem:[%s1930] sm:$0x1]
    %v1933 = vlaneseq
    %v1934 = vshrl.u32 %v1933, 7
    %v1935 = vsub.s32 0, %v1934
    %v1936 = vrot.slane %v1931, %v1935
    %v1944 = vunpack.c.l.b16 %v1924
    %v1945 = vunpack.c.l.b16 %v1925
    %v1946 = vunpack.c.l.b16 %v1926
    %v1947 = vunpack.c.l.b16 %v1927
    %v1948 = vunpack.c.l.b16 %v1928
    %v1949 = vunpack.c.l.b16 %v1929
    %v1950 = vpack.c.b16 %v1945, %v1944
    %v1951 = vpack.c.b16 %v1947, %v1946
    %v1952 = vpack.c.b16 %v1949, %v1948
    %v1957 = vsel %vm449, %v1921, 0
    %v1960 = vsel %vm449, %v1922, 0
    %1962 = vmatprep.subr.bf16.mxu0 0
    %1963 = vmatpush1.bf16.msra.mxu0 %v1950
    %1964 = vmatprep.subr.bf16.mxu0 0
    %1965 = vmatpush1.bf16.msra.mxu0 %v1951
    %1966 = vmatprep.subr.bf16.mxu0 0
    %1967 = vmatpush1.bf16.msra.mxu0 %v1952
    %1968 = vmatprep.subr.bf16.mxu0 0
    %1969 = vmatpush1.bf16.msra.mxu0 0
    %1970 = vmatprep.subr.bf16.mxu0 0
    %1971 = vmatpush1.bf16.msra.mxu0 0
    %1972 = vmatprep.subr.bf16.mxu0 0
    %1973 = vmatpush1.bf16.msra.mxu0 0
    %1974 = vmatprep.subr.bf16.mxu0 0
    %1975 = vmatpush1.bf16.msra.mxu0 0
    %1976 = vmatprep.subr.bf16.mxu0 0
    %1977 = vmatpush1.bf16.msra.mxu0 0
    %1978 = vmatprep.subr.bf16.mxu0 0
    %1979 = vmatpush1.bf16.msra.mxu0 0
    %1980 = vmatprep.subr.bf16.mxu0 0
    %1981 = vmatpush1.bf16.msra.mxu0 0
    %1982 = vmatprep.subr.bf16.mxu0 0
    %1983 = vmatpush1.bf16.msra.mxu0 0
    %1984 = vmatprep.subr.bf16.mxu0 0
    %1985 = vmatpush1.bf16.msra.mxu0 0
    %1986 = vmatprep.subr.bf16.mxu0 0
    %1987 = vmatpush1.bf16.msra.mxu0 0
    %1988 = vmatprep.subr.bf16.mxu0 0
    %1989 = vmatpush1.bf16.msra.mxu0 0
    %1990 = vmatprep.subr.bf16.mxu0 0
    %1991 = vmatpush1.bf16.msra.mxu0 0
    %1992 = vmatprep.subr.bf16.mxu0 0
    %1993 = vmatpush1.bf16.msra.mxu0 0
    %1994 = vmatprep.mubr.bf16.mxu0 0
    %1995 = vmatmul.mubr.bf16.gmra.mrb[0].mxu0 %v1957
    %v1996 = vpop.f32.mrb[0].mxu0
    %v1997 = vadd.f32 %v1936, %v1996
    %v1998 = vpop.f32.mrb[0].mxu0
    %v1999 = vpop.f32.mrb[0].mxu0
    %v2000 = vadd.f32 %v1936, %v1999
    %v2001 = vpop.f32.mrb[0].mxu0
    %2002 = vmatprep.mubr.bf16.mxu0 0
    %2003 = vmatmul.mubr.bf16.gmra.mrb[0].mxu0 %v1960
    %v2004 = vpop.f32.mrb[0].mxu0
    %v2005 = vadd.f32 %v1936, %v2004
    %v2006 = vpop.f32.mrb[0].mxu0
    %v2007 = vpop.f32.mrb[0].mxu0
    %v2008 = vadd.f32 %v1936, %v2007
    %v2009 = vpop.f32.mrb[0].mxu0
    %2010 = vdwg.mxu0
    %s2011 = scalar_lea.vmem %s7, 3
    %v2012 = vld [vmem:[%s2011] sm:$0x1]
    %s2013 = scalar_lea.vmem %s8, 3
    %v2014 = vld [vmem:[%s2013] sm:$0x1]
    %v2015 = vsel %vm232, %v1997, 0.0
    %2016 = vadd.xlane.f32.xlu0 %v2015
    %v2017 = vpop.xlane.xlu0 %2016
    %v2018 = vsel %vm232, %v2000, 0.0
    %2019 = vadd.xlane.f32.xlu0 %v2018
    %v2020 = vpop.xlane.xlu0 %2019
    %v2021 = vsel %vm232, %v2005, 0.0
    %2022 = vadd.xlane.f32.xlu0 %v2021
    %v2023 = vpop.xlane.xlu0 %2022
    %v2024 = vsel %vm232, %v2008, 0.0
    %2025 = vadd.xlane.f32.xlu0 %v2024
    %v2026 = vpop.xlane.xlu0 %2025
    %v2027 = vmul.f32 %v2017, %v245
    %v2028 = vmul.f32 %v2020, %v245
    %v2029 = vmul.f32 %v2023, %v245
    %v2030 = vmul.f32 %v2026, %v245
    %v2031 = vsub.f32 %v1997, %v2027
    %v2032 = vsub.f32 %v2000, %v2028
    %v2033 = vsub.f32 %v2005, %v2029
    %v2034 = vsub.f32 %v2008, %v2030
    %v2035 = vmul.f32 %v2031, %v2031
    %v2036 = vmul.f32 %v2032, %v2032
    %v2037 = vmul.f32 %v2033, %v2033
    %v2038 = vmul.f32 %v2034, %v2034
    %v2039 = vsel %vm232, %v2035, 0.0
    %2040 = vadd.xlane.f32.xlu0 %v2039
    %v2041 = vpop.xlane.xlu0 %2040
    %v2042 = vsel %vm232, %v2036, 0.0
    %2043 = vadd.xlane.f32.xlu0 %v2042
    %v2044 = vpop.xlane.xlu0 %2043
    %v2045 = vsel %vm232, %v2037, 0.0
    %2046 = vadd.xlane.f32.xlu0 %v2045
    %v2047 = vpop.xlane.xlu0 %2046
    %v2048 = vsel %vm232, %v2038, 0.0
    %2049 = vadd.xlane.f32.xlu0 %v2048
    %v2050 = vpop.xlane.xlu0 %2049
    %v2051 = vmul.f32 %v2041, %v245
    %v2052 = vmul.f32 %v2044, %v245
    %v2053 = vmul.f32 %v2047, %v245
    %v2054 = vmul.f32 %v2050, %v245
    %v2055 = vadd.f32 %v2051, 1e-05
    %v2056 = vadd.f32 %v2052, 1e-05
    %v2057 = vadd.f32 %v2053, 1e-05
    %v2058 = vadd.f32 %v2054, 1e-05
    %v2059 = vrsqrt.pop %v2055
    %v2060 = vrsqrt.pop %v2056
    %v2061 = vrsqrt.pop %v2057
    %v2062 = vrsqrt.pop %v2058
    %v2063 = vmul.f32 %v2031, %v2059
    %v2064 = vmul.f32 %v2032, %v2060
    %v2065 = vmul.f32 %v2033, %v2061
    %v2066 = vmul.f32 %v2034, %v2062
    %v2068 = vlaneseq
    %v2069 = vshrl.u32 %v2068, 7
    %v2070 = vsub.s32 0, %v2069
    %v2071 = vrot.slane %v2012, %v2070
    %v2073 = vmul.f32 %v2063, %v2071
    %v2074 = vmul.f32 %v2064, %v2071
    %v2075 = vmul.f32 %v2065, %v2071
    %v2076 = vmul.f32 %v2066, %v2071
    %v2078 = vlaneseq
    %v2079 = vshrl.u32 %v2078, 7
    %v2080 = vsub.s32 0, %v2079
    %v2081 = vrot.slane %v2014, %v2080
    %v2083 = vadd.f32 %v2073, %v2081
    %v2084 = vadd.f32 %v2074, %v2081
    %v2085 = vadd.f32 %v2075, %v2081
    %v2086 = vadd.f32 %v2076, %v2081
    %vm2087 = vcmp.ge.f32.partialorder %v2083, 0.0
    %vm2088 = vcmp.ge.f32.partialorder %v2084, 0.0
    %vm2089 = vcmp.ge.f32.partialorder %v2085, 0.0
    %vm2090 = vcmp.ge.f32.partialorder %v2086, 0.0
    %v2091 = vmul.f32 %v2083, 0.01
    %v2092 = vmul.f32 %v2084, 0.01
    %v2093 = vmul.f32 %v2085, 0.01
    %v2094 = vmul.f32 %v2086, 0.01
    %v2095 = vsel %vm2087, %v2083, %v2091
    %v2096 = vsel %vm2088, %v2084, %v2092
    %v2097 = vsel %vm2089, %v2085, %v2093
    %v2098 = vsel %vm2090, %v2086, %v2094
    %v2099 = vpack.c.bf16 %v2096, %v2095
    %v2100 = vpack.c.bf16 %v2098, %v2097
    %s2101 = scalar_lea.vmem [#allocation6], 24
    %v2102 = vld [vmem:[%s2101] sm:$0xf]
    %v2103 = vld [vmem:[%s2101 + $0x4] sm:$0xf]
    %s2104 = scalar_lea.vmem %s10, 3
    %v2105 = vld [vmem:[%s2104] sm:$0x1]
    %v2107 = vlaneseq
    %v2108 = vshrl.u32 %v2107, 7
    %v2109 = vsub.s32 0, %v2108
    %v2110 = vrot.slane %v2105, %v2109
    %v2114 = vunpack.c.l.b16 %v2102
    %v2115 = vunpack.c.l.b16 %v2103
    %v2116 = vpack.c.b16 %v2115, %v2114
    %v2119 = vsel %vm232, %v2099, 0
    %v2122 = vsel %vm232, %v2100, 0
    %2124 = vmatprep.subr.bf16.mxu0 0
    %2125 = vmatpush1.bf16.msra.mxu0 %v2116
    %2126 = vmatprep.subr.bf16.mxu0 0
    %2127 = vmatpush1.bf16.msra.mxu0 0
    %2128 = vmatprep.subr.bf16.mxu0 0
    %2129 = vmatpush1.bf16.msra.mxu0 0
    %2130 = vmatprep.subr.bf16.mxu0 0
    %2131 = vmatpush1.bf16.msra.mxu0 0
    %2132 = vmatprep.subr.bf16.mxu0 0
    %2133 = vmatpush1.bf16.msra.mxu0 0
    %2134 = vmatprep.subr.bf16.mxu0 0
    %2135 = vmatpush1.bf16.msra.mxu0 0
    %2136 = vmatprep.subr.bf16.mxu0 0
    %2137 = vmatpush1.bf16.msra.mxu0 0
    %2138 = vmatprep.subr.bf16.mxu0 0
    %2139 = vmatpush1.bf16.msra.mxu0 0
    %2140 = vmatprep.subr.bf16.mxu0 0
    %2141 = vmatpush1.bf16.msra.mxu0 0
    %2142 = vmatprep.subr.bf16.mxu0 0
    %2143 = vmatpush1.bf16.msra.mxu0 0
    %2144 = vmatprep.subr.bf16.mxu0 0
    %2145 = vmatpush1.bf16.msra.mxu0 0
    %2146 = vmatprep.subr.bf16.mxu0 0
    %2147 = vmatpush1.bf16.msra.mxu0 0
    %2148 = vmatprep.subr.bf16.mxu0 0
    %2149 = vmatpush1.bf16.msra.mxu0 0
    %2150 = vmatprep.subr.bf16.mxu0 0
    %2151 = vmatpush1.bf16.msra.mxu0 0
    %2152 = vmatprep.subr.bf16.mxu0 0
    %2153 = vmatpush1.bf16.msra.mxu0 0
    %2154 = vmatprep.subr.bf16.mxu0 0
    %2155 = vmatpush1.bf16.msra.mxu0 0
    %2156 = vmatprep.mubr.bf16.mxu0 0
    %2157 = vmatmul.mubr.bf16.gmra.mrb[0].mxu0 %v2119
    %v2158 = vpop.f32.mrb[0].mxu0
    %v2159 = vadd.f32 %v2110, %v2158
    %v2160 = vpop.f32.mrb[0].mxu0
    %v2161 = vpop.f32.mrb[0].mxu0
    %v2162 = vadd.f32 %v2110, %v2161
    %v2163 = vpop.f32.mrb[0].mxu0
    %2164 = vmatprep.mubr.bf16.mxu0 0
    %2165 = vmatmul.mubr.bf16.gmra.mrb[0].mxu0 %v2122
    %v2166 = vpop.f32.mrb[0].mxu0
    %v2167 = vadd.f32 %v2110, %v2166
    %v2168 = vpop.f32.mrb[0].mxu0
    %v2169 = vpop.f32.mrb[0].mxu0
    %v2170 = vadd.f32 %v2110, %v2169
    %v2171 = vpop.f32.mrb[0].mxu0
    %2172 = vdwg.mxu0
    %v2173 = vadd.f32 %v1692, %v2159
    %v2174 = vadd.f32 %v1693, %v2162
    %v2175 = vadd.f32 %v1694, %v2167
    %v2176 = vadd.f32 %v1695, %v2170
    %vm2177 = vcmp.ge.f32.partialorder %v2173, 0.0
    %vm2178 = vcmp.ge.f32.partialorder %v2174, 0.0
    %vm2179 = vcmp.ge.f32.partialorder %v2175, 0.0
    %vm2180 = vcmp.ge.f32.partialorder %v2176, 0.0
    %v2181 = vmul.f32 %v2173, 0.01
    %v2182 = vmul.f32 %v2174, 0.01
    %v2183 = vmul.f32 %v2175, 0.01
    %v2184 = vmul.f32 %v2176, 0.01
    %v2185 = vsel %vm2177, %v2173, %v2181
    %v2186 = vsel %vm2178, %v2174, %v2182
    %v2187 = vsel %vm2179, %v2175, %v2183
    %v2188 = vsel %vm2180, %v2176, %v2184
    %v2189 = vpack.c.bf16 %v2186, %v2185
    %v2190 = vpack.c.bf16 %v2188, %v2187
    %s2191 = scalar_lea.vmem %s1, 64
    %v2192 = vld [vmem:[%s2191] sm:$0xf]
    %v2193 = vld [vmem:[%s2191 + $0x4] sm:$0xf]
    %v2194 = vld [vmem:[%s2191 + $0x8] sm:$0xf]
    %v2195 = vld [vmem:[%s2191 + $0xc] sm:$0xf]
    %s2196 = scalar_lea.vmem [#allocation2], 4
    %v2197 = vld [vmem:[%s2196] sm:$0x1]
    %v2199 = vlaneseq
    %v2200 = vshrl.u32 %v2199, 7
    %v2201 = vsub.s32 0, %v2200
    %v2202 = vrot.slane %v2197, %v2201
    %v2208 = vunpack.c.l.b16 %v2192
    %v2209 = vunpack.c.l.b16 %v2193
    %v2210 = vunpack.c.l.b16 %v2194
    %v2211 = vunpack.c.l.b16 %v2195
    %v2212 = vpack.c.b16 %v2209, %v2208
    %v2213 = vpack.c.b16 %v2211, %v2210
    %v2217 = vsel %vm174, %v2189, 0
    %v2220 = vsel %vm174, %v2190, 0
    %2222 = vmatprep.subr.bf16.mxu0 0
    %2223 = vmatpush1.bf16.msra.mxu0 %v2212
    %2224 = vmatprep.subr.bf16.mxu0 0
    %2225 = vmatpush1.bf16.msra.mxu0 %v2213
    %2226 = vmatprep.subr.bf16.mxu0 0
    %2227 = vmatpush1.bf16.msra.mxu0 0
    %2228 = vmatprep.subr.bf16.mxu0 0
    %2229 = vmatpush1.bf16.msra.mxu0 0
    %2230 = vmatprep.subr.bf16.mxu0 0
    %2231 = vmatpush1.bf16.msra.mxu0 0
    %2232 = vmatprep.subr.bf16.mxu0 0
    %2233 = vmatpush1.bf16.msra.mxu0 0
    %2234 = vmatprep.subr.bf16.mxu0 0
    %2235 = vmatpush1.bf16.msra.mxu0 0
    %2236 = vmatprep.subr.bf16.mxu0 0
    %2237 = vmatpush1.bf16.msra.mxu0 0
    %2238 = vmatprep.subr.bf16.mxu0 0
    %2239 = vmatpush1.bf16.msra.mxu0 0
    %2240 = vmatprep.subr.bf16.mxu0 0
    %2241 = vmatpush1.bf16.msra.mxu0 0
    %2242 = vmatprep.subr.bf16.mxu0 0
    %2243 = vmatpush1.bf16.msra.mxu0 0
    %2244 = vmatprep.subr.bf16.mxu0 0
    %2245 = vmatpush1.bf16.msra.mxu0 0
    %2246 = vmatprep.subr.bf16.mxu0 0
    %2247 = vmatpush1.bf16.msra.mxu0 0
    %2248 = vmatprep.subr.bf16.mxu0 0
    %2249 = vmatpush1.bf16.msra.mxu0 0
    %2250 = vmatprep.subr.bf16.mxu0 0
    %2251 = vmatpush1.bf16.msra.mxu0 0
    %2252 = vmatprep.subr.bf16.mxu0 0
    %2253 = vmatpush1.bf16.msra.mxu0 0
    %2254 = vmatprep.mubr.bf16.mxu0 0
    %2255 = vmatmul.mubr.bf16.gmra.mrb[0].mxu0 %v2217
    %v2256 = vpop.f32.mrb[0].mxu0
    %v2257 = vadd.f32 %v2202, %v2256
    %v2258 = vpop.f32.mrb[0].mxu0
    %v2259 = vpop.f32.mrb[0].mxu0
    %v2260 = vadd.f32 %v2202, %v2259
    %v2261 = vpop.f32.mrb[0].mxu0
    %2262 = vmatprep.mubr.bf16.mxu0 0
    %2263 = vmatmul.mubr.bf16.gmra.mrb[0].mxu0 %v2220
    %v2264 = vpop.f32.mrb[0].mxu0
    %v2265 = vadd.f32 %v2202, %v2264
    %v2266 = vpop.f32.mrb[0].mxu0
    %v2267 = vpop.f32.mrb[0].mxu0
    %v2268 = vadd.f32 %v2202, %v2267
    %v2269 = vpop.f32.mrb[0].mxu0
    %2270 = vdwg.mxu0
    %s2271 = scalar_lea.vmem %s3, 4
    %v2272 = vld [vmem:[%s2271] sm:$0x1]
    %s2273 = scalar_lea.vmem %s4, 4
    %v2274 = vld [vmem:[%s2273] sm:$0x1]
    %v2275 = vsel %vm232, %v2257, 0.0
    %2276 = vadd.xlane.f32.xlu0 %v2275
    %v2277 = vpop.xlane.xlu0 %2276
    %v2278 = vsel %vm232, %v2260, 0.0
    %2279 = vadd.xlane.f32.xlu0 %v2278
    %v2280 = vpop.xlane.xlu0 %2279
    %v2281 = vsel %vm232, %v2265, 0.0
    %2282 = vadd.xlane.f32.xlu0 %v2281
    %v2283 = vpop.xlane.xlu0 %2282
    %v2284 = vsel %vm232, %v2268, 0.0
    %2285 = vadd.xlane.f32.xlu0 %v2284
    %v2286 = vpop.xlane.xlu0 %2285
    %v2287 = vmul.f32 %v2277, %v245
    %v2288 = vmul.f32 %v2280, %v245
    %v2289 = vmul.f32 %v2283, %v245
    %v2290 = vmul.f32 %v2286, %v245
    %v2291 = vsub.f32 %v2257, %v2287
    %v2292 = vsub.f32 %v2260, %v2288
    %v2293 = vsub.f32 %v2265, %v2289
    %v2294 = vsub.f32 %v2268, %v2290
    %v2295 = vmul.f32 %v2291, %v2291
    %v2296 = vmul.f32 %v2292, %v2292
    %v2297 = vmul.f32 %v2293, %v2293
    %v2298 = vmul.f32 %v2294, %v2294
    %v2299 = vsel %vm232, %v2295, 0.0
    %2300 = vadd.xlane.f32.xlu0 %v2299
    %v2301 = vpop.xlane.xlu0 %2300
    %v2302 = vsel %vm232, %v2296, 0.0
    %2303 = vadd.xlane.f32.xlu0 %v2302
    %v2304 = vpop.xlane.xlu0 %2303
    %v2305 = vsel %vm232, %v2297, 0.0
    %2306 = vadd.xlane.f32.xlu0 %v2305
    %v2307 = vpop.xlane.xlu0 %2306
    %v2308 = vsel %vm232, %v2298, 0.0
    %2309 = vadd.xlane.f32.xlu0 %v2308
    %v2310 = vpop.xlane.xlu0 %2309
    %v2311 = vmul.f32 %v2301, %v245
    %v2312 = vmul.f32 %v2304, %v245
    %v2313 = vmul.f32 %v2307, %v245
    %v2314 = vmul.f32 %v2310, %v245
    %v2315 = vadd.f32 %v2311, 1e-05
    %v2316 = vadd.f32 %v2312, 1e-05
    %v2317 = vadd.f32 %v2313, 1e-05
    %v2318 = vadd.f32 %v2314, 1e-05
    %v2319 = vrsqrt.pop %v2315
    %v2320 = vrsqrt.pop %v2316
    %v2321 = vrsqrt.pop %v2317
    %v2322 = vrsqrt.pop %v2318
    %v2323 = vmul.f32 %v2291, %v2319
    %v2324 = vmul.f32 %v2292, %v2320
    %v2325 = vmul.f32 %v2293, %v2321
    %v2326 = vmul.f32 %v2294, %v2322
    %v2328 = vlaneseq
    %v2329 = vshrl.u32 %v2328, 7
    %v2330 = vsub.s32 0, %v2329
    %v2331 = vrot.slane %v2272, %v2330
    %v2333 = vmul.f32 %v2323, %v2331
    %v2334 = vmul.f32 %v2324, %v2331
    %v2335 = vmul.f32 %v2325, %v2331
    %v2336 = vmul.f32 %v2326, %v2331
    %v2338 = vlaneseq
    %v2339 = vshrl.u32 %v2338, 7
    %v2340 = vsub.s32 0, %v2339
    %v2341 = vrot.slane %v2274, %v2340
    %v2343 = vadd.f32 %v2333, %v2341
    %v2344 = vadd.f32 %v2334, %v2341
    %v2345 = vadd.f32 %v2335, %v2341
    %v2346 = vadd.f32 %v2336, %v2341
    %vm2347 = vcmp.ge.f32.partialorder %v2343, 0.0
    %vm2348 = vcmp.ge.f32.partialorder %v2344, 0.0
    %vm2349 = vcmp.ge.f32.partialorder %v2345, 0.0
    %vm2350 = vcmp.ge.f32.partialorder %v2346, 0.0
    %v2351 = vmul.f32 %v2343, 0.01
    %v2352 = vmul.f32 %v2344, 0.01
    %v2353 = vmul.f32 %v2345, 0.01
    %v2354 = vmul.f32 %v2346, 0.01
    %v2355 = vsel %vm2347, %v2343, %v2351
    %v2356 = vsel %vm2348, %v2344, %v2352
    %v2357 = vsel %vm2349, %v2345, %v2353
    %v2358 = vsel %vm2350, %v2346, %v2354
    %v2363 = vrot.slane %v2355, 6
    %v2364 = vrot.slane %v2356, 6
    %v2365 = vsel %vm322, %v2363, %v2364
    %v2366 = vrot.slane %v2357, 6
    %v2367 = vsel %vm322, %v2364, %v2366
    %v2368 = vrot.slane %v2358, 6
    %v2369 = vsel %vm322, %v2366, %v2368
    %v2374 = vsel %vm322, 0.0, %v2363
    %v2375 = vsel %vm343, %v2374, 0.0
    %v2376 = vsel %vm344, %v2365, 0.0
    %v2377 = vsel %vm345, %v2367, 0.0
    %v2378 = vsel %vm346, %v2369, 0.0
    %v2379 = vrot.slane %v2355, 7
    %v2380 = vrot.slane %v2356, 7
    %v2381 = vsel %vm351, %v2379, %v2380
    %v2382 = vrot.slane %v2357, 7
    %v2383 = vsel %vm351, %v2380, %v2382
    %v2384 = vrot.slane %v2358, 7
    %v2385 = vsel %vm351, %v2382, %v2384
    %v2390 = vsel %vm351, 0.0, %v2379
    %v2391 = vsel %vm372, %v2390, 0.0
    %v2392 = vsel %vm373, %v2381, 0.0
    %v2393 = vsel %vm374, %v2383, 0.0
    %v2394 = vsel %vm375, %v2385, 0.0
    %2399 = vrot.lane.b32.xlu0 %v2391, 16
    %v2400 = vpop.permute.xlu0 %2399
    %2401 = vrot.lane.b32.xlu0 %v2392, 16
    %v2402 = vpop.permute.xlu0 %2401
    %2403 = vrot.lane.b32.xlu0 %v2393, 16
    %v2404 = vpop.permute.xlu0 %2403
    %2405 = vrot.lane.b32.xlu0 %v2394, 16
    %v2406 = vpop.permute.xlu0 %2405
    %2411 = vrot.lane.b32.xlu0 %v2355, 32
    %v2412 = vpop.permute.xlu0 %2411
    %2413 = vrot.lane.b32.xlu0 %v2356, 32
    %v2414 = vpop.permute.xlu0 %2413
    %2415 = vrot.lane.b32.xlu0 %v2357, 32
    %v2416 = vpop.permute.xlu0 %2415
    %2417 = vrot.lane.b32.xlu0 %v2358, 32
    %v2418 = vpop.permute.xlu0 %2417
    %v2423 = vsel %vm232, %v2375, %v2400
    %v2424 = vsel %vm232, %v2376, %v2402
    %v2425 = vsel %vm232, %v2377, %v2404
    %v2426 = vsel %vm232, %v2378, %v2406
    %v2427 = vsel %vm174, %v2423, %v2412
    %v2428 = vsel %vm174, %v2424, %v2414
    %v2429 = vsel %vm174, %v2425, %v2416
    %v2430 = vsel %vm174, %v2426, %v2418
    %v2431 = vpack.c.bf16 %v2428, %v2427
    %v2432 = vpack.c.bf16 %v2430, %v2429
    %s2433 = scalar_lea.vmem %s5, 96
    %v2434 = vld [vmem:[%s2433] sm:$0xf]
    %v2435 = vld [vmem:[%s2433 + $0x4] sm:$0xf]
    %v2436 = vld [vmem:[%s2433 + $0x8] sm:$0xf]
    %v2437 = vld [vmem:[%s2433 + $0xc] sm:$0xf]
    %v2438 = vld [vmem:[%s2433 + $0x10] sm:$0xf]
    %v2439 = vld [vmem:[%s2433 + $0x14] sm:$0xf]
    %s2440 = scalar_lea.vmem [#allocation4], 4
    %v2441 = vld [vmem:[%s2440] sm:$0x1]
    %v2443 = vlaneseq
    %v2444 = vshrl.u32 %v2443, 7
    %v2445 = vsub.s32 0, %v2444
    %v2446 = vrot.slane %v2441, %v2445
    %v2454 = vunpack.c.l.b16 %v2434
    %v2455 = vunpack.c.l.b16 %v2435
    %v2456 = vunpack.c.l.b16 %v2436
    %v2457 = vunpack.c.l.b16 %v2437
    %v2458 = vunpack.c.l.b16 %v2438
    %v2459 = vunpack.c.l.b16 %v2439
    %v2460 = vpack.c.b16 %v2455, %v2454
    %v2461 = vpack.c.b16 %v2457, %v2456
    %v2462 = vpack.c.b16 %v2459, %v2458
    %v2467 = vsel %vm449, %v2431, 0
    %v2470 = vsel %vm449, %v2432, 0
    %2472 = vmatprep.subr.bf16.mxu0 0
    %2473 = vmatpush1.bf16.msra.mxu0 %v2460
    %2474 = vmatprep.subr.bf16.mxu0 0
    %2475 = vmatpush1.bf16.msra.mxu0 %v2461
    %2476 = vmatprep.subr.bf16.mxu0 0
    %2477 = vmatpush1.bf16.msra.mxu0 %v2462
    %2478 = vmatprep.subr.bf16.mxu0 0
    %2479 = vmatpush1.bf16.msra.mxu0 0
    %2480 = vmatprep.subr.bf16.mxu0 0
    %2481 = vmatpush1.bf16.msra.mxu0 0
    %2482 = vmatprep.subr.bf16.mxu0 0
    %2483 = vmatpush1.bf16.msra.mxu0 0
    %2484 = vmatprep.subr.bf16.mxu0 0
    %2485 = vmatpush1.bf16.msra.mxu0 0
    %2486 = vmatprep.subr.bf16.mxu0 0
    %2487 = vmatpush1.bf16.msra.mxu0 0
    %2488 = vmatprep.subr.bf16.mxu0 0
    %2489 = vmatpush1.bf16.msra.mxu0 0
    %2490 = vmatprep.subr.bf16.mxu0 0
    %2491 = vmatpush1.bf16.msra.mxu0 0
    %2492 = vmatprep.subr.bf16.mxu0 0
    %2493 = vmatpush1.bf16.msra.mxu0 0
    %2494 = vmatprep.subr.bf16.mxu0 0
    %2495 = vmatpush1.bf16.msra.mxu0 0
    %2496 = vmatprep.subr.bf16.mxu0 0
    %2497 = vmatpush1.bf16.msra.mxu0 0
    %2498 = vmatprep.subr.bf16.mxu0 0
    %2499 = vmatpush1.bf16.msra.mxu0 0
    %2500 = vmatprep.subr.bf16.mxu0 0
    %2501 = vmatpush1.bf16.msra.mxu0 0
    %2502 = vmatprep.subr.bf16.mxu0 0
    %2503 = vmatpush1.bf16.msra.mxu0 0
    %2504 = vmatprep.mubr.bf16.mxu0 0
    %2505 = vmatmul.mubr.bf16.gmra.mrb[0].mxu0 %v2467
    %v2506 = vpop.f32.mrb[0].mxu0
    %v2507 = vadd.f32 %v2446, %v2506
    %v2508 = vpop.f32.mrb[0].mxu0
    %v2509 = vpop.f32.mrb[0].mxu0
    %v2510 = vadd.f32 %v2446, %v2509
    %v2511 = vpop.f32.mrb[0].mxu0
    %2512 = vmatprep.mubr.bf16.mxu0 0
    %2513 = vmatmul.mubr.bf16.gmra.mrb[0].mxu0 %v2470
    %v2514 = vpop.f32.mrb[0].mxu0
    %v2515 = vadd.f32 %v2446, %v2514
    %v2516 = vpop.f32.mrb[0].mxu0
    %v2517 = vpop.f32.mrb[0].mxu0
    %v2518 = vadd.f32 %v2446, %v2517
    %v2519 = vpop.f32.mrb[0].mxu0
    %2520 = vdwg.mxu0
    %s2521 = scalar_lea.vmem %s7, 4
    %v2522 = vld [vmem:[%s2521] sm:$0x1]
    %s2523 = scalar_lea.vmem %s8, 4
    %v2524 = vld [vmem:[%s2523] sm:$0x1]
    %v2525 = vsel %vm232, %v2507, 0.0
    %2526 = vadd.xlane.f32.xlu0 %v2525
    %v2527 = vpop.xlane.xlu0 %2526
    %v2528 = vsel %vm232, %v2510, 0.0
    %2529 = vadd.xlane.f32.xlu0 %v2528
    %v2530 = vpop.xlane.xlu0 %2529
    %v2531 = vsel %vm232, %v2515, 0.0
    %2532 = vadd.xlane.f32.xlu0 %v2531
    %v2533 = vpop.xlane.xlu0 %2532
    %v2534 = vsel %vm232, %v2518, 0.0
    %2535 = vadd.xlane.f32.xlu0 %v2534
    %v2536 = vpop.xlane.xlu0 %2535
    %v2537 = vmul.f32 %v2527, %v245
    %v2538 = vmul.f32 %v2530, %v245
    %v2539 = vmul.f32 %v2533, %v245
    %v2540 = vmul.f32 %v2536, %v245
    %v2541 = vsub.f32 %v2507, %v2537
    %v2542 = vsub.f32 %v2510, %v2538
    %v2543 = vsub.f32 %v2515, %v2539
    %v2544 = vsub.f32 %v2518, %v2540
    %v2545 = vmul.f32 %v2541, %v2541
    %v2546 = vmul.f32 %v2542, %v2542
    %v2547 = vmul.f32 %v2543, %v2543
    %v2548 = vmul.f32 %v2544, %v2544
    %v2549 = vsel %vm232, %v2545, 0.0
    %2550 = vadd.xlane.f32.xlu0 %v2549
    %v2551 = vpop.xlane.xlu0 %2550
    %v2552 = vsel %vm232, %v2546, 0.0
    %2553 = vadd.xlane.f32.xlu0 %v2552
    %v2554 = vpop.xlane.xlu0 %2553
    %v2555 = vsel %vm232, %v2547, 0.0
    %2556 = vadd.xlane.f32.xlu0 %v2555
    %v2557 = vpop.xlane.xlu0 %2556
    %v2558 = vsel %vm232, %v2548, 0.0
    %2559 = vadd.xlane.f32.xlu0 %v2558
    %v2560 = vpop.xlane.xlu0 %2559
    %v2561 = vmul.f32 %v2551, %v245
    %v2562 = vmul.f32 %v2554, %v245
    %v2563 = vmul.f32 %v2557, %v245
    %v2564 = vmul.f32 %v2560, %v245
    %v2565 = vadd.f32 %v2561, 1e-05
    %v2566 = vadd.f32 %v2562, 1e-05
    %v2567 = vadd.f32 %v2563, 1e-05
    %v2568 = vadd.f32 %v2564, 1e-05
    %v2569 = vrsqrt.pop %v2565
    %v2570 = vrsqrt.pop %v2566
    %v2571 = vrsqrt.pop %v2567
    %v2572 = vrsqrt.pop %v2568
    %v2573 = vmul.f32 %v2541, %v2569
    %v2574 = vmul.f32 %v2542, %v2570
    %v2575 = vmul.f32 %v2543, %v2571
    %v2576 = vmul.f32 %v2544, %v2572
    %v2578 = vlaneseq
    %v2579 = vshrl.u32 %v2578, 7
    %v2580 = vsub.s32 0, %v2579
    %v2581 = vrot.slane %v2522, %v2580
    %v2583 = vmul.f32 %v2573, %v2581
    %v2584 = vmul.f32 %v2574, %v2581
    %v2585 = vmul.f32 %v2575, %v2581
    %v2586 = vmul.f32 %v2576, %v2581
    %v2588 = vlaneseq
    %v2589 = vshrl.u32 %v2588, 7
    %v2590 = vsub.s32 0, %v2589
    %v2591 = vrot.slane %v2524, %v2590
    %v2593 = vadd.f32 %v2583, %v2591
    %v2594 = vadd.f32 %v2584, %v2591
    %v2595 = vadd.f32 %v2585, %v2591
    %v2596 = vadd.f32 %v2586, %v2591
    %vm2597 = vcmp.ge.f32.partialorder %v2593, 0.0
    %vm2598 = vcmp.ge.f32.partialorder %v2594, 0.0
    %vm2599 = vcmp.ge.f32.partialorder %v2595, 0.0
    %vm2600 = vcmp.ge.f32.partialorder %v2596, 0.0
    %v2601 = vmul.f32 %v2593, 0.01
    %v2602 = vmul.f32 %v2594, 0.01
    %v2603 = vmul.f32 %v2595, 0.01
    %v2604 = vmul.f32 %v2596, 0.01
    %v2605 = vsel %vm2597, %v2593, %v2601
    %v2606 = vsel %vm2598, %v2594, %v2602
    %v2607 = vsel %vm2599, %v2595, %v2603
    %v2608 = vsel %vm2600, %v2596, %v2604
    %v2609 = vpack.c.bf16 %v2606, %v2605
    %v2610 = vpack.c.bf16 %v2608, %v2607
    %s2611 = scalar_lea.vmem [#allocation6], 32
    %v2612 = vld [vmem:[%s2611] sm:$0xf]
    %v2613 = vld [vmem:[%s2611 + $0x4] sm:$0xf]
    %s2614 = scalar_lea.vmem %s10, 4
    %v2615 = vld [vmem:[%s2614] sm:$0x1]
    %v2617 = vlaneseq
    %v2618 = vshrl.u32 %v2617, 7
    %v2619 = vsub.s32 0, %v2618
    %v2620 = vrot.slane %v2615, %v2619
    %v2624 = vunpack.c.l.b16 %v2612
    %v2625 = vunpack.c.l.b16 %v2613
    %v2626 = vpack.c.b16 %v2625, %v2624
    %v2629 = vsel %vm232, %v2609, 0
    %v2632 = vsel %vm232, %v2610, 0
    %2634 = vmatprep.subr.bf16.mxu0 0
    %2635 = vmatpush1.bf16.msra.mxu0 %v2626
    %2636 = vmatprep.subr.bf16.mxu0 0
    %2637 = vmatpush1.bf16.msra.mxu0 0
    %2638 = vmatprep.subr.bf16.mxu0 0
    %2639 = vmatpush1.bf16.msra.mxu0 0
    %2640 = vmatprep.subr.bf16.mxu0 0
    %2641 = vmatpush1.bf16.msra.mxu0 0
    %2642 = vmatprep.subr.bf16.mxu0 0
    %2643 = vmatpush1.bf16.msra.mxu0 0
    %2644 = vmatprep.subr.bf16.mxu0 0
    %2645 = vmatpush1.bf16.msra.mxu0 0
    %2646 = vmatprep.subr.bf16.mxu0 0
    %2647 = vmatpush1.bf16.msra.mxu0 0
    %2648 = vmatprep.subr.bf16.mxu0 0
    %2649 = vmatpush1.bf16.msra.mxu0 0
    %2650 = vmatprep.subr.bf16.mxu0 0
    %2651 = vmatpush1.bf16.msra.mxu0 0
    %2652 = vmatprep.subr.bf16.mxu0 0
    %2653 = vmatpush1.bf16.msra.mxu0 0
    %2654 = vmatprep.subr.bf16.mxu0 0
    %2655 = vmatpush1.bf16.msra.mxu0 0
    %2656 = vmatprep.subr.bf16.mxu0 0
    %2657 = vmatpush1.bf16.msra.mxu0 0
    %2658 = vmatprep.subr.bf16.mxu0 0
    %2659 = vmatpush1.bf16.msra.mxu0 0
    %2660 = vmatprep.subr.bf16.mxu0 0
    %2661 = vmatpush1.bf16.msra.mxu0 0
    %2662 = vmatprep.subr.bf16.mxu0 0
    %2663 = vmatpush1.bf16.msra.mxu0 0
    %2664 = vmatprep.subr.bf16.mxu0 0
    %2665 = vmatpush1.bf16.msra.mxu0 0
    %2666 = vmatprep.mubr.bf16.mxu0 0
    %2667 = vmatmul.mubr.bf16.gmra.mrb[0].mxu0 %v2629
    %v2668 = vpop.f32.mrb[0].mxu0
    %v2669 = vadd.f32 %v2620, %v2668
    %v2670 = vpop.f32.mrb[0].mxu0
    %v2671 = vpop.f32.mrb[0].mxu0
    %v2672 = vadd.f32 %v2620, %v2671
    %v2673 = vpop.f32.mrb[0].mxu0
    %2674 = vmatprep.mubr.bf16.mxu0 0
    %2675 = vmatmul.mubr.bf16.gmra.mrb[0].mxu0 %v2632
    %v2676 = vpop.f32.mrb[0].mxu0
    %v2677 = vadd.f32 %v2620, %v2676
    %v2678 = vpop.f32.mrb[0].mxu0
    %v2679 = vpop.f32.mrb[0].mxu0
    %v2680 = vadd.f32 %v2620, %v2679
    %v2681 = vpop.f32.mrb[0].mxu0
    %2682 = vdwg.mxu0
    %v2683 = vadd.f32 %v2173, %v2669
    %v2684 = vadd.f32 %v2174, %v2672
    %v2685 = vadd.f32 %v2175, %v2677
    %v2686 = vadd.f32 %v2176, %v2680
    %vm2687 = vcmp.ge.f32.partialorder %v2683, 0.0
    %vm2688 = vcmp.ge.f32.partialorder %v2684, 0.0
    %vm2689 = vcmp.ge.f32.partialorder %v2685, 0.0
    %vm2690 = vcmp.ge.f32.partialorder %v2686, 0.0
    %v2691 = vmul.f32 %v2683, 0.01
    %v2692 = vmul.f32 %v2684, 0.01
    %v2693 = vmul.f32 %v2685, 0.01
    %v2694 = vmul.f32 %v2686, 0.01
    %v2695 = vsel %vm2687, %v2683, %v2691
    %v2696 = vsel %vm2688, %v2684, %v2692
    %v2697 = vsel %vm2689, %v2685, %v2693
    %v2698 = vsel %vm2690, %v2686, %v2694
    %v2699 = vpack.c.bf16 %v2696, %v2695
    %v2700 = vpack.c.bf16 %v2698, %v2697
    %s2701 = scalar_lea.vmem %s1, 80
    %v2702 = vld [vmem:[%s2701] sm:$0xf]
    %v2703 = vld [vmem:[%s2701 + $0x4] sm:$0xf]
    %v2704 = vld [vmem:[%s2701 + $0x8] sm:$0xf]
    %v2705 = vld [vmem:[%s2701 + $0xc] sm:$0xf]
    %s2706 = scalar_lea.vmem [#allocation2], 5
    %v2707 = vld [vmem:[%s2706] sm:$0x1]
    %v2709 = vlaneseq
    %v2710 = vshrl.u32 %v2709, 7
    %v2711 = vsub.s32 0, %v2710
    %v2712 = vrot.slane %v2707, %v2711
    %v2718 = vunpack.c.l.b16 %v2702
    %v2719 = vunpack.c.l.b16 %v2703
    %v2720 = vunpack.c.l.b16 %v2704
    %v2721 = vunpack.c.l.b16 %v2705
    %v2722 = vpack.c.b16 %v2719, %v2718
    %v2723 = vpack.c.b16 %v2721, %v2720
    %v2727 = vsel %vm174, %v2699, 0
    %v2730 = vsel %vm174, %v2700, 0
    %2732 = vmatprep.subr.bf16.mxu0 0
    %2733 = vmatpush1.bf16.msra.mxu0 %v2722
    %2734 = vmatprep.subr.bf16.mxu0 0
    %2735 = vmatpush1.bf16.msra.mxu0 %v2723
    %2736 = vmatprep.subr.bf16.mxu0 0
    %2737 = vmatpush1.bf16.msra.mxu0 0
    %2738 = vmatprep.subr.bf16.mxu0 0
    %2739 = vmatpush1.bf16.msra.mxu0 0
    %2740 = vmatprep.subr.bf16.mxu0 0
    %2741 = vmatpush1.bf16.msra.mxu0 0
    %2742 = vmatprep.subr.bf16.mxu0 0
    %2743 = vmatpush1.bf16.msra.mxu0 0
    %2744 = vmatprep.subr.bf16.mxu0 0
    %2745 = vmatpush1.bf16.msra.mxu0 0
    %2746 = vmatprep.subr.bf16.mxu0 0
    %2747 = vmatpush1.bf16.msra.mxu0 0
    %2748 = vmatprep.subr.bf16.mxu0 0
    %2749 = vmatpush1.bf16.msra.mxu0 0
    %2750 = vmatprep.subr.bf16.mxu0 0
    %2751 = vmatpush1.bf16.msra.mxu0 0
    %2752 = vmatprep.subr.bf16.mxu0 0
    %2753 = vmatpush1.bf16.msra.mxu0 0
    %2754 = vmatprep.subr.bf16.mxu0 0
    %2755 = vmatpush1.bf16.msra.mxu0 0
    %2756 = vmatprep.subr.bf16.mxu0 0
    %2757 = vmatpush1.bf16.msra.mxu0 0
    %2758 = vmatprep.subr.bf16.mxu0 0
    %2759 = vmatpush1.bf16.msra.mxu0 0
    %2760 = vmatprep.subr.bf16.mxu0 0
    %2761 = vmatpush1.bf16.msra.mxu0 0
    %2762 = vmatprep.subr.bf16.mxu0 0
    %2763 = vmatpush1.bf16.msra.mxu0 0
    %2764 = vmatprep.mubr.bf16.mxu0 0
    %2765 = vmatmul.mubr.bf16.gmra.mrb[0].mxu0 %v2727
    %v2766 = vpop.f32.mrb[0].mxu0
    %v2767 = vadd.f32 %v2712, %v2766
    %v2768 = vpop.f32.mrb[0].mxu0
    %v2769 = vpop.f32.mrb[0].mxu0
    %v2770 = vadd.f32 %v2712, %v2769
    %v2771 = vpop.f32.mrb[0].mxu0
    %2772 = vmatprep.mubr.bf16.mxu0 0
    %2773 = vmatmul.mubr.bf16.gmra.mrb[0].mxu0 %v2730
    %v2774 = vpop.f32.mrb[0].mxu0
    %v2775 = vadd.f32 %v2712, %v2774
    %v2776 = vpop.f32.mrb[0].mxu0
    %v2777 = vpop.f32.mrb[0].mxu0
    %v2778 = vadd.f32 %v2712, %v2777
    %v2779 = vpop.f32.mrb[0].mxu0
    %2780 = vdwg.mxu0
    %s2781 = scalar_lea.vmem %s3, 5
    %v2782 = vld [vmem:[%s2781] sm:$0x1]
    %s2783 = scalar_lea.vmem %s4, 5
    %v2784 = vld [vmem:[%s2783] sm:$0x1]
    %v2785 = vsel %vm232, %v2767, 0.0
    %2786 = vadd.xlane.f32.xlu0 %v2785
    %v2787 = vpop.xlane.xlu0 %2786
    %v2788 = vsel %vm232, %v2770, 0.0
    %2789 = vadd.xlane.f32.xlu0 %v2788
    %v2790 = vpop.xlane.xlu0 %2789
    %v2791 = vsel %vm232, %v2775, 0.0
    %2792 = vadd.xlane.f32.xlu0 %v2791
    %v2793 = vpop.xlane.xlu0 %2792
    %v2794 = vsel %vm232, %v2778, 0.0
    %2795 = vadd.xlane.f32.xlu0 %v2794
    %v2796 = vpop.xlane.xlu0 %2795
    %v2797 = vmul.f32 %v2787, %v245
    %v2798 = vmul.f32 %v2790, %v245
    %v2799 = vmul.f32 %v2793, %v245
    %v2800 = vmul.f32 %v2796, %v245
    %v2801 = vsub.f32 %v2767, %v2797
    %v2802 = vsub.f32 %v2770, %v2798
    %v2803 = vsub.f32 %v2775, %v2799
    %v2804 = vsub.f32 %v2778, %v2800
    %v2805 = vmul.f32 %v2801, %v2801
    %v2806 = vmul.f32 %v2802, %v2802
    %v2807 = vmul.f32 %v2803, %v2803
    %v2808 = vmul.f32 %v2804, %v2804
    %v2809 = vsel %vm232, %v2805, 0.0
    %2810 = vadd.xlane.f32.xlu0 %v2809
    %v2811 = vpop.xlane.xlu0 %2810
    %v2812 = vsel %vm232, %v2806, 0.0
    %2813 = vadd.xlane.f32.xlu0 %v2812
    %v2814 = vpop.xlane.xlu0 %2813
    %v2815 = vsel %vm232, %v2807, 0.0
    %2816 = vadd.xlane.f32.xlu0 %v2815
    %v2817 = vpop.xlane.xlu0 %2816
    %v2818 = vsel %vm232, %v2808, 0.0
    %2819 = vadd.xlane.f32.xlu0 %v2818
    %v2820 = vpop.xlane.xlu0 %2819
    %v2821 = vmul.f32 %v2811, %v245
    %v2822 = vmul.f32 %v2814, %v245
    %v2823 = vmul.f32 %v2817, %v245
    %v2824 = vmul.f32 %v2820, %v245
    %v2825 = vadd.f32 %v2821, 1e-05
    %v2826 = vadd.f32 %v2822, 1e-05
    %v2827 = vadd.f32 %v2823, 1e-05
    %v2828 = vadd.f32 %v2824, 1e-05
    %v2829 = vrsqrt.pop %v2825
    %v2830 = vrsqrt.pop %v2826
    %v2831 = vrsqrt.pop %v2827
    %v2832 = vrsqrt.pop %v2828
    %v2833 = vmul.f32 %v2801, %v2829
    %v2834 = vmul.f32 %v2802, %v2830
    %v2835 = vmul.f32 %v2803, %v2831
    %v2836 = vmul.f32 %v2804, %v2832
    %v2838 = vlaneseq
    %v2839 = vshrl.u32 %v2838, 7
    %v2840 = vsub.s32 0, %v2839
    %v2841 = vrot.slane %v2782, %v2840
    %v2843 = vmul.f32 %v2833, %v2841
    %v2844 = vmul.f32 %v2834, %v2841
    %v2845 = vmul.f32 %v2835, %v2841
    %v2846 = vmul.f32 %v2836, %v2841
    %v2848 = vlaneseq
    %v2849 = vshrl.u32 %v2848, 7
    %v2850 = vsub.s32 0, %v2849
    %v2851 = vrot.slane %v2784, %v2850
    %v2853 = vadd.f32 %v2843, %v2851
    %v2854 = vadd.f32 %v2844, %v2851
    %v2855 = vadd.f32 %v2845, %v2851
    %v2856 = vadd.f32 %v2846, %v2851
    %vm2857 = vcmp.ge.f32.partialorder %v2853, 0.0
    %vm2858 = vcmp.ge.f32.partialorder %v2854, 0.0
    %vm2859 = vcmp.ge.f32.partialorder %v2855, 0.0
    %vm2860 = vcmp.ge.f32.partialorder %v2856, 0.0
    %v2861 = vmul.f32 %v2853, 0.01
    %v2862 = vmul.f32 %v2854, 0.01
    %v2863 = vmul.f32 %v2855, 0.01
    %v2864 = vmul.f32 %v2856, 0.01
    %v2865 = vsel %vm2857, %v2853, %v2861
    %v2866 = vsel %vm2858, %v2854, %v2862
    %v2867 = vsel %vm2859, %v2855, %v2863
    %v2868 = vsel %vm2860, %v2856, %v2864
    %v2873 = vrot.slane %v2865, 4
    %v2874 = vrot.slane %v2866, 4
    %v2875 = vsel %vm853, %v2873, %v2874
    %v2876 = vrot.slane %v2867, 4
    %v2877 = vsel %vm853, %v2874, %v2876
    %v2878 = vrot.slane %v2868, 4
    %v2879 = vsel %vm853, %v2876, %v2878
    %v2884 = vsel %vm853, 0.0, %v2873
    %v2885 = vsel %vm874, %v2884, 0.0
    %v2886 = vsel %vm875, %v2875, 0.0
    %v2887 = vsel %vm876, %v2877, 0.0
    %v2888 = vsel %vm877, %v2879, 0.0
    %v2889 = vrot.slane %v2865, 6
    %v2890 = vrot.slane %v2866, 6
    %v2891 = vsel %vm322, %v2889, %v2890
    %v2892 = vrot.slane %v2867, 6
    %v2893 = vsel %vm322, %v2890, %v2892
    %v2894 = vrot.slane %v2868, 6
    %v2895 = vsel %vm322, %v2892, %v2894
    %v2900 = vsel %vm322, 0.0, %v2889
    %v2901 = vsel %vm343, %v2900, 0.0
    %v2902 = vsel %vm344, %v2891, 0.0
    %v2903 = vsel %vm345, %v2893, 0.0
    %v2904 = vsel %vm346, %v2895, 0.0
    %2909 = vrot.lane.b32.xlu0 %v2901, 16
    %v2910 = vpop.permute.xlu0 %2909
    %2911 = vrot.lane.b32.xlu0 %v2902, 16
    %v2912 = vpop.permute.xlu0 %2911
    %2913 = vrot.lane.b32.xlu0 %v2903, 16
    %v2914 = vpop.permute.xlu0 %2913
    %2915 = vrot.lane.b32.xlu0 %v2904, 16
    %v2916 = vpop.permute.xlu0 %2915
    %2921 = vrot.lane.b32.xlu0 %v2865, 32
    %v2922 = vpop.permute.xlu0 %2921
    %2923 = vrot.lane.b32.xlu0 %v2866, 32
    %v2924 = vpop.permute.xlu0 %2923
    %2925 = vrot.lane.b32.xlu0 %v2867, 32
    %v2926 = vpop.permute.xlu0 %2925
    %2927 = vrot.lane.b32.xlu0 %v2868, 32
    %v2928 = vpop.permute.xlu0 %2927
    %v2933 = vsel %vm232, %v2885, %v2910
    %v2934 = vsel %vm232, %v2886, %v2912
    %v2935 = vsel %vm232, %v2887, %v2914
    %v2936 = vsel %vm232, %v2888, %v2916
    %v2937 = vsel %vm174, %v2933, %v2922
    %v2938 = vsel %vm174, %v2934, %v2924
    %v2939 = vsel %vm174, %v2935, %v2926
    %v2940 = vsel %vm174, %v2936, %v2928
    %v2941 = vpack.c.bf16 %v2938, %v2937
    %v2942 = vpack.c.bf16 %v2940, %v2939
    %s2943 = scalar_lea.vmem %s5, 120
    %v2944 = vld [vmem:[%s2943] sm:$0xf]
    %v2945 = vld [vmem:[%s2943 + $0x4] sm:$0xf]
    %v2946 = vld [vmem:[%s2943 + $0x8] sm:$0xf]
    %v2947 = vld [vmem:[%s2943 + $0xc] sm:$0xf]
    %v2948 = vld [vmem:[%s2943 + $0x10] sm:$0xf]
    %v2949 = vld [vmem:[%s2943 + $0x14] sm:$0xf]
    %s2950 = scalar_lea.vmem [#allocation4], 5
    %v2951 = vld [vmem:[%s2950] sm:$0x1]
    %v2953 = vlaneseq
    %v2954 = vshrl.u32 %v2953, 7
    %v2955 = vsub.s32 0, %v2954
    %v2956 = vrot.slane %v2951, %v2955
    %v2964 = vunpack.c.l.b16 %v2944
    %v2965 = vunpack.c.l.b16 %v2945
    %v2966 = vunpack.c.l.b16 %v2946
    %v2967 = vunpack.c.l.b16 %v2947
    %v2968 = vunpack.c.l.b16 %v2948
    %v2969 = vunpack.c.l.b16 %v2949
    %v2970 = vpack.c.b16 %v2965, %v2964
    %v2971 = vpack.c.b16 %v2967, %v2966
    %v2972 = vpack.c.b16 %v2969, %v2968
    %v2977 = vsel %vm449, %v2941, 0
    %v2980 = vsel %vm449, %v2942, 0
    %2982 = vmatprep.subr.bf16.mxu0 0
    %2983 = vmatpush1.bf16.msra.mxu0 %v2970
    %2984 = vmatprep.subr.bf16.mxu0 0
    %2985 = vmatpush1.bf16.msra.mxu0 %v2971
    %2986 = vmatprep.subr.bf16.mxu0 0
    %2987 = vmatpush1.bf16.msra.mxu0 %v2972
    %2988 = vmatprep.subr.bf16.mxu0 0
    %2989 = vmatpush1.bf16.msra.mxu0 0
    %2990 = vmatprep.subr.bf16.mxu0 0
    %2991 = vmatpush1.bf16.msra.mxu0 0
    %2992 = vmatprep.subr.bf16.mxu0 0
    %2993 = vmatpush1.bf16.msra.mxu0 0
    %2994 = vmatprep.subr.bf16.mxu0 0
    %2995 = vmatpush1.bf16.msra.mxu0 0
    %2996 = vmatprep.subr.bf16.mxu0 0
    %2997 = vmatpush1.bf16.msra.mxu0 0
    %2998 = vmatprep.subr.bf16.mxu0 0
    %2999 = vmatpush1.bf16.msra.mxu0 0
    %3000 = vmatprep.subr.bf16.mxu0 0
    %3001 = vmatpush1.bf16.msra.mxu0 0
    %3002 = vmatprep.subr.bf16.mxu0 0
    %3003 = vmatpush1.bf16.msra.mxu0 0
    %3004 = vmatprep.subr.bf16.mxu0 0
    %3005 = vmatpush1.bf16.msra.mxu0 0
    %3006 = vmatprep.subr.bf16.mxu0 0
    %3007 = vmatpush1.bf16.msra.mxu0 0
    %3008 = vmatprep.subr.bf16.mxu0 0
    %3009 = vmatpush1.bf16.msra.mxu0 0
    %3010 = vmatprep.subr.bf16.mxu0 0
    %3011 = vmatpush1.bf16.msra.mxu0 0
    %3012 = vmatprep.subr.bf16.mxu0 0
    %3013 = vmatpush1.bf16.msra.mxu0 0
    %3014 = vmatprep.mubr.bf16.mxu0 0
    %3015 = vmatmul.mubr.bf16.gmra.mrb[0].mxu0 %v2977
    %v3016 = vpop.f32.mrb[0].mxu0
    %v3017 = vadd.f32 %v2956, %v3016
    %v3018 = vpop.f32.mrb[0].mxu0
    %v3019 = vpop.f32.mrb[0].mxu0
    %v3020 = vadd.f32 %v2956, %v3019
    %v3021 = vpop.f32.mrb[0].mxu0
    %3022 = vmatprep.mubr.bf16.mxu0 0
    %3023 = vmatmul.mubr.bf16.gmra.mrb[0].mxu0 %v2980
    %v3024 = vpop.f32.mrb[0].mxu0
    %v3025 = vadd.f32 %v2956, %v3024
    %v3026 = vpop.f32.mrb[0].mxu0
    %v3027 = vpop.f32.mrb[0].mxu0
    %v3028 = vadd.f32 %v2956, %v3027
    %v3029 = vpop.f32.mrb[0].mxu0
    %3030 = vdwg.mxu0
    %s3031 = scalar_lea.vmem %s7, 5
    %v3032 = vld [vmem:[%s3031] sm:$0x1]
    %s3033 = scalar_lea.vmem %s8, 5
    %v3034 = vld [vmem:[%s3033] sm:$0x1]
    %v3035 = vsel %vm232, %v3017, 0.0
    %3036 = vadd.xlane.f32.xlu0 %v3035
    %v3037 = vpop.xlane.xlu0 %3036
    %v3038 = vsel %vm232, %v3020, 0.0
    %3039 = vadd.xlane.f32.xlu0 %v3038
    %v3040 = vpop.xlane.xlu0 %3039
    %v3041 = vsel %vm232, %v3025, 0.0
    %3042 = vadd.xlane.f32.xlu0 %v3041
    %v3043 = vpop.xlane.xlu0 %3042
    %v3044 = vsel %vm232, %v3028, 0.0
    %3045 = vadd.xlane.f32.xlu0 %v3044
    %v3046 = vpop.xlane.xlu0 %3045
    %v3047 = vmul.f32 %v3037, %v245
    %v3048 = vmul.f32 %v3040, %v245
    %v3049 = vmul.f32 %v3043, %v245
    %v3050 = vmul.f32 %v3046, %v245
    %v3051 = vsub.f32 %v3017, %v3047
    %v3052 = vsub.f32 %v3020, %v3048
    %v3053 = vsub.f32 %v3025, %v3049
    %v3054 = vsub.f32 %v3028, %v3050
    %v3055 = vmul.f32 %v3051, %v3051
    %v3056 = vmul.f32 %v3052, %v3052
    %v3057 = vmul.f32 %v3053, %v3053
    %v3058 = vmul.f32 %v3054, %v3054
    %v3059 = vsel %vm232, %v3055, 0.0
    %3060 = vadd.xlane.f32.xlu0 %v3059
    %v3061 = vpop.xlane.xlu0 %3060
    %v3062 = vsel %vm232, %v3056, 0.0
    %3063 = vadd.xlane.f32.xlu0 %v3062
    %v3064 = vpop.xlane.xlu0 %3063
    %v3065 = vsel %vm232, %v3057, 0.0
    %3066 = vadd.xlane.f32.xlu0 %v3065
    %v3067 = vpop.xlane.xlu0 %3066
    %v3068 = vsel %vm232, %v3058, 0.0
    %3069 = vadd.xlane.f32.xlu0 %v3068
    %v3070 = vpop.xlane.xlu0 %3069
    %v3071 = vmul.f32 %v3061, %v245
    %v3072 = vmul.f32 %v3064, %v245
    %v3073 = vmul.f32 %v3067, %v245
    %v3074 = vmul.f32 %v3070, %v245
    %v3075 = vadd.f32 %v3071, 1e-05
    %v3076 = vadd.f32 %v3072, 1e-05
    %v3077 = vadd.f32 %v3073, 1e-05
    %v3078 = vadd.f32 %v3074, 1e-05
    %v3079 = vrsqrt.pop %v3075
    %v3080 = vrsqrt.pop %v3076
    %v3081 = vrsqrt.pop %v3077
    %v3082 = vrsqrt.pop %v3078
    %v3083 = vmul.f32 %v3051, %v3079
    %v3084 = vmul.f32 %v3052, %v3080
    %v3085 = vmul.f32 %v3053, %v3081
    %v3086 = vmul.f32 %v3054, %v3082
    %v3088 = vlaneseq
    %v3089 = vshrl.u32 %v3088, 7
    %v3090 = vsub.s32 0, %v3089
    %v3091 = vrot.slane %v3032, %v3090
    %v3093 = vmul.f32 %v3083, %v3091
    %v3094 = vmul.f32 %v3084, %v3091
    %v3095 = vmul.f32 %v3085, %v3091
    %v3096 = vmul.f32 %v3086, %v3091
    %v3098 = vlaneseq
    %v3099 = vshrl.u32 %v3098, 7
    %v3100 = vsub.s32 0, %v3099
    %v3101 = vrot.slane %v3034, %v3100
    %v3103 = vadd.f32 %v3093, %v3101
    %v3104 = vadd.f32 %v3094, %v3101
    %v3105 = vadd.f32 %v3095, %v3101
    %v3106 = vadd.f32 %v3096, %v3101
    %vm3107 = vcmp.ge.f32.partialorder %v3103, 0.0
    %vm3108 = vcmp.ge.f32.partialorder %v3104, 0.0
    %vm3109 = vcmp.ge.f32.partialorder %v3105, 0.0
    %vm3110 = vcmp.ge.f32.partialorder %v3106, 0.0
    %v3111 = vmul.f32 %v3103, 0.01
    %v3112 = vmul.f32 %v3104, 0.01
    %v3113 = vmul.f32 %v3105, 0.01
    %v3114 = vmul.f32 %v3106, 0.01
    %v3115 = vsel %vm3107, %v3103, %v3111
    %v3116 = vsel %vm3108, %v3104, %v3112
    %v3117 = vsel %vm3109, %v3105, %v3113
    %v3118 = vsel %vm3110, %v3106, %v3114
    %v3119 = vpack.c.bf16 %v3116, %v3115
    %v3120 = vpack.c.bf16 %v3118, %v3117
    %s3121 = scalar_lea.vmem [#allocation6], 40
    %v3122 = vld [vmem:[%s3121] sm:$0xf]
    %v3123 = vld [vmem:[%s3121 + $0x4] sm:$0xf]
    %s3124 = scalar_lea.vmem %s10, 5
    %v3125 = vld [vmem:[%s3124] sm:$0x1]
    %v3127 = vlaneseq
    %v3128 = vshrl.u32 %v3127, 7
    %v3129 = vsub.s32 0, %v3128
    %v3130 = vrot.slane %v3125, %v3129
    %v3134 = vunpack.c.l.b16 %v3122
    %v3135 = vunpack.c.l.b16 %v3123
    %v3136 = vpack.c.b16 %v3135, %v3134
    %v3139 = vsel %vm232, %v3119, 0
    %v3142 = vsel %vm232, %v3120, 0
    %3144 = vmatprep.subr.bf16.mxu0 0
    %3145 = vmatpush1.bf16.msra.mxu0 %v3136
    %3146 = vmatprep.subr.bf16.mxu0 0
    %3147 = vmatpush1.bf16.msra.mxu0 0
    %3148 = vmatprep.subr.bf16.mxu0 0
    %3149 = vmatpush1.bf16.msra.mxu0 0
    %3150 = vmatprep.subr.bf16.mxu0 0
    %3151 = vmatpush1.bf16.msra.mxu0 0
    %3152 = vmatprep.subr.bf16.mxu0 0
    %3153 = vmatpush1.bf16.msra.mxu0 0
    %3154 = vmatprep.subr.bf16.mxu0 0
    %3155 = vmatpush1.bf16.msra.mxu0 0
    %3156 = vmatprep.subr.bf16.mxu0 0
    %3157 = vmatpush1.bf16.msra.mxu0 0
    %3158 = vmatprep.subr.bf16.mxu0 0
    %3159 = vmatpush1.bf16.msra.mxu0 0
    %3160 = vmatprep.subr.bf16.mxu0 0
    %3161 = vmatpush1.bf16.msra.mxu0 0
    %3162 = vmatprep.subr.bf16.mxu0 0
    %3163 = vmatpush1.bf16.msra.mxu0 0
    %3164 = vmatprep.subr.bf16.mxu0 0
    %3165 = vmatpush1.bf16.msra.mxu0 0
    %3166 = vmatprep.subr.bf16.mxu0 0
    %3167 = vmatpush1.bf16.msra.mxu0 0
    %3168 = vmatprep.subr.bf16.mxu0 0
    %3169 = vmatpush1.bf16.msra.mxu0 0
    %3170 = vmatprep.subr.bf16.mxu0 0
    %3171 = vmatpush1.bf16.msra.mxu0 0
    %3172 = vmatprep.subr.bf16.mxu0 0
    %3173 = vmatpush1.bf16.msra.mxu0 0
    %3174 = vmatprep.subr.bf16.mxu0 0
    %3175 = vmatpush1.bf16.msra.mxu0 0
    %3176 = vmatprep.mubr.bf16.mxu0 0
    %3177 = vmatmul.mubr.bf16.gmra.mrb[0].mxu0 %v3139
    %v3178 = vpop.f32.mrb[0].mxu0
    %v3179 = vadd.f32 %v3130, %v3178
    %v3180 = vpop.f32.mrb[0].mxu0
    %v3181 = vpop.f32.mrb[0].mxu0
    %v3182 = vadd.f32 %v3130, %v3181
    %v3183 = vpop.f32.mrb[0].mxu0
    %3184 = vmatprep.mubr.bf16.mxu0 0
    %3185 = vmatmul.mubr.bf16.gmra.mrb[0].mxu0 %v3142
    %v3186 = vpop.f32.mrb[0].mxu0
    %v3187 = vadd.f32 %v3130, %v3186
    %v3188 = vpop.f32.mrb[0].mxu0
    %v3189 = vpop.f32.mrb[0].mxu0
    %v3190 = vadd.f32 %v3130, %v3189
    %v3191 = vpop.f32.mrb[0].mxu0
    %3192 = vdwg.mxu0
    %v3193 = vadd.f32 %v2683, %v3179
    %v3194 = vadd.f32 %v2684, %v3182
    %v3195 = vadd.f32 %v2685, %v3187
    %v3196 = vadd.f32 %v2686, %v3190
    %vm3197 = vcmp.ge.f32.partialorder %v3193, 0.0
    %vm3198 = vcmp.ge.f32.partialorder %v3194, 0.0
    %vm3199 = vcmp.ge.f32.partialorder %v3195, 0.0
    %vm3200 = vcmp.ge.f32.partialorder %v3196, 0.0
    %v3201 = vmul.f32 %v3193, 0.01
    %v3202 = vmul.f32 %v3194, 0.01
    %v3203 = vmul.f32 %v3195, 0.01
    %v3204 = vmul.f32 %v3196, 0.01
    %v3205 = vsel %vm3197, %v3193, %v3201
    %v3206 = vsel %vm3198, %v3194, %v3202
    %v3207 = vsel %vm3199, %v3195, %v3203
    %v3208 = vsel %vm3200, %v3196, %v3204
    %v3209 = vpack.c.bf16 %v3206, %v3205
    %v3210 = vpack.c.bf16 %v3208, %v3207
    %s3211 = scalar_lea.vmem %s1, 96
    %v3212 = vld [vmem:[%s3211] sm:$0xf]
    %v3213 = vld [vmem:[%s3211 + $0x4] sm:$0xf]
    %v3214 = vld [vmem:[%s3211 + $0x8] sm:$0xf]
    %v3215 = vld [vmem:[%s3211 + $0xc] sm:$0xf]
    %s3216 = scalar_lea.vmem [#allocation2], 6
    %v3217 = vld [vmem:[%s3216] sm:$0x1]
    %v3219 = vlaneseq
    %v3220 = vshrl.u32 %v3219, 7
    %v3221 = vsub.s32 0, %v3220
    %v3222 = vrot.slane %v3217, %v3221
    %v3228 = vunpack.c.l.b16 %v3212
    %v3229 = vunpack.c.l.b16 %v3213
    %v3230 = vunpack.c.l.b16 %v3214
    %v3231 = vunpack.c.l.b16 %v3215
    %v3232 = vpack.c.b16 %v3229, %v3228
    %v3233 = vpack.c.b16 %v3231, %v3230
    %v3237 = vsel %vm174, %v3209, 0
    %v3240 = vsel %vm174, %v3210, 0
    %3242 = vmatprep.subr.bf16.mxu0 0
    %3243 = vmatpush1.bf16.msra.mxu0 %v3232
    %3244 = vmatprep.subr.bf16.mxu0 0
    %3245 = vmatpush1.bf16.msra.mxu0 %v3233
    %3246 = vmatprep.subr.bf16.mxu0 0
    %3247 = vmatpush1.bf16.msra.mxu0 0
    %3248 = vmatprep.subr.bf16.mxu0 0
    %3249 = vmatpush1.bf16.msra.mxu0 0
    %3250 = vmatprep.subr.bf16.mxu0 0
    %3251 = vmatpush1.bf16.msra.mxu0 0
    %3252 = vmatprep.subr.bf16.mxu0 0
    %3253 = vmatpush1.bf16.msra.mxu0 0
    %3254 = vmatprep.subr.bf16.mxu0 0
    %3255 = vmatpush1.bf16.msra.mxu0 0
    %3256 = vmatprep.subr.bf16.mxu0 0
    %3257 = vmatpush1.bf16.msra.mxu0 0
    %3258 = vmatprep.subr.bf16.mxu0 0
    %3259 = vmatpush1.bf16.msra.mxu0 0
    %3260 = vmatprep.subr.bf16.mxu0 0
    %3261 = vmatpush1.bf16.msra.mxu0 0
    %3262 = vmatprep.subr.bf16.mxu0 0
    %3263 = vmatpush1.bf16.msra.mxu0 0
    %3264 = vmatprep.subr.bf16.mxu0 0
    %3265 = vmatpush1.bf16.msra.mxu0 0
    %3266 = vmatprep.subr.bf16.mxu0 0
    %3267 = vmatpush1.bf16.msra.mxu0 0
    %3268 = vmatprep.subr.bf16.mxu0 0
    %3269 = vmatpush1.bf16.msra.mxu0 0
    %3270 = vmatprep.subr.bf16.mxu0 0
    %3271 = vmatpush1.bf16.msra.mxu0 0
    %3272 = vmatprep.subr.bf16.mxu0 0
    %3273 = vmatpush1.bf16.msra.mxu0 0
    %3274 = vmatprep.mubr.bf16.mxu0 0
    %3275 = vmatmul.mubr.bf16.gmra.mrb[0].mxu0 %v3237
    %v3276 = vpop.f32.mrb[0].mxu0
    %v3277 = vadd.f32 %v3222, %v3276
    %v3278 = vpop.f32.mrb[0].mxu0
    %v3279 = vpop.f32.mrb[0].mxu0
    %v3280 = vadd.f32 %v3222, %v3279
    %v3281 = vpop.f32.mrb[0].mxu0
    %3282 = vmatprep.mubr.bf16.mxu0 0
    %3283 = vmatmul.mubr.bf16.gmra.mrb[0].mxu0 %v3240
    %v3284 = vpop.f32.mrb[0].mxu0
    %v3285 = vadd.f32 %v3222, %v3284
    %v3286 = vpop.f32.mrb[0].mxu0
    %v3287 = vpop.f32.mrb[0].mxu0
    %v3288 = vadd.f32 %v3222, %v3287
    %v3289 = vpop.f32.mrb[0].mxu0
    %3290 = vdwg.mxu0
    %s3291 = scalar_lea.vmem %s3, 6
    %v3292 = vld [vmem:[%s3291] sm:$0x1]
    %s3293 = scalar_lea.vmem %s4, 6
    %v3294 = vld [vmem:[%s3293] sm:$0x1]
    %v3295 = vsel %vm232, %v3277, 0.0
    %3296 = vadd.xlane.f32.xlu0 %v3295
    %v3297 = vpop.xlane.xlu0 %3296
    %v3298 = vsel %vm232, %v3280, 0.0
    %3299 = vadd.xlane.f32.xlu0 %v3298
    %v3300 = vpop.xlane.xlu0 %3299
    %v3301 = vsel %vm232, %v3285, 0.0
    %3302 = vadd.xlane.f32.xlu0 %v3301
    %v3303 = vpop.xlane.xlu0 %3302
    %v3304 = vsel %vm232, %v3288, 0.0
    %3305 = vadd.xlane.f32.xlu0 %v3304
    %v3306 = vpop.xlane.xlu0 %3305
    %v3307 = vmul.f32 %v3297, %v245
    %v3308 = vmul.f32 %v3300, %v245
    %v3309 = vmul.f32 %v3303, %v245
    %v3310 = vmul.f32 %v3306, %v245
    %v3311 = vsub.f32 %v3277, %v3307
    %v3312 = vsub.f32 %v3280, %v3308
    %v3313 = vsub.f32 %v3285, %v3309
    %v3314 = vsub.f32 %v3288, %v3310
    %v3315 = vmul.f32 %v3311, %v3311
    %v3316 = vmul.f32 %v3312, %v3312
    %v3317 = vmul.f32 %v3313, %v3313
    %v3318 = vmul.f32 %v3314, %v3314
    %v3319 = vsel %vm232, %v3315, 0.0
    %3320 = vadd.xlane.f32.xlu0 %v3319
    %v3321 = vpop.xlane.xlu0 %3320
    %v3322 = vsel %vm232, %v3316, 0.0
    %3323 = vadd.xlane.f32.xlu0 %v3322
    %v3324 = vpop.xlane.xlu0 %3323
    %v3325 = vsel %vm232, %v3317, 0.0
    %3326 = vadd.xlane.f32.xlu0 %v3325
    %v3327 = vpop.xlane.xlu0 %3326
    %v3328 = vsel %vm232, %v3318, 0.0
    %3329 = vadd.xlane.f32.xlu0 %v3328
    %v3330 = vpop.xlane.xlu0 %3329
    %v3331 = vmul.f32 %v3321, %v245
    %v3332 = vmul.f32 %v3324, %v245
    %v3333 = vmul.f32 %v3327, %v245
    %v3334 = vmul.f32 %v3330, %v245
    %v3335 = vadd.f32 %v3331, 1e-05
    %v3336 = vadd.f32 %v3332, 1e-05
    %v3337 = vadd.f32 %v3333, 1e-05
    %v3338 = vadd.f32 %v3334, 1e-05
    %v3339 = vrsqrt.pop %v3335
    %v3340 = vrsqrt.pop %v3336
    %v3341 = vrsqrt.pop %v3337
    %v3342 = vrsqrt.pop %v3338
    %v3343 = vmul.f32 %v3311, %v3339
    %v3344 = vmul.f32 %v3312, %v3340
    %v3345 = vmul.f32 %v3313, %v3341
    %v3346 = vmul.f32 %v3314, %v3342
    %v3348 = vlaneseq
    %v3349 = vshrl.u32 %v3348, 7
    %v3350 = vsub.s32 0, %v3349
    %v3351 = vrot.slane %v3292, %v3350
    %v3353 = vmul.f32 %v3343, %v3351
    %v3354 = vmul.f32 %v3344, %v3351
    %v3355 = vmul.f32 %v3345, %v3351
    %v3356 = vmul.f32 %v3346, %v3351
    %v3358 = vlaneseq
    %v3359 = vshrl.u32 %v3358, 7
    %v3360 = vsub.s32 0, %v3359
    %v3361 = vrot.slane %v3294, %v3360
    %v3363 = vadd.f32 %v3353, %v3361
    %v3364 = vadd.f32 %v3354, %v3361
    %v3365 = vadd.f32 %v3355, %v3361
    %v3366 = vadd.f32 %v3356, %v3361
    %vm3367 = vcmp.ge.f32.partialorder %v3363, 0.0
    %vm3368 = vcmp.ge.f32.partialorder %v3364, 0.0
    %vm3369 = vcmp.ge.f32.partialorder %v3365, 0.0
    %vm3370 = vcmp.ge.f32.partialorder %v3366, 0.0
    %v3371 = vmul.f32 %v3363, 0.01
    %v3372 = vmul.f32 %v3364, 0.01
    %v3373 = vmul.f32 %v3365, 0.01
    %v3374 = vmul.f32 %v3366, 0.01
    %v3375 = vsel %vm3367, %v3363, %v3371
    %v3376 = vsel %vm3368, %v3364, %v3372
    %v3377 = vsel %vm3369, %v3365, %v3373
    %v3378 = vsel %vm3370, %v3366, %v3374
    %v3379 = vsel %vm1378, %v3375, 0.0
    %v3380 = vsel %vm1379, %v3376, 0.0
    %v3381 = vsel %vm1380, %v3377, 0.0
    %v3386 = vrot.slane %v3375, 4
    %v3387 = vrot.slane %v3376, 4
    %v3388 = vsel %vm853, %v3386, %v3387
    %v3389 = vrot.slane %v3377, 4
    %v3390 = vsel %vm853, %v3387, %v3389
    %v3391 = vrot.slane %v3378, 4
    %v3392 = vsel %vm853, %v3389, %v3391
    %v3397 = vsel %vm853, 0.0, %v3386
    %v3398 = vsel %vm874, %v3397, 0.0
    %v3399 = vsel %vm875, %v3388, 0.0
    %v3400 = vsel %vm876, %v3390, 0.0
    %v3401 = vsel %vm877, %v3392, 0.0
    %3406 = vrot.lane.b32.xlu0 %v3398, 16
    %v3407 = vpop.permute.xlu0 %3406
    %3408 = vrot.lane.b32.xlu0 %v3399, 16
    %v3409 = vpop.permute.xlu0 %3408
    %3410 = vrot.lane.b32.xlu0 %v3400, 16
    %v3411 = vpop.permute.xlu0 %3410
    %3412 = vrot.lane.b32.xlu0 %v3401, 16
    %v3413 = vpop.permute.xlu0 %3412
    %3418 = vrot.lane.b32.xlu0 %v3375, 32
    %v3419 = vpop.permute.xlu0 %3418
    %3420 = vrot.lane.b32.xlu0 %v3376, 32
    %v3421 = vpop.permute.xlu0 %3420
    %3422 = vrot.lane.b32.xlu0 %v3377, 32
    %v3423 = vpop.permute.xlu0 %3422
    %3424 = vrot.lane.b32.xlu0 %v3378, 32
    %v3425 = vpop.permute.xlu0 %3424
    %v3430 = vsel %vm232, 0.0, %v3407
    %v3431 = vsel %vm232, %v3379, %v3409
    %v3432 = vsel %vm232, %v3380, %v3411
    %v3433 = vsel %vm232, %v3381, %v3413
    %v3434 = vsel %vm174, %v3430, %v3419
    %v3435 = vsel %vm174, %v3431, %v3421
    %v3436 = vsel %vm174, %v3432, %v3423
    %v3437 = vsel %vm174, %v3433, %v3425
    %v3438 = vpack.c.bf16 %v3435, %v3434
    %v3439 = vpack.c.bf16 %v3437, %v3436
    %s3440 = scalar_lea.vmem %s5, 144
    %v3441 = vld [vmem:[%s3440] sm:$0xf]
    %v3442 = vld [vmem:[%s3440 + $0x4] sm:$0xf]
    %v3443 = vld [vmem:[%s3440 + $0x8] sm:$0xf]
    %v3444 = vld [vmem:[%s3440 + $0xc] sm:$0xf]
    %v3445 = vld [vmem:[%s3440 + $0x10] sm:$0xf]
    %v3446 = vld [vmem:[%s3440 + $0x14] sm:$0xf]
    %s3447 = scalar_lea.vmem [#allocation4], 6
    %v3448 = vld [vmem:[%s3447] sm:$0x1]
    %v3450 = vlaneseq
    %v3451 = vshrl.u32 %v3450, 7
    %v3452 = vsub.s32 0, %v3451
    %v3453 = vrot.slane %v3448, %v3452
    %v3461 = vunpack.c.l.b16 %v3441
    %v3462 = vunpack.c.l.b16 %v3442
    %v3463 = vunpack.c.l.b16 %v3443
    %v3464 = vunpack.c.l.b16 %v3444
    %v3465 = vunpack.c.l.b16 %v3445
    %v3466 = vunpack.c.l.b16 %v3446
    %v3467 = vpack.c.b16 %v3462, %v3461
    %v3468 = vpack.c.b16 %v3464, %v3463
    %v3469 = vpack.c.b16 %v3466, %v3465
    %v3474 = vsel %vm449, %v3438, 0
    %v3477 = vsel %vm449, %v3439, 0
    %3479 = vmatprep.subr.bf16.mxu0 0
    %3480 = vmatpush1.bf16.msra.mxu0 %v3467
    %3481 = vmatprep.subr.bf16.mxu0 0
    %3482 = vmatpush1.bf16.msra.mxu0 %v3468
    %3483 = vmatprep.subr.bf16.mxu0 0
    %3484 = vmatpush1.bf16.msra.mxu0 %v3469
    %3485 = vmatprep.subr.bf16.mxu0 0
    %3486 = vmatpush1.bf16.msra.mxu0 0
    %3487 = vmatprep.subr.bf16.mxu0 0
    %3488 = vmatpush1.bf16.msra.mxu0 0
    %3489 = vmatprep.subr.bf16.mxu0 0
    %3490 = vmatpush1.bf16.msra.mxu0 0
    %3491 = vmatprep.subr.bf16.mxu0 0
    %3492 = vmatpush1.bf16.msra.mxu0 0
    %3493 = vmatprep.subr.bf16.mxu0 0
    %3494 = vmatpush1.bf16.msra.mxu0 0
    %3495 = vmatprep.subr.bf16.mxu0 0
    %3496 = vmatpush1.bf16.msra.mxu0 0
    %3497 = vmatprep.subr.bf16.mxu0 0
    %3498 = vmatpush1.bf16.msra.mxu0 0
    %3499 = vmatprep.subr.bf16.mxu0 0
    %3500 = vmatpush1.bf16.msra.mxu0 0
    %3501 = vmatprep.subr.bf16.mxu0 0
    %3502 = vmatpush1.bf16.msra.mxu0 0
    %3503 = vmatprep.subr.bf16.mxu0 0
    %3504 = vmatpush1.bf16.msra.mxu0 0
    %3505 = vmatprep.subr.bf16.mxu0 0
    %3506 = vmatpush1.bf16.msra.mxu0 0
    %3507 = vmatprep.subr.bf16.mxu0 0
    %3508 = vmatpush1.bf16.msra.mxu0 0
    %3509 = vmatprep.subr.bf16.mxu0 0
    %3510 = vmatpush1.bf16.msra.mxu0 0
    %3511 = vmatprep.mubr.bf16.mxu0 0
    %3512 = vmatmul.mubr.bf16.gmra.mrb[0].mxu0 %v3474
    %v3513 = vpop.f32.mrb[0].mxu0
    %v3514 = vadd.f32 %v3453, %v3513
    %v3515 = vpop.f32.mrb[0].mxu0
    %v3516 = vpop.f32.mrb[0].mxu0
    %v3517 = vadd.f32 %v3453, %v3516
    %v3518 = vpop.f32.mrb[0].mxu0
    %3519 = vmatprep.mubr.bf16.mxu0 0
    %3520 = vmatmul.mubr.bf16.gmra.mrb[0].mxu0 %v3477
    %v3521 = vpop.f32.mrb[0].mxu0
    %v3522 = vadd.f32 %v3453, %v3521
    %v3523 = vpop.f32.mrb[0].mxu0
    %v3524 = vpop.f32.mrb[0].mxu0
    %v3525 = vadd.f32 %v3453, %v3524
    %v3526 = vpop.f32.mrb[0].mxu0
    %3527 = vdwg.mxu0
    %s3528 = scalar_lea.vmem %s7, 6
    %v3529 = vld [vmem:[%s3528] sm:$0x1]
    %s3530 = scalar_lea.vmem %s8, 6
    %v3531 = vld [vmem:[%s3530] sm:$0x1]
    %v3532 = vsel %vm232, %v3514, 0.0
    %3533 = vadd.xlane.f32.xlu0 %v3532
    %v3534 = vpop.xlane.xlu0 %3533
    %v3535 = vsel %vm232, %v3517, 0.0
    %3536 = vadd.xlane.f32.xlu0 %v3535
    %v3537 = vpop.xlane.xlu0 %3536
    %v3538 = vsel %vm232, %v3522, 0.0
    %3539 = vadd.xlane.f32.xlu0 %v3538
    %v3540 = vpop.xlane.xlu0 %3539
    %v3541 = vsel %vm232, %v3525, 0.0
    %3542 = vadd.xlane.f32.xlu0 %v3541
    %v3543 = vpop.xlane.xlu0 %3542
    %v3544 = vmul.f32 %v3534, %v245
    %v3545 = vmul.f32 %v3537, %v245
    %v3546 = vmul.f32 %v3540, %v245
    %v3547 = vmul.f32 %v3543, %v245
    %v3548 = vsub.f32 %v3514, %v3544
    %v3549 = vsub.f32 %v3517, %v3545
    %v3550 = vsub.f32 %v3522, %v3546
    %v3551 = vsub.f32 %v3525, %v3547
    %v3552 = vmul.f32 %v3548, %v3548
    %v3553 = vmul.f32 %v3549, %v3549
    %v3554 = vmul.f32 %v3550, %v3550
    %v3555 = vmul.f32 %v3551, %v3551
    %v3556 = vsel %vm232, %v3552, 0.0
    %3557 = vadd.xlane.f32.xlu0 %v3556
    %v3558 = vpop.xlane.xlu0 %3557
    %v3559 = vsel %vm232, %v3553, 0.0
    %3560 = vadd.xlane.f32.xlu0 %v3559
    %v3561 = vpop.xlane.xlu0 %3560
    %v3562 = vsel %vm232, %v3554, 0.0
    %3563 = vadd.xlane.f32.xlu0 %v3562
    %v3564 = vpop.xlane.xlu0 %3563
    %v3565 = vsel %vm232, %v3555, 0.0
    %3566 = vadd.xlane.f32.xlu0 %v3565
    %v3567 = vpop.xlane.xlu0 %3566
    %v3568 = vmul.f32 %v3558, %v245
    %v3569 = vmul.f32 %v3561, %v245
    %v3570 = vmul.f32 %v3564, %v245
    %v3571 = vmul.f32 %v3567, %v245
    %v3572 = vadd.f32 %v3568, 1e-05
    %v3573 = vadd.f32 %v3569, 1e-05
    %v3574 = vadd.f32 %v3570, 1e-05
    %v3575 = vadd.f32 %v3571, 1e-05
    %v3576 = vrsqrt.pop %v3572
    %v3577 = vrsqrt.pop %v3573
    %v3578 = vrsqrt.pop %v3574
    %v3579 = vrsqrt.pop %v3575
    %v3580 = vmul.f32 %v3548, %v3576
    %v3581 = vmul.f32 %v3549, %v3577
    %v3582 = vmul.f32 %v3550, %v3578
    %v3583 = vmul.f32 %v3551, %v3579
    %v3585 = vlaneseq
    %v3586 = vshrl.u32 %v3585, 7
    %v3587 = vsub.s32 0, %v3586
    %v3588 = vrot.slane %v3529, %v3587
    %v3590 = vmul.f32 %v3580, %v3588
    %v3591 = vmul.f32 %v3581, %v3588
    %v3592 = vmul.f32 %v3582, %v3588
    %v3593 = vmul.f32 %v3583, %v3588
    %v3595 = vlaneseq
    %v3596 = vshrl.u32 %v3595, 7
    %v3597 = vsub.s32 0, %v3596
    %v3598 = vrot.slane %v3531, %v3597
    %v3600 = vadd.f32 %v3590, %v3598
    %v3601 = vadd.f32 %v3591, %v3598
    %v3602 = vadd.f32 %v3592, %v3598
    %v3603 = vadd.f32 %v3593, %v3598
    %vm3604 = vcmp.ge.f32.partialorder %v3600, 0.0
    %vm3605 = vcmp.ge.f32.partialorder %v3601, 0.0
    %vm3606 = vcmp.ge.f32.partialorder %v3602, 0.0
    %vm3607 = vcmp.ge.f32.partialorder %v3603, 0.0
    %v3608 = vmul.f32 %v3600, 0.01
    %v3609 = vmul.f32 %v3601, 0.01
    %v3610 = vmul.f32 %v3602, 0.01
    %v3611 = vmul.f32 %v3603, 0.01
    %v3612 = vsel %vm3604, %v3600, %v3608
    %v3613 = vsel %vm3605, %v3601, %v3609
    %v3614 = vsel %vm3606, %v3602, %v3610
    %v3615 = vsel %vm3607, %v3603, %v3611
    %v3616 = vpack.c.bf16 %v3613, %v3612
    %v3617 = vpack.c.bf16 %v3615, %v3614
    %s3618 = scalar_lea.vmem [#allocation6], 48
    %v3619 = vld [vmem:[%s3618] sm:$0xf]
    %v3620 = vld [vmem:[%s3618 + $0x4] sm:$0xf]
    %s3621 = scalar_lea.vmem %s10, 6
    %v3622 = vld [vmem:[%s3621] sm:$0x1]
    %v3624 = vlaneseq
    %v3625 = vshrl.u32 %v3624, 7
    %v3626 = vsub.s32 0, %v3625
    %v3627 = vrot.slane %v3622, %v3626
    %v3631 = vunpack.c.l.b16 %v3619
    %v3632 = vunpack.c.l.b16 %v3620
    %v3633 = vpack.c.b16 %v3632, %v3631
    %v3636 = vsel %vm232, %v3616, 0
    %v3639 = vsel %vm232, %v3617, 0
    %3641 = vmatprep.subr.bf16.mxu0 0
    %3642 = vmatpush1.bf16.msra.mxu0 %v3633
    %3643 = vmatprep.subr.bf16.mxu0 0
    %3644 = vmatpush1.bf16.msra.mxu0 0
    %3645 = vmatprep.subr.bf16.mxu0 0
    %3646 = vmatpush1.bf16.msra.mxu0 0
    %3647 = vmatprep.subr.bf16.mxu0 0
    %3648 = vmatpush1.bf16.msra.mxu0 0
    %3649 = vmatprep.subr.bf16.mxu0 0
    %3650 = vmatpush1.bf16.msra.mxu0 0
    %3651 = vmatprep.subr.bf16.mxu0 0
    %3652 = vmatpush1.bf16.msra.mxu0 0
    %3653 = vmatprep.subr.bf16.mxu0 0
    %3654 = vmatpush1.bf16.msra.mxu0 0
    %3655 = vmatprep.subr.bf16.mxu0 0
    %3656 = vmatpush1.bf16.msra.mxu0 0
    %3657 = vmatprep.subr.bf16.mxu0 0
    %3658 = vmatpush1.bf16.msra.mxu0 0
    %3659 = vmatprep.subr.bf16.mxu0 0
    %3660 = vmatpush1.bf16.msra.mxu0 0
    %3661 = vmatprep.subr.bf16.mxu0 0
    %3662 = vmatpush1.bf16.msra.mxu0 0
    %3663 = vmatprep.subr.bf16.mxu0 0
    %3664 = vmatpush1.bf16.msra.mxu0 0
    %3665 = vmatprep.subr.bf16.mxu0 0
    %3666 = vmatpush1.bf16.msra.mxu0 0
    %3667 = vmatprep.subr.bf16.mxu0 0
    %3668 = vmatpush1.bf16.msra.mxu0 0
    %3669 = vmatprep.subr.bf16.mxu0 0
    %3670 = vmatpush1.bf16.msra.mxu0 0
    %3671 = vmatprep.subr.bf16.mxu0 0
    %3672 = vmatpush1.bf16.msra.mxu0 0
    %3673 = vmatprep.mubr.bf16.mxu0 0
    %3674 = vmatmul.mubr.bf16.gmra.mrb[0].mxu0 %v3636
    %v3675 = vpop.f32.mrb[0].mxu0
    %v3676 = vadd.f32 %v3627, %v3675
    %v3677 = vpop.f32.mrb[0].mxu0
    %v3678 = vpop.f32.mrb[0].mxu0
    %v3679 = vadd.f32 %v3627, %v3678
    %v3680 = vpop.f32.mrb[0].mxu0
    %3681 = vmatprep.mubr.bf16.mxu0 0
    %3682 = vmatmul.mubr.bf16.gmra.mrb[0].mxu0 %v3639
    %v3683 = vpop.f32.mrb[0].mxu0
    %v3684 = vadd.f32 %v3627, %v3683
    %v3685 = vpop.f32.mrb[0].mxu0
    %v3686 = vpop.f32.mrb[0].mxu0
    %v3687 = vadd.f32 %v3627, %v3686
    %v3688 = vpop.f32.mrb[0].mxu0
    %3689 = vdwg.mxu0
    %v3690 = vadd.f32 %v3193, %v3676
    %v3691 = vadd.f32 %v3194, %v3679
    %v3692 = vadd.f32 %v3195, %v3684
    %v3693 = vadd.f32 %v3196, %v3687
    %vm3694 = vcmp.ge.f32.partialorder %v3690, 0.0
    %vm3695 = vcmp.ge.f32.partialorder %v3691, 0.0
    %vm3696 = vcmp.ge.f32.partialorder %v3692, 0.0
    %vm3697 = vcmp.ge.f32.partialorder %v3693, 0.0
    %v3698 = vmul.f32 %v3690, 0.01
    %v3699 = vmul.f32 %v3691, 0.01
    %v3700 = vmul.f32 %v3692, 0.01
    %v3701 = vmul.f32 %v3693, 0.01
    %v3702 = vsel %vm3694, %v3690, %v3698
    %v3703 = vsel %vm3695, %v3691, %v3699
    %v3704 = vsel %vm3696, %v3692, %v3700
    %v3705 = vsel %vm3697, %v3693, %v3701
    %v3706 = vpack.c.bf16 %v3703, %v3702
    %v3707 = vpack.c.bf16 %v3705, %v3704
    %s3708 = scalar_lea.vmem %s1, 112
    %v3709 = vld [vmem:[%s3708] sm:$0xf]
    %v3710 = vld [vmem:[%s3708 + $0x4] sm:$0xf]
    %v3711 = vld [vmem:[%s3708 + $0x8] sm:$0xf]
    %v3712 = vld [vmem:[%s3708 + $0xc] sm:$0xf]
    %s3713 = scalar_lea.vmem [#allocation2], 7
    %v3714 = vld [vmem:[%s3713] sm:$0x1]
    %v3716 = vlaneseq
    %v3717 = vshrl.u32 %v3716, 7
    %v3718 = vsub.s32 0, %v3717
    %v3719 = vrot.slane %v3714, %v3718
    %v3725 = vunpack.c.l.b16 %v3709
    %v3726 = vunpack.c.l.b16 %v3710
    %v3727 = vunpack.c.l.b16 %v3711
    %v3728 = vunpack.c.l.b16 %v3712
    %v3729 = vpack.c.b16 %v3726, %v3725
    %v3730 = vpack.c.b16 %v3728, %v3727
    %v3734 = vsel %vm174, %v3706, 0
    %v3737 = vsel %vm174, %v3707, 0
    %3739 = vmatprep.subr.bf16.mxu0 0
    %3740 = vmatpush1.bf16.msra.mxu0 %v3729
    %3741 = vmatprep.subr.bf16.mxu0 0
    %3742 = vmatpush1.bf16.msra.mxu0 %v3730
    %3743 = vmatprep.subr.bf16.mxu0 0
    %3744 = vmatpush1.bf16.msra.mxu0 0
    %3745 = vmatprep.subr.bf16.mxu0 0
    %3746 = vmatpush1.bf16.msra.mxu0 0
    %3747 = vmatprep.subr.bf16.mxu0 0
    %3748 = vmatpush1.bf16.msra.mxu0 0
    %3749 = vmatprep.subr.bf16.mxu0 0
    %3750 = vmatpush1.bf16.msra.mxu0 0
    %3751 = vmatprep.subr.bf16.mxu0 0
    %3752 = vmatpush1.bf16.msra.mxu0 0
    %3753 = vmatprep.subr.bf16.mxu0 0
    %3754 = vmatpush1.bf16.msra.mxu0 0
    %3755 = vmatprep.subr.bf16.mxu0 0
    %3756 = vmatpush1.bf16.msra.mxu0 0
    %3757 = vmatprep.subr.bf16.mxu0 0
    %3758 = vmatpush1.bf16.msra.mxu0 0
    %3759 = vmatprep.subr.bf16.mxu0 0
    %3760 = vmatpush1.bf16.msra.mxu0 0
    %3761 = vmatprep.subr.bf16.mxu0 0
    %3762 = vmatpush1.bf16.msra.mxu0 0
    %3763 = vmatprep.subr.bf16.mxu0 0
    %3764 = vmatpush1.bf16.msra.mxu0 0
    %3765 = vmatprep.subr.bf16.mxu0 0
    %3766 = vmatpush1.bf16.msra.mxu0 0
    %3767 = vmatprep.subr.bf16.mxu0 0
    %3768 = vmatpush1.bf16.msra.mxu0 0
    %3769 = vmatprep.subr.bf16.mxu0 0
    %3770 = vmatpush1.bf16.msra.mxu0 0
    %3771 = vmatprep.mubr.bf16.mxu0 0
    %3772 = vmatmul.mubr.bf16.gmra.mrb[0].mxu0 %v3734
    %v3773 = vpop.f32.mrb[0].mxu0
    %v3774 = vadd.f32 %v3719, %v3773
    %v3775 = vpop.f32.mrb[0].mxu0
    %v3776 = vpop.f32.mrb[0].mxu0
    %v3777 = vadd.f32 %v3719, %v3776
    %v3778 = vpop.f32.mrb[0].mxu0
    %3779 = vmatprep.mubr.bf16.mxu0 0
    %3780 = vmatmul.mubr.bf16.gmra.mrb[0].mxu0 %v3737
    %v3781 = vpop.f32.mrb[0].mxu0
    %v3782 = vadd.f32 %v3719, %v3781
    %v3783 = vpop.f32.mrb[0].mxu0
    %v3784 = vpop.f32.mrb[0].mxu0
    %v3785 = vadd.f32 %v3719, %v3784
    %v3786 = vpop.f32.mrb[0].mxu0
    %3787 = vdwg.mxu0
    %s3788 = scalar_lea.vmem %s3, 7
    %v3789 = vld [vmem:[%s3788] sm:$0x1]
    %s3790 = scalar_lea.vmem %s4, 7
    %v3791 = vld [vmem:[%s3790] sm:$0x1]
    %v3792 = vsel %vm232, %v3774, 0.0
    %3793 = vadd.xlane.f32.xlu0 %v3792
    %v3794 = vpop.xlane.xlu0 %3793
    %v3795 = vsel %vm232, %v3777, 0.0
    %3796 = vadd.xlane.f32.xlu0 %v3795
    %v3797 = vpop.xlane.xlu0 %3796
    %v3798 = vsel %vm232, %v3782, 0.0
    %3799 = vadd.xlane.f32.xlu0 %v3798
    %v3800 = vpop.xlane.xlu0 %3799
    %v3801 = vsel %vm232, %v3785, 0.0
    %3802 = vadd.xlane.f32.xlu0 %v3801
    %v3803 = vpop.xlane.xlu0 %3802
    %v3804 = vmul.f32 %v3794, %v245
    %v3805 = vmul.f32 %v3797, %v245
    %v3806 = vmul.f32 %v3800, %v245
    %v3807 = vmul.f32 %v3803, %v245
    %v3808 = vsub.f32 %v3774, %v3804
    %v3809 = vsub.f32 %v3777, %v3805
    %v3810 = vsub.f32 %v3782, %v3806
    %v3811 = vsub.f32 %v3785, %v3807
    %v3812 = vmul.f32 %v3808, %v3808
    %v3813 = vmul.f32 %v3809, %v3809
    %v3814 = vmul.f32 %v3810, %v3810
    %v3815 = vmul.f32 %v3811, %v3811
    %v3816 = vsel %vm232, %v3812, 0.0
    %3817 = vadd.xlane.f32.xlu0 %v3816
    %v3818 = vpop.xlane.xlu0 %3817
    %v3819 = vsel %vm232, %v3813, 0.0
    %3820 = vadd.xlane.f32.xlu0 %v3819
    %v3821 = vpop.xlane.xlu0 %3820
    %v3822 = vsel %vm232, %v3814, 0.0
    %3823 = vadd.xlane.f32.xlu0 %v3822
    %v3824 = vpop.xlane.xlu0 %3823
    %v3825 = vsel %vm232, %v3815, 0.0
    %3826 = vadd.xlane.f32.xlu0 %v3825
    %v3827 = vpop.xlane.xlu0 %3826
    %v3828 = vmul.f32 %v3818, %v245
    %v3829 = vmul.f32 %v3821, %v245
    %v3830 = vmul.f32 %v3824, %v245
    %v3831 = vmul.f32 %v3827, %v245
    %v3832 = vadd.f32 %v3828, 1e-05
    %v3833 = vadd.f32 %v3829, 1e-05
    %v3834 = vadd.f32 %v3830, 1e-05
    %v3835 = vadd.f32 %v3831, 1e-05
    %v3836 = vrsqrt.pop %v3832
    %v3837 = vrsqrt.pop %v3833
    %v3838 = vrsqrt.pop %v3834
    %v3839 = vrsqrt.pop %v3835
    %v3840 = vmul.f32 %v3808, %v3836
    %v3841 = vmul.f32 %v3809, %v3837
    %v3842 = vmul.f32 %v3810, %v3838
    %v3843 = vmul.f32 %v3811, %v3839
    %v3845 = vlaneseq
    %v3846 = vshrl.u32 %v3845, 7
    %v3847 = vsub.s32 0, %v3846
    %v3848 = vrot.slane %v3789, %v3847
    %v3850 = vmul.f32 %v3840, %v3848
    %v3851 = vmul.f32 %v3841, %v3848
    %v3852 = vmul.f32 %v3842, %v3848
    %v3853 = vmul.f32 %v3843, %v3848
    %v3855 = vlaneseq
    %v3856 = vshrl.u32 %v3855, 7
    %v3857 = vsub.s32 0, %v3856
    %v3858 = vrot.slane %v3791, %v3857
    %v3860 = vadd.f32 %v3850, %v3858
    %v3861 = vadd.f32 %v3851, %v3858
    %v3862 = vadd.f32 %v3852, %v3858
    %v3863 = vadd.f32 %v3853, %v3858
    %vm3864 = vcmp.ge.f32.partialorder %v3860, 0.0
    %vm3865 = vcmp.ge.f32.partialorder %v3861, 0.0
    %vm3866 = vcmp.ge.f32.partialorder %v3862, 0.0
    %vm3867 = vcmp.ge.f32.partialorder %v3863, 0.0
    %v3868 = vmul.f32 %v3860, 0.01
    %v3869 = vmul.f32 %v3861, 0.01
    %v3870 = vmul.f32 %v3862, 0.01
    %v3871 = vmul.f32 %v3863, 0.01
    %v3872 = vsel %vm3864, %v3860, %v3868
    %v3873 = vsel %vm3865, %v3861, %v3869
    %v3874 = vsel %vm3866, %v3862, %v3870
    %v3875 = vsel %vm3867, %v3863, %v3871
    %v3876 = vsel %vm1378, %v3872, 0.0
    %v3877 = vsel %vm1379, %v3873, 0.0
    %v3878 = vsel %vm1380, %v3874, 0.0
    %3882 = vrot.lane.b32.xlu0 %v3876, 16
    %v3883 = vpop.permute.xlu0 %3882
    %3884 = vrot.lane.b32.xlu0 %v3877, 16
    %v3885 = vpop.permute.xlu0 %3884
    %3886 = vrot.lane.b32.xlu0 %v3878, 16
    %v3887 = vpop.permute.xlu0 %3886
    %3895 = vrot.lane.b32.xlu0 %v3872, 32
    %v3896 = vpop.permute.xlu0 %3895
    %3897 = vrot.lane.b32.xlu0 %v3873, 32
    %v3898 = vpop.permute.xlu0 %3897
    %3899 = vrot.lane.b32.xlu0 %v3874, 32
    %v3900 = vpop.permute.xlu0 %3899
    %3901 = vrot.lane.b32.xlu0 %v3875, 32
    %v3902 = vpop.permute.xlu0 %3901
    %v3907 = vsel %vm232, 0.0, %v3883
    %v3908 = vsel %vm232, 0.0, %v3885
    %v3909 = vsel %vm232, 0.0, %v3887
    %v3910 = vsel %vm174, %v1913, %v3896
    %v3911 = vsel %vm174, %v3907, %v3898
    %v3912 = vsel %vm174, %v3908, %v3900
    %v3913 = vsel %vm174, %v3909, %v3902
    %v3914 = vpack.c.bf16 %v3911, %v3910
    %v3915 = vpack.c.bf16 %v3913, %v3912
    %s3916 = scalar_lea.vmem %s5, 168
    %v3917 = vld [vmem:[%s3916] sm:$0xf]
    %v3918 = vld [vmem:[%s3916 + $0x4] sm:$0xf]
    %v3919 = vld [vmem:[%s3916 + $0x8] sm:$0xf]
    %v3920 = vld [vmem:[%s3916 + $0xc] sm:$0xf]
    %v3921 = vld [vmem:[%s3916 + $0x10] sm:$0xf]
    %v3922 = vld [vmem:[%s3916 + $0x14] sm:$0xf]
    %s3923 = scalar_lea.vmem [#allocation4], 7
    %v3924 = vld [vmem:[%s3923] sm:$0x1]
    %v3926 = vlaneseq
    %v3927 = vshrl.u32 %v3926, 7
    %v3928 = vsub.s32 0, %v3927
    %v3929 = vrot.slane %v3924, %v3928
    %v3937 = vunpack.c.l.b16 %v3917
    %v3938 = vunpack.c.l.b16 %v3918
    %v3939 = vunpack.c.l.b16 %v3919
    %v3940 = vunpack.c.l.b16 %v3920
    %v3941 = vunpack.c.l.b16 %v3921
    %v3942 = vunpack.c.l.b16 %v3922
    %v3943 = vpack.c.b16 %v3938, %v3937
    %v3944 = vpack.c.b16 %v3940, %v3939
    %v3945 = vpack.c.b16 %v3942, %v3941
    %v3950 = vsel %vm449, %v3914, 0
    %v3953 = vsel %vm449, %v3915, 0
    %3955 = vmatprep.subr.bf16.mxu0 0
    %3956 = vmatpush1.bf16.msra.mxu0 %v3943
    %3957 = vmatprep.subr.bf16.mxu0 0
    %3958 = vmatpush1.bf16.msra.mxu0 %v3944
    %3959 = vmatprep.subr.bf16.mxu0 0
    %3960 = vmatpush1.bf16.msra.mxu0 %v3945
    %3961 = vmatprep.subr.bf16.mxu0 0
    %3962 = vmatpush1.bf16.msra.mxu0 0
    %3963 = vmatprep.subr.bf16.mxu0 0
    %3964 = vmatpush1.bf16.msra.mxu0 0
    %3965 = vmatprep.subr.bf16.mxu0 0
    %3966 = vmatpush1.bf16.msra.mxu0 0
    %3967 = vmatprep.subr.bf16.mxu0 0
    %3968 = vmatpush1.bf16.msra.mxu0 0
    %3969 = vmatprep.subr.bf16.mxu0 0
    %3970 = vmatpush1.bf16.msra.mxu0 0
    %3971 = vmatprep.subr.bf16.mxu0 0
    %3972 = vmatpush1.bf16.msra.mxu0 0
    %3973 = vmatprep.subr.bf16.mxu0 0
    %3974 = vmatpush1.bf16.msra.mxu0 0
    %3975 = vmatprep.subr.bf16.mxu0 0
    %3976 = vmatpush1.bf16.msra.mxu0 0
    %3977 = vmatprep.subr.bf16.mxu0 0
    %3978 = vmatpush1.bf16.msra.mxu0 0
    %3979 = vmatprep.subr.bf16.mxu0 0
    %3980 = vmatpush1.bf16.msra.mxu0 0
    %3981 = vmatprep.subr.bf16.mxu0 0
    %3982 = vmatpush1.bf16.msra.mxu0 0
    %3983 = vmatprep.subr.bf16.mxu0 0
    %3984 = vmatpush1.bf16.msra.mxu0 0
    %3985 = vmatprep.subr.bf16.mxu0 0
    %3986 = vmatpush1.bf16.msra.mxu0 0
    %3987 = vmatprep.mubr.bf16.mxu0 0
    %3988 = vmatmul.mubr.bf16.gmra.mrb[0].mxu0 %v3950
    %v3989 = vpop.f32.mrb[0].mxu0
    %v3990 = vadd.f32 %v3929, %v3989
    %v3991 = vpop.f32.mrb[0].mxu0
    %v3992 = vpop.f32.mrb[0].mxu0
    %v3993 = vadd.f32 %v3929, %v3992
    %v3994 = vpop.f32.mrb[0].mxu0
    %3995 = vmatprep.mubr.bf16.mxu0 0
    %3996 = vmatmul.mubr.bf16.gmra.mrb[0].mxu0 %v3953
    %v3997 = vpop.f32.mrb[0].mxu0
    %v3998 = vadd.f32 %v3929, %v3997
    %v3999 = vpop.f32.mrb[0].mxu0
    %v4000 = vpop.f32.mrb[0].mxu0
    %v4001 = vadd.f32 %v3929, %v4000
    %v4002 = vpop.f32.mrb[0].mxu0
    %4003 = vdwg.mxu0
    %s4004 = scalar_lea.vmem %s7, 7
    %v4005 = vld [vmem:[%s4004] sm:$0x1]
    %s4006 = scalar_lea.vmem %s8, 7
    %v4007 = vld [vmem:[%s4006] sm:$0x1]
    %v4008 = vsel %vm232, %v3990, 0.0
    %4009 = vadd.xlane.f32.xlu0 %v4008
    %v4010 = vpop.xlane.xlu0 %4009
    %v4011 = vsel %vm232, %v3993, 0.0
    %4012 = vadd.xlane.f32.xlu0 %v4011
    %v4013 = vpop.xlane.xlu0 %4012
    %v4014 = vsel %vm232, %v3998, 0.0
    %4015 = vadd.xlane.f32.xlu0 %v4014
    %v4016 = vpop.xlane.xlu0 %4015
    %v4017 = vsel %vm232, %v4001, 0.0
    %4018 = vadd.xlane.f32.xlu0 %v4017
    %v4019 = vpop.xlane.xlu0 %4018
    %v4020 = vmul.f32 %v4010, %v245
    %v4021 = vmul.f32 %v4013, %v245
    %v4022 = vmul.f32 %v4016, %v245
    %v4023 = vmul.f32 %v4019, %v245
    %v4024 = vsub.f32 %v3990, %v4020
    %v4025 = vsub.f32 %v3993, %v4021
    %v4026 = vsub.f32 %v3998, %v4022
    %v4027 = vsub.f32 %v4001, %v4023
    %v4028 = vmul.f32 %v4024, %v4024
    %v4029 = vmul.f32 %v4025, %v4025
    %v4030 = vmul.f32 %v4026, %v4026
    %v4031 = vmul.f32 %v4027, %v4027
    %v4032 = vsel %vm232, %v4028, 0.0
    %4033 = vadd.xlane.f32.xlu0 %v4032
    %v4034 = vpop.xlane.xlu0 %4033
    %v4035 = vsel %vm232, %v4029, 0.0
    %4036 = vadd.xlane.f32.xlu0 %v4035
    %v4037 = vpop.xlane.xlu0 %4036
    %v4038 = vsel %vm232, %v4030, 0.0
    %4039 = vadd.xlane.f32.xlu0 %v4038
    %v4040 = vpop.xlane.xlu0 %4039
    %v4041 = vsel %vm232, %v4031, 0.0
    %4042 = vadd.xlane.f32.xlu0 %v4041
    %v4043 = vpop.xlane.xlu0 %4042
    %v4044 = vmul.f32 %v4034, %v245
    %v4045 = vmul.f32 %v4037, %v245
    %v4046 = vmul.f32 %v4040, %v245
    %v4047 = vmul.f32 %v4043, %v245
    %v4048 = vadd.f32 %v4044, 1e-05
    %v4049 = vadd.f32 %v4045, 1e-05
    %v4050 = vadd.f32 %v4046, 1e-05
    %v4051 = vadd.f32 %v4047, 1e-05
    %v4052 = vrsqrt.pop %v4048
    %v4053 = vrsqrt.pop %v4049
    %v4054 = vrsqrt.pop %v4050
    %v4055 = vrsqrt.pop %v4051
    %v4056 = vmul.f32 %v4024, %v4052
    %v4057 = vmul.f32 %v4025, %v4053
    %v4058 = vmul.f32 %v4026, %v4054
    %v4059 = vmul.f32 %v4027, %v4055
    %v4061 = vlaneseq
    %v4062 = vshrl.u32 %v4061, 7
    %v4063 = vsub.s32 0, %v4062
    %v4064 = vrot.slane %v4005, %v4063
    %v4066 = vmul.f32 %v4056, %v4064
    %v4067 = vmul.f32 %v4057, %v4064
    %v4068 = vmul.f32 %v4058, %v4064
    %v4069 = vmul.f32 %v4059, %v4064
    %v4071 = vlaneseq
    %v4072 = vshrl.u32 %v4071, 7
    %v4073 = vsub.s32 0, %v4072
    %v4074 = vrot.slane %v4007, %v4073
    %v4076 = vadd.f32 %v4066, %v4074
    %v4077 = vadd.f32 %v4067, %v4074
    %v4078 = vadd.f32 %v4068, %v4074
    %v4079 = vadd.f32 %v4069, %v4074
    %vm4080 = vcmp.ge.f32.partialorder %v4076, 0.0
    %vm4081 = vcmp.ge.f32.partialorder %v4077, 0.0
    %vm4082 = vcmp.ge.f32.partialorder %v4078, 0.0
    %vm4083 = vcmp.ge.f32.partialorder %v4079, 0.0
    %v4084 = vmul.f32 %v4076, 0.01
    %v4085 = vmul.f32 %v4077, 0.01
    %v4086 = vmul.f32 %v4078, 0.01
    %v4087 = vmul.f32 %v4079, 0.01
    %v4088 = vsel %vm4080, %v4076, %v4084
    %v4089 = vsel %vm4081, %v4077, %v4085
    %v4090 = vsel %vm4082, %v4078, %v4086
    %v4091 = vsel %vm4083, %v4079, %v4087
    %v4092 = vpack.c.bf16 %v4089, %v4088
    %v4093 = vpack.c.bf16 %v4091, %v4090
    %s4094 = scalar_lea.vmem [#allocation6], 56
    %v4095 = vld [vmem:[%s4094] sm:$0xf]
    %v4096 = vld [vmem:[%s4094 + $0x4] sm:$0xf]
    %s4097 = scalar_lea.vmem %s10, 7
    %v4098 = vld [vmem:[%s4097] sm:$0x1]
    %v4100 = vlaneseq
    %v4101 = vshrl.u32 %v4100, 7
    %v4102 = vsub.s32 0, %v4101
    %v4103 = vrot.slane %v4098, %v4102
    %v4107 = vunpack.c.l.b16 %v4095
    %v4108 = vunpack.c.l.b16 %v4096
    %v4109 = vpack.c.b16 %v4108, %v4107
    %v4112 = vsel %vm232, %v4092, 0
    %v4115 = vsel %vm232, %v4093, 0
    %4117 = vmatprep.subr.bf16.mxu0 0
    %4118 = vmatpush1.bf16.msra.mxu0 %v4109
    %4119 = vmatprep.subr.bf16.mxu0 0
    %4120 = vmatpush1.bf16.msra.mxu0 0
    %4121 = vmatprep.subr.bf16.mxu0 0
    %4122 = vmatpush1.bf16.msra.mxu0 0
    %4123 = vmatprep.subr.bf16.mxu0 0
    %4124 = vmatpush1.bf16.msra.mxu0 0
    %4125 = vmatprep.subr.bf16.mxu0 0
    %4126 = vmatpush1.bf16.msra.mxu0 0
    %4127 = vmatprep.subr.bf16.mxu0 0
    %4128 = vmatpush1.bf16.msra.mxu0 0
    %4129 = vmatprep.subr.bf16.mxu0 0
    %4130 = vmatpush1.bf16.msra.mxu0 0
    %4131 = vmatprep.subr.bf16.mxu0 0
    %4132 = vmatpush1.bf16.msra.mxu0 0
    %4133 = vmatprep.subr.bf16.mxu0 0
    %4134 = vmatpush1.bf16.msra.mxu0 0
    %4135 = vmatprep.subr.bf16.mxu0 0
    %4136 = vmatpush1.bf16.msra.mxu0 0
    %4137 = vmatprep.subr.bf16.mxu0 0
    %4138 = vmatpush1.bf16.msra.mxu0 0
    %4139 = vmatprep.subr.bf16.mxu0 0
    %4140 = vmatpush1.bf16.msra.mxu0 0
    %4141 = vmatprep.subr.bf16.mxu0 0
    %4142 = vmatpush1.bf16.msra.mxu0 0
    %4143 = vmatprep.subr.bf16.mxu0 0
    %4144 = vmatpush1.bf16.msra.mxu0 0
    %4145 = vmatprep.subr.bf16.mxu0 0
    %4146 = vmatpush1.bf16.msra.mxu0 0
    %4147 = vmatprep.subr.bf16.mxu0 0
    %4148 = vmatpush1.bf16.msra.mxu0 0
    %4149 = vmatprep.mubr.bf16.mxu0 0
    %4150 = vmatmul.mubr.bf16.gmra.mrb[0].mxu0 %v4112
    %v4151 = vpop.f32.mrb[0].mxu0
    %v4152 = vadd.f32 %v4103, %v4151
    %v4153 = vpop.f32.mrb[0].mxu0
    %v4154 = vpop.f32.mrb[0].mxu0
    %v4155 = vadd.f32 %v4103, %v4154
    %v4156 = vpop.f32.mrb[0].mxu0
    %4157 = vmatprep.mubr.bf16.mxu0 0
    %4158 = vmatmul.mubr.bf16.gmra.mrb[0].mxu0 %v4115
    %v4159 = vpop.f32.mrb[0].mxu0
    %v4160 = vadd.f32 %v4103, %v4159
    %v4161 = vpop.f32.mrb[0].mxu0
    %v4162 = vpop.f32.mrb[0].mxu0
    %v4163 = vadd.f32 %v4103, %v4162
    %v4164 = vpop.f32.mrb[0].mxu0
    %4165 = vdwg.mxu0
    %v4166 = vadd.f32 %v3690, %v4152
    %v4167 = vadd.f32 %v3691, %v4155
    %v4168 = vadd.f32 %v3692, %v4160
    %v4169 = vadd.f32 %v3693, %v4163
    %4170 = vst.msk [vmem:[%s11] sm:$0xff] %vm174, %v4166
    %4171 = vst.msk [vmem:[%s11 + $0x8] sm:$0xff] %vm174, %v4167
    %4172 = vst.msk [vmem:[%s11 + $0x10] sm:$0xff] %vm174, %v4168
    %4173 = vst.msk [vmem:[%s11 + $0x18] sm:$0xff] %vm174, %v4169
    // Predicated region
    $region58: #{_lambda_.2} parent=1 // pred_check
      _
    $region59: #{_lambda_.2} parent=1 // pred_check_branch
      %4175 = sbr.rel (0) target = $region61
    $region60: #{_lambda_.2} parent=1 // pred_region
      _
    $region61: #{_lambda_.2} parent=1 // pred_fallthru
      _
    // Predicated region
    $region62: #{_lambda_.2} parent=1 // pred_check
      _
    $region63: #{_lambda_.2} parent=1 // pred_check_branch
      %4177 = sbr.rel (0) target = $region65
    $region64: #{_lambda_.2} parent=1 // pred_region
      _
    $region65: #{_lambda_.2} parent=1 // pred_fallthru
      _
    %4178 = vsyncpa [#allocation3], 1
    %4179 = vsyncpa [#allocation5], 1

</llo_original>
